<compile_context>
chip_gen: v7x
topology: tpu7x:2x2x1
jax: 0.10.0
libtpu: 0.0.40
codegen_flags: <defaults>
</compile_context>

<pallas_src>
import math

import jax
import jax.numpy as jnp
import numpy as np
from jax.experimental import pallas as pl
from jax.experimental.pallas import tpu as pltpu

LANE = 128


def _ceil_to(x, m):
    return ((x + m - 1) // m) * m


def _pad_lane(a):
    c = a.shape[-1]
    cp = _ceil_to(c, LANE)
    if cp == c:
        return a
    return jnp.pad(a, [(0, 0)] * (a.ndim - 1) + [(0, cp - c)])


def _vmem_cap():
    try:
        info = pltpu.get_tpu_info()
        cap = getattr(info, "vmem_capacity_bytes", None)
        if cap:
            return int(cap)
    except Exception:
        pass
    return 64 << 20  # conservative default (v7x per-TC VMEM)


def _vmem_limit_bytes():
    cap = _vmem_cap()
    # ~48 MiB on v7x (64 MiB VMEM), ~100 MiB on v5e/v6e (128 MiB VMEM)
    return int(max(32 << 20, min(cap - (16 << 20), 100 << 20)))


def _compiler_params():
    return pltpu.CompilerParams(
        dimension_semantics=("parallel", "parallel"),
        vmem_limit_bytes=_vmem_limit_bytes())


def _pick_band(rows_out, per_row_bytes, fixed_bytes):
    """Largest divisor of rows_out whose resident-VMEM estimate fits the budget."""
    budget = int(_vmem_limit_bytes() * 0.7)
    band = 1
    for d in range(rows_out, 0, -1):
        if rows_out % d == 0 and fixed_bytes + d * per_row_bytes <= budget:
            band = d
            break
    # Prefer >=2 bands when tall enough: enables DMA/compute pipelining and
    # megacore (v7x) sharding of the row-band grid axis.
    if band == rows_out and rows_out >= 16 and rows_out % 2 == 0:
        band = rows_out // 2
    return band


def _band_halos(x, bh_in):
    """Top/bottom halo rows per band: (B, n_bands, W, C) each (zeros at edges)."""
    B, H, W, C = x.shape
    n = H // bh_in
    z = jnp.zeros((B, 1, W, C), x.dtype)
    if n == 1:
        return z, z
    tops = jnp.concatenate([z, x[:, bh_in - 1::bh_in, :, :][:, :n - 1]], axis=1)
    bots = jnp.concatenate([x[:, bh_in::bh_in, :, :][:, :n - 1], z], axis=1)
    return tops, bots


# ----------------------------------------------------------------------------
# Pallas kernels
# ----------------------------------------------------------------------------
def _make_conv3x3_kernel(s, has_res, has_down):
    """Fused 3x3 conv (pad=1, stride s) + folded BN (+ residual add) + ReLU.

    Optionally also emits the 1x1-conv+BN identity-downsample of the same
    input band (second output) so the first BasicBlock of a level reads x
    from HBM only once.
    """

    def kernel(*refs):
        it = iter(refs)
        x_ref = next(it)
        top_ref = next(it)
        bot_ref = next(it)
        res_ref = next(it) if has_res else None
        w_ref = next(it)
        scale_ref = next(it)
        bias_ref = next(it)
        if has_down:
            wd_ref = next(it)
            sd_ref = next(it)
            bd_ref = next(it)
        out_ref = next(it)
        id_ref = next(it) if has_down else None

        bh_in, W, Cin = x_ref.shape[1], x_ref.shape[2], x_ref.shape[3]
        bh_out, Wo, Cout = out_ref.shape[1], out_ref.shape[2], out_ref.shape[3]

        # Padded band built as values (no VMEM-scratch round trip): rows come
        # from the band plus its two halo rows, columns are zero-padded.
        xb = x_ref[0]                                      # (bh_in, W, Cin)
        xp = jnp.concatenate([top_ref[0], xb, bot_ref[0]], axis=0)
        zc = jnp.zeros((bh_in + 2, 1, Cin), xp.dtype)
        xp = jnp.concatenate([zc, xp, zc], axis=1)         # (bh_in+2, W+2, Cin)

        if s == 1:
            def tap(dy, dx):
                return xp[dy:dy + bh_out, dx:dx + Wo, :]
        else:  # s == 2: split into 4 parity phases once; taps are then plain
               # contiguous slices (no per-tap strided gathers).
            rows = xp.reshape(bh_out + 1, 2, W + 2, Cin)

            def colsplit(a):
                a2 = a.reshape(bh_out + 1, Wo + 1, 2, Cin)
                return a2[:, :, 0, :], a2[:, :, 1, :]

            ph = [colsplit(rows[:, 0]), colsplit(rows[:, 1])]

            def tap(dy, dx):
                a = ph[dy % 2][dx % 2]
                return a[dy // 2:dy // 2 + bh_out, dx // 2:dx // 2 + Wo, :]

        # 9 shifted bf16 matmuls on the MXU, accumulated as an f32 value
        # (kept in vregs / MRB), not through a VMEM scratch.
        acc = None
        for dy in range(3):
            for dx in range(3):
                p = tap(dy, dx).reshape(bh_out * Wo, Cin)
                c = jnp.dot(p, w_ref[dy, dx], preferred_element_type=jnp.float32)
                acc = c if acc is None else acc + c

        y = acc * scale_ref[...] + bias_ref[...]
        if has_res:
            # pcdet BasicBlock: residual added BEFORE the (only) ReLU.
            y = y + res_ref[0].reshape(bh_out * Wo, Cout).astype(jnp.float32)
        y = jnp.maximum(y, 0.0)
        out_ref[0] = y.reshape(bh_out, Wo, Cout).astype(out_ref.dtype)

        if has_down:
            xs = tap(1, 1).reshape(bh_out * Wo, Cin)       # strided center pixels
            yd = jnp.dot(xs, wd_ref[...], preferred_element_type=jnp.float32)
            yd = yd * sd_ref[...] + bd_ref[...]            # BN only, no ReLU
            id_ref[0] = yd.reshape(bh_out, Wo, Cout).astype(id_ref.dtype)

    return kernel


def _make_deconv_kernel(s):
    """ConvTranspose2d(kernel=stride=s) + folded BN + ReLU, with the pixel
    shuffle folded into the output layout (B, H, s, W, s*Cout) so the final
    (B, H*s, W*s, Cout) view is a free adjacent-dim reshape in JAX."""

    def kernel(x_ref, w_ref, scale_ref, bias_ref, out_ref):
        bh, W, Cin = x_ref.shape[1], x_ref.shape[2], x_ref.shape[3]
        Cp = scale_ref.shape[1]
        x2 = x_ref[0].reshape(bh * W, Cin)
        scale = scale_ref[...]
        bias = bias_ref[...]
        rows = []
        for p in range(s):
            cols = []
            for q in range(s):
                y = jnp.dot(x2, w_ref[p * s + q],
                            preferred_element_type=jnp.float32)
                y = jnp.maximum(y * scale + bias, 0.0)
                cols.append(y.astype(out_ref.dtype))
            yc = jnp.concatenate(cols, axis=-1) if s > 1 else cols[0]
            rows.append(yc.reshape(bh, W, s * Cp))
        out_ref[0] = jnp.stack(rows, axis=1)               # (bh, s, W, s*Cp)

    return kernel


# ----------------------------------------------------------------------------
# pallas_call wrappers
# ----------------------------------------------------------------------------
def conv3x3_block(x, w, scale, bias, *, stride=1, residual=None, down=None):
    """x: (B,H,W,Cin_p) bf16 (Cin_p multiple of 128); w: (3,3,Cin,Cout) f32.
    Returns bf16 (B,Ho,Wo,Cout_p) [, identity of same shape if down]."""
    B, H, W, Cin_p = x.shape
    s = int(stride)
    assert s in (1, 2), "TODO(synk): general 3x3 strides"
    assert H % s == 0 and W % s == 0 and (s == 1 or W % 2 == 0)
    Ho, Wo = H // s, W // s
    Cout = w.shape[-1]
    Cout_p = _ceil_to(Cout, LANE)
    has_res = residual is not None
    has_down = down is not None

    # zero-pad weights / folded-BN params to the 128-lane channel layout
    wp = jnp.pad(w.astype(jnp.bfloat16),
                 ((0, 0), (0, 0), (0, Cin_p - w.shape[2]), (0, Cout_p - Cout)))
    sp = jnp.pad(scale.astype(jnp.float32), (0, Cout_p - Cout)).reshape(1, Cout_p)
    bp = jnp.pad(bias.astype(jnp.float32), (0, Cout_p - Cout)).reshape(1, Cout_p)

    # VMEM estimate: 2x for double-buffered BlockSpec blocks only; in-kernel
    # value copies (padded band, taps, f32 accumulator) counted once.
    per_row = (2 * 2 * s * W * Cin_p
               + 2 * 2 * Wo * Cout_p * (1 + int(has_res) + int(has_down))
               + 3 * 2 * s * W * Cin_p + 8 * Wo * Cout_p)
    fixed = (2 * 2 * (9 + int(has_down)) * Cin_p * Cout_p
             + 2 * 2 * 2 * W * Cin_p + (2 << 20))
    band_h = _pick_band(Ho, per_row, fixed)
    bh_in = band_h * s
    n_bands = Ho // band_h

    tops, bots = _band_halos(x, bh_in)

    in_specs = [pl.BlockSpec((1, bh_in, W, Cin_p), lambda b, r: (b, r, 0, 0)),
                pl.BlockSpec((1, 1, W, Cin_p), lambda b, r: (b, r, 0, 0)),
                pl.BlockSpec((1, 1, W, Cin_p), lambda b, r: (b, r, 0, 0))]
    args = [x, tops, bots]
    if has_res:
        in_specs.append(pl.BlockSpec((1, band_h, Wo, Cout_p),
                                     lambda b, r: (b, r, 0, 0)))
        args.append(residual)
    in_specs += [pl.BlockSpec((3, 3, Cin_p, Cout_p), lambda b, r: (0, 0, 0, 0)),
                 pl.BlockSpec((1, Cout_p), lambda b, r: (0, 0)),
                 pl.BlockSpec((1, Cout_p), lambda b, r: (0, 0))]
    args += [wp, sp, bp]
    if has_down:
        wd, sd, bd = down
        wdp = jnp.pad(wd.astype(jnp.bfloat16),
                      ((0, Cin_p - wd.shape[0]), (0, Cout_p - Cout)))
        sdp = jnp.pad(sd.astype(jnp.float32), (0, Cout_p - Cout)).reshape(1, Cout_p)
        bdp = jnp.pad(bd.astype(jnp.float32), (0, Cout_p - Cout)).reshape(1, Cout_p)
        in_specs += [pl.BlockSpec((Cin_p, Cout_p), lambda b, r: (0, 0)),
                     pl.BlockSpec((1, Cout_p), lambda b, r: (0, 0)),
                     pl.BlockSpec((1, Cout_p), lambda b, r: (0, 0))]
        args += [wdp, sdp, bdp]

    out_block = pl.BlockSpec((1, band_h, Wo, Cout_p), lambda b, r: (b, r, 0, 0))
    out_sds = jax.ShapeDtypeStruct((B, Ho, Wo, Cout_p), jnp.bfloat16)
    if has_down:
        out_shape = (out_sds, out_sds)
        out_specs = (out_block, out_block)
    else:
        out_shape = out_sds
        out_specs = out_block

    return pl.pallas_call(
        _make_conv3x3_kernel(s, has_res, has_down),
        out_shape=out_shape,
        grid=(B, n_bands),
        in_specs=in_specs,
        out_specs=out_specs,
        compiler_params=_compiler_params(),
    )(*args)


def deconv_block(x, w, scale, bias, stride):
    """ConvTranspose2d(k=s, stride=s)+BN+ReLU.  x: (B,H,W,Cin_p) bf16;
    w: (s,s,Cin,Cout) f32.  Returns bf16 (B, H*s, W*s, Cout_p)."""
    B, H, W, Cin_p = x.shape
    s = int(stride)
    Cout = w.shape[-1]
    Cout_p = _ceil_to(Cout, LANE)
    wp = jnp.pad(w.astype(jnp.bfloat16),
                 ((0, 0), (0, 0), (0, Cin_p - w.shape[2]), (0, Cout_p - Cout)))
    wp = wp.reshape(s * s, Cin_p, Cout_p)
    sp = jnp.pad(scale.astype(jnp.float32), (0, Cout_p - Cout)).reshape(1, Cout_p)
    bp = jnp.pad(bias.astype(jnp.float32), (0, Cout_p - Cout)).reshape(1, Cout_p)

    per_row = (2 * 2 * W * Cin_p + 2 * 2 * s * s * W * Cout_p
               + 2 * W * Cin_p + 8 * s * s * W * Cout_p)
    fixed = 2 * 2 * s * s * Cin_p * Cout_p + (2 << 20)
    band_h = _pick_band(H, per_row, fixed)
    n_bands = H // band_h

    out = pl.pallas_call(
        _make_deconv_kernel(s),
        out_shape=jax.ShapeDtypeStruct((B, H, s, W, s * Cout_p), jnp.bfloat16),
        grid=(B, n_bands),
        in_specs=[pl.BlockSpec((1, band_h, W, Cin_p), lambda b, r: (b, r, 0, 0)),
                  pl.BlockSpec((s * s, Cin_p, Cout_p), lambda b, r: (0, 0, 0)),
                  pl.BlockSpec((1, Cout_p), lambda b, r: (0, 0)),
                  pl.BlockSpec((1, Cout_p), lambda b, r: (0, 0))],
        out_specs=pl.BlockSpec((1, band_h, s, W, s * Cout_p),
                               lambda b, r: (b, r, 0, 0, 0)),
        compiler_params=_compiler_params(),
    )(x, wp, sp, bp)
    # Free pixel shuffle: adjacent-dim splits/merges only (no data movement).
    return out.reshape(B, H, s, W, s, Cout_p).reshape(B, H * s, W * s, Cout_p)


# ----------------------------------------------------------------------------
# Parameter construction (deterministic, synthetic, eval-mode BN folded)
# ----------------------------------------------------------------------------
def _fold_bn(key, c, eps=1e-3):
    k1, k2, k3, k4 = jax.random.split(key, 4)
    gamma = jax.random.uniform(k1, (c,), jnp.float32, 0.8, 1.2)
    beta = jax.random.normal(k2, (c,), jnp.float32) * 0.05
    mean = jax.random.normal(k3, (c,), jnp.float32) * 0.05
    var = jax.random.uniform(k4, (c,), jnp.float32, 0.8, 1.2)
    scale = gamma * jax.lax.rsqrt(var + eps)
    bias = beta - mean * scale
    return scale, bias


def _init_basic_block(key, c_in, c_out, stride, downsample):
    k1, k2, k3, k4, k5, k6 = jax.random.split(key, 6)
    w1 = jax.random.normal(k1, (3, 3, c_in, c_out), jnp.float32) / (3.0 * math.sqrt(c_in))
    s1, b1 = _fold_bn(k2, c_out)
    w2 = jax.random.normal(k3, (3, 3, c_out, c_out), jnp.float32) / (3.0 * math.sqrt(c_out))
    s2, b2 = _fold_bn(k4, c_out)
    down = None
    if downsample:
        wd = jax.random.normal(k5, (c_in, c_out), jnp.float32) / math.sqrt(c_in)
        sd, bd = _fold_bn(k6, c_out)
        down = (wd, sd, bd)
    return dict(conv1=(w1, s1, b1), conv2=(w2, s2, b2),
                stride=int(stride), down=down)


def init_params(key, cfg, input_channels):
    layer_nums = cfg["LAYER_NUMS"]
    layer_strides = cfg["LAYER_STRIDES"]
    num_filters = cfg["NUM_FILTERS"]
    num_up = cfg["NUM_UPSAMPLE_FILTERS"]
    up_strides = cfg["UPSAMPLE_STRIDES"]
    assert len(layer_nums) == len(layer_strides) == len(num_filters)
    assert len(up_strides) == len(num_up)

    c_in_list = [input_channels] + list(num_filters[:-1])
    params = {"blocks": [], "deblocks": []}
    for idx in range(len(layer_nums)):
        blocks = []
        key, kb = jax.random.split(key)
        # first BasicBlock of the level: c_in -> num_filters[idx], stride
        # layer_strides[idx], 1x1-conv+BN downsample on the identity path
        blocks.append(_init_basic_block(kb, c_in_list[idx], num_filters[idx],
                                        layer_strides[idx], True))
        for _ in range(layer_nums[idx]):
            key, kb = jax.random.split(key)
            blocks.append(_init_basic_block(kb, num_filters[idx],
                                            num_filters[idx], 1, False))
        params["blocks"].append(blocks)

        s = int(up_strides[idx])
        co = num_up[idx]
        key, kw, kb = jax.random.split(key, 3)
        w = jax.random.normal(kw, (s, s, num_filters[idx], co), jnp.float32) / (
            s * math.sqrt(num_filters[idx]))
        sc, bi = _fold_bn(kb, co)
        params["deblocks"].append((w, sc, bi, s))

    if len(up_strides) > len(layer_nums):  # optional extra final deblock
        c_in = sum(num_up)
        s = int(up_strides[-1])
        key, kw, kb = jax.random.split(key, 3)
        w = jax.random.normal(kw, (s, s, c_in, c_in), jnp.float32) / (s * math.sqrt(c_in))
        sc, bi = _fold_bn(kb, c_in)
        params["deblocks"].append((w, sc, bi, s))
    return params


# ----------------------------------------------------------------------------
# Forward (mirrors BaseBEVResBackbone.forward; returns spatial_features_2d)
# ----------------------------------------------------------------------------
def basic_block(x, blk):
    s = blk["stride"]
    if blk["down"] is not None:
        # conv1 + BN + ReLU with the 1x1-downsample identity fused in
        h, identity = conv3x3_block(x, *blk["conv1"], stride=s, down=blk["down"])
    else:
        identity = x
        h = conv3x3_block(x, *blk["conv1"], stride=s)
    # conv2 + BN, residual add, final ReLU fused into one kernel
    return conv3x3_block(h, *blk["conv2"], stride=1, residual=identity)


def forward(spatial_features, params):
    x = jnp.transpose(spatial_features, (0, 2, 3, 1)).astype(jnp.bfloat16)  # NCHW->NHWC
    x = _pad_lane(x)
    ups, up_c = [], []
    for i, level_blocks in enumerate(params["blocks"]):
        for blk in level_blocks:
            x = basic_block(x, blk)
        if params["deblocks"]:
            w, sc, bi, s = params["deblocks"][i]
            ups.append(deconv_block(x, w, sc, bi, s))
            up_c.append(w.shape[-1])
        else:
            ups.append(x)
            up_c.append(level_blocks[-1]["conv2"][0].shape[-1])
    # strip lane padding; XLA fuses slice+concat+transpose+cast into one pass
    outs = [u[..., :c] for u, c in zip(ups, up_c)]
    y = outs[0] if len(outs) == 1 else jnp.concatenate(outs, axis=-1)
    if len(params["deblocks"]) > len(params["blocks"]):
        w, sc, bi, s = params["deblocks"][-1]
        y = deconv_block(_pad_lane(y), w, sc, bi, s)[..., :w.shape[-1]]
    return jnp.transpose(y.astype(jnp.float32), (0, 3, 1, 2))  # NHWC->NCHW


# ----------------------------------------------------------------------------
# Pure-JAX f32 reference (correctness check only)
# ----------------------------------------------------------------------------
def _ref_conv_bn(x, w, scale, bias, stride=1):
    y = jax.lax.conv_general_dilated(
        x, w, (stride, stride), ((1, 1), (1, 1)),
        dimension_numbers=("NHWC", "HWIO", "NHWC"))
    return y * scale + bias


def _ref_basic_block(x, blk):
    s = blk["stride"]
    if blk["down"] is not None:
        wd, sd, bd = blk["down"]
        identity = jnp.einsum("nhwc,cd->nhwd", x[:, ::s, ::s, :], wd) * sd + bd
    else:
        identity = x
    h = jnp.maximum(_ref_conv_bn(x, *blk["conv1"], stride=s), 0.0)
    h = _ref_conv_bn(h, *blk["conv2"])
    return jnp.maximum(h + identity, 0.0)


def _ref_deconv(x, w, scale, bias, s):
    B, H, W, _ = x.shape
    Cout = w.shape[-1]
    y = jnp.einsum("nhwi,pqio->nhpwqo", x, w).reshape(B, H * s, W * s, Cout)
    return jnp.maximum(y * scale + bias, 0.0)


def forward_ref(spatial_features, params):
    x = jnp.transpose(spatial_features, (0, 2, 3, 1))
    ups = []
    for i, level_blocks in enumerate(params["blocks"]):
        for blk in level_blocks:
            x = _ref_basic_block(x, blk)
        if params["deblocks"]:
            w, sc, bi, s = params["deblocks"][i]
            ups.append(_ref_deconv(x, w, sc, bi, s))
        else:
            ups.append(x)
    y = ups[0] if len(ups) == 1 else jnp.concatenate(ups, axis=-1)
    if len(params["deblocks"]) > len(params["blocks"]):
        w, sc, bi, s = params["deblocks"][-1]
        y = _ref_deconv(y, w, sc, bi, s)
    return jnp.transpose(y, (0, 3, 1, 2))


# ----------------------------------------------------------------------------
if __name__ == "__main__":
    cfg = dict(
        LAYER_NUMS=[1, 1],
        LAYER_STRIDES=[1, 2],
        NUM_FILTERS=[32, 64],
        UPSAMPLE_STRIDES=[1, 2],
        NUM_UPSAMPLE_FILTERS=[32, 32],
    )
    input_channels = 32
    B, H, W = 2, 16, 16

    key = jax.random.PRNGKey(0)
    key, kp, kx = jax.random.split(key, 3)
    params = init_params(kp, cfg, input_channels)
    spatial_features = jax.random.normal(
        kx, (B, input_channels, H, W), jnp.float32)

    out = jax.block_until_ready(forward(spatial_features, params))
    assert out.shape == (B, sum(cfg["NUM_UPSAMPLE_FILTERS"]), H, W), out.shape

    ref = jax.block_until_ready(forward_ref(spatial_features, params))
    # bf16 MXU operands + bf16 inter-layer activations vs f32 reference.
    np.testing.assert_allclose(np.asarray(out), np.asarray(ref),
                               rtol=1e-1, atol=1e-1)

    print("KERNEL_OK")
</pallas_src>

<mosaic_0001>
module attributes {stable_mosaic.version = 11 : i64} {
  func.func @kernel(%arg0: i32, %arg1: i32, %arg2: memref<1x8x16x128xbf16, #tpu.memory_space<vmem>>, %arg3: memref<1x1x16x128xbf16, #tpu.memory_space<vmem>>, %arg4: memref<1x1x16x128xbf16, #tpu.memory_space<vmem>>, %arg5: memref<3x3x128x128xbf16, #tpu.memory_space<vmem>>, %arg6: memref<1x128xf32, #tpu.memory_space<vmem>>, %arg7: memref<1x128xf32, #tpu.memory_space<vmem>>, %arg8: memref<128x128xbf16, #tpu.memory_space<vmem>>, %arg9: memref<1x128xf32, #tpu.memory_space<vmem>>, %arg10: memref<1x128xf32, #tpu.memory_space<vmem>>, %arg11: memref<1x8x16x128xbf16, #tpu.memory_space<vmem>>, %arg12: memref<1x8x16x128xbf16, #tpu.memory_space<vmem>>) attributes {dimension_semantics = [#tpu.dimension_semantics<parallel>, #tpu.dimension_semantics<parallel>], iteration_bounds = array<i64: 2, 2>, scalar_prefetch = 0 : i64, scratch_operands = 0 : i64, tpu.core_type = #tpu.core_type<tc>, window_params = [{transform_indices = @transform_0, window_bounds = array<i64: 1, 8, 16, 128>}, {transform_indices = @transform_1, window_bounds = array<i64: 1, 1, 16, 128>}, {transform_indices = @transform_2, window_bounds = array<i64: 1, 1, 16, 128>}, {pipeline_mode = #tpu.pipeline_mode<synchronous>, transform_indices = @transform_3, window_bounds = array<i64: 3, 3, 128, 128>}, {pipeline_mode = #tpu.pipeline_mode<synchronous>, transform_indices = @transform_4, window_bounds = array<i64: 1, 128>}, {pipeline_mode = #tpu.pipeline_mode<synchronous>, transform_indices = @transform_5, window_bounds = array<i64: 1, 128>}, {pipeline_mode = #tpu.pipeline_mode<synchronous>, transform_indices = @transform_6, window_bounds = array<i64: 128, 128>}, {pipeline_mode = #tpu.pipeline_mode<synchronous>, transform_indices = @transform_7, window_bounds = array<i64: 1, 128>}, {pipeline_mode = #tpu.pipeline_mode<synchronous>, transform_indices = @transform_8, window_bounds = array<i64: 1, 128>}, {transform_indices = @transform_9, window_bounds = array<i64: 1, 8, 16, 128>}, {transform_indices = @transform_10, window_bounds = array<i64: 1, 8, 16, 128>}]} {
    %c0 = arith.constant 0 : index
    %c0_0 = arith.constant 0 : index
    %c0_1 = arith.constant 0 : index
    %c0_2 = arith.constant 0 : index
    %0 = vector.load %arg2[%c0, %c0_0, %c0_1, %c0_2] : memref<1x8x16x128xbf16, #tpu.memory_space<vmem>>, vector<1x8x16x128xbf16>
    %1 = vector.shape_cast %0 : vector<1x8x16x128xbf16> to vector<8x16x128xbf16>
    %c0_3 = arith.constant 0 : index
    %c0_4 = arith.constant 0 : index
    %c0_5 = arith.constant 0 : index
    %c0_6 = arith.constant 0 : index
    %2 = vector.load %arg3[%c0_3, %c0_4, %c0_5, %c0_6] : memref<1x1x16x128xbf16, #tpu.memory_space<vmem>>, vector<1x1x16x128xbf16>
    %3 = vector.shape_cast %2 : vector<1x1x16x128xbf16> to vector<1x16x128xbf16>
    %c0_7 = arith.constant 0 : index
    %c0_8 = arith.constant 0 : index
    %c0_9 = arith.constant 0 : index
    %c0_10 = arith.constant 0 : index
    %4 = vector.load %arg4[%c0_7, %c0_8, %c0_9, %c0_10] : memref<1x1x16x128xbf16, #tpu.memory_space<vmem>>, vector<1x1x16x128xbf16>
    %5 = vector.shape_cast %4 : vector<1x1x16x128xbf16> to vector<1x16x128xbf16>
    %6 = tpu.concatenate %3, %1, %5 in 0 : vector<1x16x128xbf16>, vector<8x16x128xbf16>, vector<1x16x128xbf16> -> vector<10x16x128xbf16>
    %cst = arith.constant 0.000000e+00 : bf16
    %7 = vector.broadcast %cst : bf16 to vector<10x1x128xbf16>
    %8 = tpu.concatenate %7, %6, %7 in 1 : vector<10x1x128xbf16>, vector<10x16x128xbf16>, vector<10x1x128xbf16> -> vector<10x18x128xbf16>
    %9 = vector.extract_strided_slice %8 {offsets = [0, 0, 0], sizes = [8, 16, 128], strides = [1, 1, 1]} : vector<10x18x128xbf16> to vector<8x16x128xbf16>
    %10 = vector.shape_cast %9 : vector<8x16x128xbf16> to vector<128x128xbf16>
    %c0_11 = arith.constant 0 : index
    %c0_12 = arith.constant 0 : index
    %c0_13 = arith.constant 0 : index
    %c0_14 = arith.constant 0 : index
    %11 = vector.load %arg5[%c0_11, %c0_12, %c0_13, %c0_14] : memref<3x3x128x128xbf16, #tpu.memory_space<vmem>>, vector<1x1x128x128xbf16>
    %12 = vector.shape_cast %11 : vector<1x1x128x128xbf16> to vector<128x128xbf16>
    %cst_15 = arith.constant dense<0.000000e+00> : vector<128x128xf32>
    %13 = tpu.matmul %10, %12, %cst_15 {dimension_numbers = #tpu.dot_dimension_numbers<[1], [0], [0], [1], [0, 0, 1, 1], [], []>} : vector<128x128xbf16>, vector<128x128xbf16>, vector<128x128xf32> -> vector<128x128xf32>
    %14 = vector.extract_strided_slice %8 {offsets = [0, 1, 0], sizes = [8, 16, 128], strides = [1, 1, 1]} : vector<10x18x128xbf16> to vector<8x16x128xbf16>
    %15 = vector.shape_cast %14 : vector<8x16x128xbf16> to vector<128x128xbf16>
    %c0_16 = arith.constant 0 : index
    %c1 = arith.constant 1 : index
    %c0_17 = arith.constant 0 : index
    %c0_18 = arith.constant 0 : index
    %16 = vector.load %arg5[%c0_16, %c1, %c0_17, %c0_18] : memref<3x3x128x128xbf16, #tpu.memory_space<vmem>>, vector<1x1x128x128xbf16>
    %17 = vector.shape_cast %16 : vector<1x1x128x128xbf16> to vector<128x128xbf16>
    %cst_19 = arith.constant dense<0.000000e+00> : vector<128x128xf32>
    %18 = tpu.matmul %15, %17, %cst_19 {dimension_numbers = #tpu.dot_dimension_numbers<[1], [0], [0], [1], [0, 0, 1, 1], [], []>} : vector<128x128xbf16>, vector<128x128xbf16>, vector<128x128xf32> -> vector<128x128xf32>
    %19 = arith.addf %13, %18 : vector<128x128xf32>
    %20 = vector.extract_strided_slice %8 {offsets = [0, 2, 0], sizes = [8, 16, 128], strides = [1, 1, 1]} : vector<10x18x128xbf16> to vector<8x16x128xbf16>
    %21 = vector.shape_cast %20 : vector<8x16x128xbf16> to vector<128x128xbf16>
    %c0_20 = arith.constant 0 : index
    %c2 = arith.constant 2 : index
    %c0_21 = arith.constant 0 : index
    %c0_22 = arith.constant 0 : index
    %22 = vector.load %arg5[%c0_20, %c2, %c0_21, %c0_22] : memref<3x3x128x128xbf16, #tpu.memory_space<vmem>>, vector<1x1x128x128xbf16>
    %23 = vector.shape_cast %22 : vector<1x1x128x128xbf16> to vector<128x128xbf16>
    %cst_23 = arith.constant dense<0.000000e+00> : vector<128x128xf32>
    %24 = tpu.matmul %21, %23, %cst_23 {dimension_numbers = #tpu.dot_dimension_numbers<[1], [0], [0], [1], [0, 0, 1, 1], [], []>} : vector<128x128xbf16>, vector<128x128xbf16>, vector<128x128xf32> -> vector<128x128xf32>
    %25 = arith.addf %19, %24 : vector<128x128xf32>
    %26 = vector.extract_strided_slice %8 {offsets = [1, 0, 0], sizes = [8, 16, 128], strides = [1, 1, 1]} : vector<10x18x128xbf16> to vector<8x16x128xbf16>
    %27 = vector.shape_cast %26 : vector<8x16x128xbf16> to vector<128x128xbf16>
    %c1_24 = arith.constant 1 : index
    %c0_25 = arith.constant 0 : index
    %c0_26 = arith.constant 0 : index
    %c0_27 = arith.constant 0 : index
    %28 = vector.load %arg5[%c1_24, %c0_25, %c0_26, %c0_27] : memref<3x3x128x128xbf16, #tpu.memory_space<vmem>>, vector<1x1x128x128xbf16>
    %29 = vector.shape_cast %28 : vector<1x1x128x128xbf16> to vector<128x128xbf16>
    %cst_28 = arith.constant dense<0.000000e+00> : vector<128x128xf32>
    %30 = tpu.matmul %27, %29, %cst_28 {dimension_numbers = #tpu.dot_dimension_numbers<[1], [0], [0], [1], [0, 0, 1, 1], [], []>} : vector<128x128xbf16>, vector<128x128xbf16>, vector<128x128xf32> -> vector<128x128xf32>
    %31 = arith.addf %25, %30 : vector<128x128xf32>
    %32 = vector.extract_strided_slice %8 {offsets = [1, 1, 0], sizes = [8, 16, 128], strides = [1, 1, 1]} : vector<10x18x128xbf16> to vector<8x16x128xbf16>
    %33 = vector.shape_cast %32 : vector<8x16x128xbf16> to vector<128x128xbf16>
    %c1_29 = arith.constant 1 : index
    %c1_30 = arith.constant 1 : index
    %c0_31 = arith.constant 0 : index
    %c0_32 = arith.constant 0 : index
    %34 = vector.load %arg5[%c1_29, %c1_30, %c0_31, %c0_32] : memref<3x3x128x128xbf16, #tpu.memory_space<vmem>>, vector<1x1x128x128xbf16>
    %35 = vector.shape_cast %34 : vector<1x1x128x128xbf16> to vector<128x128xbf16>
    %cst_33 = arith.constant dense<0.000000e+00> : vector<128x128xf32>
    %36 = tpu.matmul %33, %35, %cst_33 {dimension_numbers = #tpu.dot_dimension_numbers<[1], [0], [0], [1], [0, 0, 1, 1], [], []>} : vector<128x128xbf16>, vector<128x128xbf16>, vector<128x128xf32> -> vector<128x128xf32>
    %37 = arith.addf %31, %36 : vector<128x128xf32>
    %38 = vector.extract_strided_slice %8 {offsets = [1, 2, 0], sizes = [8, 16, 128], strides = [1, 1, 1]} : vector<10x18x128xbf16> to vector<8x16x128xbf16>
    %39 = vector.shape_cast %38 : vector<8x16x128xbf16> to vector<128x128xbf16>
    %c1_34 = arith.constant 1 : index
    %c2_35 = arith.constant 2 : index
    %c0_36 = arith.constant 0 : index
    %c0_37 = arith.constant 0 : index
    %40 = vector.load %arg5[%c1_34, %c2_35, %c0_36, %c0_37] : memref<3x3x128x128xbf16, #tpu.memory_space<vmem>>, vector<1x1x128x128xbf16>
    %41 = vector.shape_cast %40 : vector<1x1x128x128xbf16> to vector<128x128xbf16>
    %cst_38 = arith.constant dense<0.000000e+00> : vector<128x128xf32>
    %42 = tpu.matmul %39, %41, %cst_38 {dimension_numbers = #tpu.dot_dimension_numbers<[1], [0], [0], [1], [0, 0, 1, 1], [], []>} : vector<128x128xbf16>, vector<128x128xbf16>, vector<128x128xf32> -> vector<128x128xf32>
    %43 = arith.addf %37, %42 : vector<128x128xf32>
    %44 = vector.extract_strided_slice %8 {offsets = [2, 0, 0], sizes = [8, 16, 128], strides = [1, 1, 1]} : vector<10x18x128xbf16> to vector<8x16x128xbf16>
    %45 = vector.shape_cast %44 : vector<8x16x128xbf16> to vector<128x128xbf16>
    %c2_39 = arith.constant 2 : index
    %c0_40 = arith.constant 0 : index
    %c0_41 = arith.constant 0 : index
    %c0_42 = arith.constant 0 : index
    %46 = vector.load %arg5[%c2_39, %c0_40, %c0_41, %c0_42] : memref<3x3x128x128xbf16, #tpu.memory_space<vmem>>, vector<1x1x128x128xbf16>
    %47 = vector.shape_cast %46 : vector<1x1x128x128xbf16> to vector<128x128xbf16>
    %cst_43 = arith.constant dense<0.000000e+00> : vector<128x128xf32>
    %48 = tpu.matmul %45, %47, %cst_43 {dimension_numbers = #tpu.dot_dimension_numbers<[1], [0], [0], [1], [0, 0, 1, 1], [], []>} : vector<128x128xbf16>, vector<128x128xbf16>, vector<128x128xf32> -> vector<128x128xf32>
    %49 = arith.addf %43, %48 : vector<128x128xf32>
    %50 = vector.extract_strided_slice %8 {offsets = [2, 1, 0], sizes = [8, 16, 128], strides = [1, 1, 1]} : vector<10x18x128xbf16> to vector<8x16x128xbf16>
    %51 = vector.shape_cast %50 : vector<8x16x128xbf16> to vector<128x128xbf16>
    %c2_44 = arith.constant 2 : index
    %c1_45 = arith.constant 1 : index
    %c0_46 = arith.constant 0 : index
    %c0_47 = arith.constant 0 : index
    %52 = vector.load %arg5[%c2_44, %c1_45, %c0_46, %c0_47] : memref<3x3x128x128xbf16, #tpu.memory_space<vmem>>, vector<1x1x128x128xbf16>
    %53 = vector.shape_cast %52 : vector<1x1x128x128xbf16> to vector<128x128xbf16>
    %cst_48 = arith.constant dense<0.000000e+00> : vector<128x128xf32>
    %54 = tpu.matmul %51, %53, %cst_48 {dimension_numbers = #tpu.dot_dimension_numbers<[1], [0], [0], [1], [0, 0, 1, 1], [], []>} : vector<128x128xbf16>, vector<128x128xbf16>, vector<128x128xf32> -> vector<128x128xf32>
    %55 = arith.addf %49, %54 : vector<128x128xf32>
    %56 = vector.extract_strided_slice %8 {offsets = [2, 2, 0], sizes = [8, 16, 128], strides = [1, 1, 1]} : vector<10x18x128xbf16> to vector<8x16x128xbf16>
    %57 = vector.shape_cast %56 : vector<8x16x128xbf16> to vector<128x128xbf16>
    %c2_49 = arith.constant 2 : index
    %c2_50 = arith.constant 2 : index
    %c0_51 = arith.constant 0 : index
    %c0_52 = arith.constant 0 : index
    %58 = vector.load %arg5[%c2_49, %c2_50, %c0_51, %c0_52] : memref<3x3x128x128xbf16, #tpu.memory_space<vmem>>, vector<1x1x128x128xbf16>
    %59 = vector.shape_cast %58 : vector<1x1x128x128xbf16> to vector<128x128xbf16>
    %cst_53 = arith.constant dense<0.000000e+00> : vector<128x128xf32>
    %60 = tpu.matmul %57, %59, %cst_53 {dimension_numbers = #tpu.dot_dimension_numbers<[1], [0], [0], [1], [0, 0, 1, 1], [], []>} : vector<128x128xbf16>, vector<128x128xbf16>, vector<128x128xf32> -> vector<128x128xf32>
    %61 = arith.addf %55, %60 : vector<128x128xf32>
    %c0_54 = arith.constant 0 : index
    %c0_55 = arith.constant 0 : index
    %62 = vector.load %arg6[%c0_54, %c0_55] : memref<1x128xf32, #tpu.memory_space<vmem>>, vector<1x128xf32>
    %63 = vector.broadcast %62 : vector<1x128xf32> to vector<128x128xf32>
    %64 = arith.mulf %61, %63 : vector<128x128xf32>
    %c0_56 = arith.constant 0 : index
    %c0_57 = arith.constant 0 : index
    %65 = vector.load %arg7[%c0_56, %c0_57] : memref<1x128xf32, #tpu.memory_space<vmem>>, vector<1x128xf32>
    %66 = vector.broadcast %65 : vector<1x128xf32> to vector<128x128xf32>
    %67 = arith.addf %64, %66 : vector<128x128xf32>
    %cst_58 = arith.constant 0.000000e+00 : f32
    %68 = vector.broadcast %cst_58 : f32 to vector<128x128xf32>
    %69 = arith.maximumf %67, %68 : vector<128x128xf32>
    %70 = vector.shape_cast %69 : vector<128x128xf32> to vector<8x16x128xf32>
    %71 = arith.truncf %70 : vector<8x16x128xf32> to vector<8x16x128xbf16>
    %c0_59 = arith.constant 0 : index
    %c0_60 = arith.constant 0 : index
    %c0_61 = arith.constant 0 : index
    %c0_62 = arith.constant 0 : index
    %72 = vector.load %arg11[%c0_59, %c0_60, %c0_61, %c0_62] : memref<1x8x16x128xbf16, #tpu.memory_space<vmem>>, vector<1x8x16x128xbf16>
    %73 = vector.shape_cast %72 : vector<1x8x16x128xbf16> to vector<8x16x128xbf16>
    %74 = vector.shape_cast %71 : vector<8x16x128xbf16> to vector<1x8x16x128xbf16>
    tpu.vector_store %arg11[%c0_59, %c0_60, %c0_61, %c0_62], %74 {strides = array<i32>} : memref<1x8x16x128xbf16, #tpu.memory_space<vmem>>, vector<1x8x16x128xbf16>,
    %75 = vector.extract_strided_slice %8 {offsets = [1, 1, 0], sizes = [8, 16, 128], strides = [1, 1, 1]} : vector<10x18x128xbf16> to vector<8x16x128xbf16>
    %76 = vector.shape_cast %75 : vector<8x16x128xbf16> to vector<128x128xbf16>
    %c0_63 = arith.constant 0 : index
    %c0_64 = arith.constant 0 : index
    %77 = vector.load %arg8[%c0_63, %c0_64] : memref<128x128xbf16, #tpu.memory_space<vmem>>, vector<128x128xbf16>
    %cst_65 = arith.constant dense<0.000000e+00> : vector<128x128xf32>
    %78 = tpu.matmul %76, %77, %cst_65 {dimension_numbers = #tpu.dot_dimension_numbers<[1], [0], [0], [1], [0, 0, 1, 1], [], []>} : vector<128x128xbf16>, vector<128x128xbf16>, vector<128x128xf32> -> vector<128x128xf32>
    %c0_66 = arith.constant 0 : index
    %c0_67 = arith.constant 0 : index
    %79 = vector.load %arg9[%c0_66, %c0_67] : memref<1x128xf32, #tpu.memory_space<vmem>>, vector<1x128xf32>
    %80 = vector.broadcast %79 : vector<1x128xf32> to vector<128x128xf32>
    %81 = arith.mulf %78, %80 : vector<128x128xf32>
    %c0_68 = arith.constant 0 : index
    %c0_69 = arith.constant 0 : index
    %82 = vector.load %arg10[%c0_68, %c0_69] : memref<1x128xf32, #tpu.memory_space<vmem>>, vector<1x128xf32>
    %83 = vector.broadcast %82 : vector<1x128xf32> to vector<128x128xf32>
    %84 = arith.addf %81, %83 : vector<128x128xf32>
    %85 = vector.shape_cast %84 : vector<128x128xf32> to vector<8x16x128xf32>
    %86 = arith.truncf %85 : vector<8x16x128xf32> to vector<8x16x128xbf16>
    %c0_70 = arith.constant 0 : index
    %c0_71 = arith.constant 0 : index
    %c0_72 = arith.constant 0 : index
    %c0_73 = arith.constant 0 : index
    %87 = vector.load %arg12[%c0_70, %c0_71, %c0_72, %c0_73] : memref<1x8x16x128xbf16, #tpu.memory_space<vmem>>, vector<1x8x16x128xbf16>
    %88 = vector.shape_cast %87 : vector<1x8x16x128xbf16> to vector<8x16x128xbf16>
    %89 = vector.shape_cast %86 : vector<8x16x128xbf16> to vector<1x8x16x128xbf16>
    tpu.vector_store %arg12[%c0_70, %c0_71, %c0_72, %c0_73], %89 {strides = array<i32>} : memref<1x8x16x128xbf16, #tpu.memory_space<vmem>>, vector<1x8x16x128xbf16>,
    return
  }
  func.func @transform_0(%arg0: i32, %arg1: i32) -> (i32, i32, i32, i32) {
    %c0_i32 = arith.constant 0 : i32
    %c0_i32_0 = arith.constant 0 : i32
    %c0_i32_1 = arith.constant 0 : i32
    return %arg0, %arg1, %c0_i32, %c0_i32_0 : i32, i32, i32, i32
  }
  func.func @transform_1(%arg0: i32, %arg1: i32) -> (i32, i32, i32, i32) {
    %c0_i32 = arith.constant 0 : i32
    %c0_i32_0 = arith.constant 0 : i32
    %c0_i32_1 = arith.constant 0 : i32
    return %arg0, %arg1, %c0_i32, %c0_i32_0 : i32, i32, i32, i32
  }
  func.func @transform_2(%arg0: i32, %arg1: i32) -> (i32, i32, i32, i32) {
    %c0_i32 = arith.constant 0 : i32
    %c0_i32_0 = arith.constant 0 : i32
    %c0_i32_1 = arith.constant 0 : i32
    return %arg0, %arg1, %c0_i32, %c0_i32_0 : i32, i32, i32, i32
  }
  func.func @transform_3(%arg0: i32, %arg1: i32) -> (i32, i32, i32, i32) {
    %c0_i32 = arith.constant 0 : i32
    %c0_i32_0 = arith.constant 0 : i32
    %c0_i32_1 = arith.constant 0 : i32
    %c0_i32_2 = arith.constant 0 : i32
    %c0_i32_3 = arith.constant 0 : i32
    return %c0_i32, %c0_i32_0, %c0_i32_1, %c0_i32_2 : i32, i32, i32, i32
  }
  func.func @transform_4(%arg0: i32, %arg1: i32) -> (i32, i32) {
    %c0_i32 = arith.constant 0 : i32
    %c0_i32_0 = arith.constant 0 : i32
    %c0_i32_1 = arith.constant 0 : i32
    return %c0_i32, %c0_i32_0 : i32, i32
  }
  func.func @transform_5(%arg0: i32, %arg1: i32) -> (i32, i32) {
    %c0_i32 = arith.constant 0 : i32
    %c0_i32_0 = arith.constant 0 : i32
    %c0_i32_1 = arith.constant 0 : i32
    return %c0_i32, %c0_i32_0 : i32, i32
  }
  func.func @transform_6(%arg0: i32, %arg1: i32) -> (i32, i32) {
    %c0_i32 = arith.constant 0 : i32
    %c0_i32_0 = arith.constant 0 : i32
    %c0_i32_1 = arith.constant 0 : i32
    return %c0_i32, %c0_i32_0 : i32, i32
  }
  func.func @transform_7(%arg0: i32, %arg1: i32) -> (i32, i32) {
    %c0_i32 = arith.constant 0 : i32
    %c0_i32_0 = arith.constant 0 : i32
    %c0_i32_1 = arith.constant 0 : i32
    return %c0_i32, %c0_i32_0 : i32, i32
  }
  func.func @transform_8(%arg0: i32, %arg1: i32) -> (i32, i32) {
    %c0_i32 = arith.constant 0 : i32
    %c0_i32_0 = arith.constant 0 : i32
    %c0_i32_1 = arith.constant 0 : i32
    return %c0_i32, %c0_i32_0 : i32, i32
  }
  func.func @transform_9(%arg0: i32, %arg1: i32) -> (i32, i32, i32, i32) {
    %c0_i32 = arith.constant 0 : i32
    %c0_i32_0 = arith.constant 0 : i32
    %c0_i32_1 = arith.constant 0 : i32
    return %arg0, %arg1, %c0_i32, %c0_i32_0 : i32, i32, i32, i32
  }
  func.func @transform_10(%arg0: i32, %arg1: i32) -> (i32, i32, i32, i32) {
    %c0_i32 = arith.constant 0 : i32
    %c0_i32_0 = arith.constant 0 : i32
    %c0_i32_1 = arith.constant 0 : i32
    return %arg0, %arg1, %c0_i32, %c0_i32_0 : i32, i32, i32, i32
  }
}

</mosaic_0001>

<llo_original>
// kernel: tpu_custom_call.1
$region0: #{tpu_custom_call.1}
  #allocation0 [shape = 'u32[]', space=smem, size = 0x4, offset = 0x4, fixed_abs, tag = 'smem constant byte address 0x4 - core index']
  #allocation1 [shape = 'u32[144,128]{1,0:T(1,128)}', space=vmem, size = 0x12000, scoped, tag = 'internal scratch']
  %s0 = inlined_call_operand.hbm [shape: bf16[2,16,16,128], index: 0, kind: input, shape index: {}]
  %s1 = inlined_call_operand.hbm [shape: bf16[2,2,16,128], index: 1, kind: input, shape index: {}]
  %s2 = inlined_call_operand.hbm [shape: bf16[2,2,16,128], index: 2, kind: input, shape index: {}]
  %s3 = inlined_call_operand.hbm [shape: bf16[3,3,128,128], index: 3, kind: input, shape index: {}]
  %s4 = inlined_call_operand.vmem [shape: f32[1,128], index: 4, kind: input, shape index: {}]
  %s5 = inlined_call_operand.vmem [shape: f32[1,128], index: 5, kind: input, shape index: {}]
  %s6 = inlined_call_operand.hbm [shape: bf16[128,128], index: 6, kind: input, shape index: {}]
  %s7 = inlined_call_operand.vmem [shape: f32[1,128], index: 7, kind: input, shape index: {}]
  %s8 = inlined_call_operand.vmem [shape: f32[1,128], index: 8, kind: input, shape index: {}]
  %s9 = inlined_call_operand.hbm [shape: bf16[2,16,16,128], index: 9, kind: output, shape index: {0}]
  %s10 = inlined_call_operand.hbm [shape: bf16[2,16,16,128], index: 10, kind: output, shape index: {1}]
  %11 = xla_tuple %s9, %s10
  %s12 = sld [smem:[#allocation0]]
  $region97: #{tpu_custom_call.1} parent=0
    _
  %s14 = ssub.s32 1, %s12
  %s15 = scalar_select 0, %s14, %s12
  $region1: #{tpu_custom_call.1} parent=0
    #allocation2 [shape = 'u8[65536]{0}', space=vmem, size = 0x10000, scoped, tag = 'input window, operand 0']
    #allocation3 [shape = 's32[2]{0}', space=sflag, size = 0x8, scoped, tag = 'scoped memory for tpu_custom_call.1']
    #allocation4 [shape = 's32[2]{0}', space=sflag, size = 0x8, scoped, tag = 'scoped memory for tpu_custom_call.1']
    #allocation5 [shape = 'u8[8192]{0}', space=vmem, size = 0x2000, scoped, tag = 'input window, operand 1']
    #allocation6 [shape = 's32[2]{0}', space=sflag, size = 0x8, scoped, tag = 'scoped memory for tpu_custom_call.1']
    #allocation7 [shape = 'u8[8192]{0}', space=vmem, size = 0x2000, scoped, tag = 'input window, operand 2']
    #allocation8 [shape = 'u8[294912]{0}', space=vmem, size = 0x48000, scoped, tag = 'input window, operand 3, single buffered']
    #allocation9 [shape = 's32[1]{0}', space=sflag, size = 0x4, scoped, tag = 'scoped memory for tpu_custom_call.1']
    #allocation10 [shape = 'u8[32768]{0}', space=vmem, size = 0x8000, scoped, tag = 'input window, operand 6, single buffered']
    #allocation11 [shape = 'u8[65536]{0}', space=vmem, size = 0x10000, scoped, tag = 'output window, operand 0']
    #allocation12 [shape = 'u8[65536]{0}', space=vmem, size = 0x10000, scoped, tag = 'output window, operand 1']
    #allocation13 [shape = 's32[2]{0}', space=sflag, size = 0x8, scoped, tag = 'scoped memory for tpu_custom_call.1']
    %16 = vsyncpa [#allocation3], 0
    %s17 = scalar_lea.sflag [#allocation3], 1
    %18 = vsyncpa %s17, 0
    %19 = vsyncpa [#allocation6], 0
    %s20 = scalar_lea.sflag [#allocation6], 1
    %21 = vsyncpa %s20, 0
    %22 = vsyncpa [#allocation9], 0
    %23 = vsyncpa [#allocation4], 0
    %s24 = scalar_lea.sflag [#allocation4], 1
    %25 = vsyncpa %s24, 0
    %26 = vsyncpa [#allocation13], 0
    %s27 = scalar_lea.sflag [#allocation13], 1
    %28 = vsyncpa %s27, 0
    loop: start=0, step=1, limit=6
    $region2: #{tpu_custom_call.1} parent=1 // loop_pre_header
      _
    $region3: #{tpu_custom_call.1} parent=1 // loop_header
      %s30 = sphi 0, %s34
      %p31 = scmp.ge.s32.totalorder %s30, 6
      %s37 = sphi 0, %s49
      %s38 = sphi 0, %s45
      %s39 = sphi 0, %s37
      %s40 = sphi 0, %s38
      %s41 = sphi 0, %s39
      %s42 = sphi 0, %s40
      %s54 = sphi 0, %s56
      %s57 = sphi 0, %s54
      %s58 = sphi 0, %s57
      %s74 = sphi 0, %s58
      %s82 = sphi 0, %s84
      %s85 = sphi 0, %s82
      %s86 = sphi 0, %s85
      %s102 = sphi 0, %s86
      %s110 = sphi 0, %s112
      %s113 = sphi 0, %s110
      %s114 = sphi 0, %s113
      %s130 = sphi 0, %s114
      %s134 = sphi 0, %s134
      %s136 = sphi 0, %s134
      %s137 = sphi 0, %s136
      %s151 = sphi 0, %s137
      %s155 = sphi 0, %s155
      %s157 = sphi 0, %s155
      %s158 = sphi 0, %s157
      %s172 = sphi 0, %s158
      %s176 = sphi 0, %s176
      %s178 = sphi 0, %s176
      %s179 = sphi 0, %s178
      %s193 = sphi 0, %s179
      %s197 = sphi 0, %s197
      %s199 = sphi 0, %s197
      %s200 = sphi 0, %s199
      %s214 = sphi 0, %s200
      %s218 = sphi 0, %s218
      %s220 = sphi 0, %s218
      %s221 = sphi 0, %s220
      %s235 = sphi 0, %s221
      %s239 = sphi 0, %s239
      %s241 = sphi 0, %s239
      %s242 = sphi 0, %s241
      %s256 = sphi 0, %s242
      %s264 = sphi 0, %s266
      %s267 = sphi 0, %s264
      %s268 = sphi 0, %s267
      %s284 = sphi 0, %s268
      %s292 = sphi 0, %s294
      %s295 = sphi 0, %s292
      %s296 = sphi 0, %s295
      %s312 = sphi 0, %s296
    $region4: #{tpu_custom_call.1} parent=1 // loop_header_branch
      %33 = sbr.rel (%p31) target = $region8
    $region5: #{tpu_custom_call.1} parent=1 // loop_body
      %s35 = ssub.s32 %s30, 1
      %s36 = ssub.s32 %s30, 2
      %s43 = sadd.s32 1, %s38
      %p44 = scmp.ge.s32.totalorder %s43, 2
      %s45 = scalar_select %p44, 0, %s43
      %s46 = sadd.s32 1, %s37
      %s47 = scalar_select %p44, %s46, %s37
      %p48 = scmp.ge.s32.totalorder %s47, 2
      %s49 = scalar_select %p48, 0, %s47
      %s50 = ssub.s32 %s37, %s49
      %s51 = ssub.s32 %s38, %s45
      %s52 = sor.u32 %s50, %s51
      %p53 = scmp.eq.s32.totalorder %s52, 0
      %s55 = sadd.s32 %s54, 1
      %s56 = scalar_select %p53, %s54, %s55
      %p59 = pneg %p53
      %p60 = scmp.eq.s32.totalorder %s30, 3
      %p61 = por %p59, %p60
      %p62 = scmp.ne.s32.totalorder %s54, %s57
      %p63 = scmp.eq.s32.totalorder %s30, 0
      %p64 = por %p62, %p63
      %p65 = scmp.ne.s32.totalorder %s54, %s57
      %p66 = scmp.eq.s32.totalorder %s35, 3
      %p67 = por %p65, %p66
      %p68 = scmp.ne.s32.totalorder %s57, %s58
      %p69 = scmp.eq.s32.totalorder %s35, 0
      %p70 = por %p68, %p69
      %p71 = scmp.ne.s32.totalorder %s57, %s58
      %p72 = scmp.eq.s32.totalorder %s36, 3
      %p73 = por %p71, %p72
      %p75 = scmp.ne.s32.totalorder %s58, %s74
      %p76 = scmp.eq.s32.totalorder %s36, 0
      %p77 = por %p75, %p76
      %s78 = ssub.s32 %s37, %s49
      %s79 = ssub.s32 %s38, %s45
      %s80 = sor.u32 %s78, %s79
      %p81 = scmp.eq.s32.totalorder %s80, 0
      %s83 = sadd.s32 %s82, 1
      %s84 = scalar_select %p81, %s82, %s83
      %p87 = pneg %p81
      %p88 = scmp.eq.s32.totalorder %s30, 3
      %p89 = por %p87, %p88
      %p90 = scmp.ne.s32.totalorder %s82, %s85
      %p91 = scmp.eq.s32.totalorder %s30, 0
      %p92 = por %p90, %p91
      %p93 = scmp.ne.s32.totalorder %s82, %s85
      %p94 = scmp.eq.s32.totalorder %s35, 3
      %p95 = por %p93, %p94
      %p96 = scmp.ne.s32.totalorder %s85, %s86
      %p97 = scmp.eq.s32.totalorder %s35, 0
      %p98 = por %p96, %p97
      %p99 = scmp.ne.s32.totalorder %s85, %s86
      %p100 = scmp.eq.s32.totalorder %s36, 3
      %p101 = por %p99, %p100
      %p103 = scmp.ne.s32.totalorder %s86, %s102
      %p104 = scmp.eq.s32.totalorder %s36, 0
      %p105 = por %p103, %p104
      %s106 = ssub.s32 %s37, %s49
      %s107 = ssub.s32 %s38, %s45
      %s108 = sor.u32 %s106, %s107
      %p109 = scmp.eq.s32.totalorder %s108, 0
      %s111 = sadd.s32 %s110, 1
      %s112 = scalar_select %p109, %s110, %s111
      %p115 = pneg %p109
      %p116 = scmp.eq.s32.totalorder %s30, 3
      %p117 = por %p115, %p116
      %p118 = scmp.ne.s32.totalorder %s110, %s113
      %p119 = scmp.eq.s32.totalorder %s30, 0
      %p120 = por %p118, %p119
      %p121 = scmp.ne.s32.totalorder %s110, %s113
      %p122 = scmp.eq.s32.totalorder %s35, 3
      %p123 = por %p121, %p122
      %p124 = scmp.ne.s32.totalorder %s113, %s114
      %p125 = scmp.eq.s32.totalorder %s35, 0
      %p126 = por %p124, %p125
      %p127 = scmp.ne.s32.totalorder %s113, %s114
      %p128 = scmp.eq.s32.totalorder %s36, 3
      %p129 = por %p127, %p128
      %p131 = scmp.ne.s32.totalorder %s114, %s130
      %p132 = scmp.eq.s32.totalorder %s36, 0
      %p133 = por %p131, %p132
      %s135 = sadd.s32 %s134, 1
      %p138 = scmp.eq.s32.totalorder %s30, 3
      %p139 = scmp.ne.s32.totalorder %s134, %s136
      %p140 = scmp.eq.s32.totalorder %s30, 0
      %p141 = por %p139, %p140
      %p142 = scmp.ne.s32.totalorder %s134, %s136
      %p143 = scmp.eq.s32.totalorder %s35, 3
      %p144 = por %p142, %p143
      %p145 = scmp.ne.s32.totalorder %s136, %s137
      %p146 = scmp.eq.s32.totalorder %s35, 0
      %p147 = por %p145, %p146
      %p148 = scmp.ne.s32.totalorder %s136, %s137
      %p149 = scmp.eq.s32.totalorder %s36, 3
      %p150 = por %p148, %p149
      %p152 = scmp.ne.s32.totalorder %s137, %s151
      %p153 = scmp.eq.s32.totalorder %s36, 0
      %p154 = por %p152, %p153
      %s156 = sadd.s32 %s155, 1
      %p159 = scmp.eq.s32.totalorder %s30, 3
      %p160 = scmp.ne.s32.totalorder %s155, %s157
      %p161 = scmp.eq.s32.totalorder %s30, 0
      %p162 = por %p160, %p161
      %p163 = scmp.ne.s32.totalorder %s155, %s157
      %p164 = scmp.eq.s32.totalorder %s35, 3
      %p165 = por %p163, %p164
      %p166 = scmp.ne.s32.totalorder %s157, %s158
      %p167 = scmp.eq.s32.totalorder %s35, 0
      %p168 = por %p166, %p167
      %p169 = scmp.ne.s32.totalorder %s157, %s158
      %p170 = scmp.eq.s32.totalorder %s36, 3
      %p171 = por %p169, %p170
      %p173 = scmp.ne.s32.totalorder %s158, %s172
      %p174 = scmp.eq.s32.totalorder %s36, 0
      %p175 = por %p173, %p174
      %s177 = sadd.s32 %s176, 1
      %p180 = scmp.eq.s32.totalorder %s30, 3
      %p181 = scmp.ne.s32.totalorder %s176, %s178
      %p182 = scmp.eq.s32.totalorder %s30, 0
      %p183 = por %p181, %p182
      %p184 = scmp.ne.s32.totalorder %s176, %s178
      %p185 = scmp.eq.s32.totalorder %s35, 3
      %p186 = por %p184, %p185
      %p187 = scmp.ne.s32.totalorder %s178, %s179
      %p188 = scmp.eq.s32.totalorder %s35, 0
      %p189 = por %p187, %p188
      %p190 = scmp.ne.s32.totalorder %s178, %s179
      %p191 = scmp.eq.s32.totalorder %s36, 3
      %p192 = por %p190, %p191
      %p194 = scmp.ne.s32.totalorder %s179, %s193
      %p195 = scmp.eq.s32.totalorder %s36, 0
      %p196 = por %p194, %p195
      %s198 = sadd.s32 %s197, 1
      %p201 = scmp.eq.s32.totalorder %s30, 3
      %p202 = scmp.ne.s32.totalorder %s197, %s199
      %p203 = scmp.eq.s32.totalorder %s30, 0
      %p204 = por %p202, %p203
      %p205 = scmp.ne.s32.totalorder %s197, %s199
      %p206 = scmp.eq.s32.totalorder %s35, 3
      %p207 = por %p205, %p206
      %p208 = scmp.ne.s32.totalorder %s199, %s200
      %p209 = scmp.eq.s32.totalorder %s35, 0
      %p210 = por %p208, %p209
      %p211 = scmp.ne.s32.totalorder %s199, %s200
      %p212 = scmp.eq.s32.totalorder %s36, 3
      %p213 = por %p211, %p212
      %p215 = scmp.ne.s32.totalorder %s200, %s214
      %p216 = scmp.eq.s32.totalorder %s36, 0
      %p217 = por %p215, %p216
      %s219 = sadd.s32 %s218, 1
      %p222 = scmp.eq.s32.totalorder %s30, 3
      %p223 = scmp.ne.s32.totalorder %s218, %s220
      %p224 = scmp.eq.s32.totalorder %s30, 0
      %p225 = por %p223, %p224
      %p226 = scmp.ne.s32.totalorder %s218, %s220
      %p227 = scmp.eq.s32.totalorder %s35, 3
      %p228 = por %p226, %p227
      %p229 = scmp.ne.s32.totalorder %s220, %s221
      %p230 = scmp.eq.s32.totalorder %s35, 0
      %p231 = por %p229, %p230
      %p232 = scmp.ne.s32.totalorder %s220, %s221
      %p233 = scmp.eq.s32.totalorder %s36, 3
      %p234 = por %p232, %p233
      %p236 = scmp.ne.s32.totalorder %s221, %s235
      %p237 = scmp.eq.s32.totalorder %s36, 0
      %p238 = por %p236, %p237
      %s240 = sadd.s32 %s239, 1
      %p243 = scmp.eq.s32.totalorder %s30, 3
      %p244 = scmp.ne.s32.totalorder %s239, %s241
      %p245 = scmp.eq.s32.totalorder %s30, 0
      %p246 = por %p244, %p245
      %p247 = scmp.ne.s32.totalorder %s239, %s241
      %p248 = scmp.eq.s32.totalorder %s35, 3
      %p249 = por %p247, %p248
      %p250 = scmp.ne.s32.totalorder %s241, %s242
      %p251 = scmp.eq.s32.totalorder %s35, 0
      %p252 = por %p250, %p251
      %p253 = scmp.ne.s32.totalorder %s241, %s242
      %p254 = scmp.eq.s32.totalorder %s36, 3
      %p255 = por %p253, %p254
      %p257 = scmp.ne.s32.totalorder %s242, %s256
      %p258 = scmp.eq.s32.totalorder %s36, 0
      %p259 = por %p257, %p258
      %s260 = ssub.s32 %s37, %s49
      %s261 = ssub.s32 %s38, %s45
      %s262 = sor.u32 %s260, %s261
      %p263 = scmp.eq.s32.totalorder %s262, 0
      %s265 = sadd.s32 %s264, 1
      %s266 = scalar_select %p263, %s264, %s265
      %p269 = pneg %p263
      %p270 = scmp.eq.s32.totalorder %s30, 3
      %p271 = por %p269, %p270
      %p272 = scmp.ne.s32.totalorder %s264, %s267
      %p273 = scmp.eq.s32.totalorder %s30, 0
      %p274 = por %p272, %p273
      %p275 = scmp.ne.s32.totalorder %s264, %s267
      %p276 = scmp.eq.s32.totalorder %s35, 3
      %p277 = por %p275, %p276
      %p278 = scmp.ne.s32.totalorder %s267, %s268
      %p279 = scmp.eq.s32.totalorder %s35, 0
      %p280 = por %p278, %p279
      %p281 = scmp.ne.s32.totalorder %s267, %s268
      %p282 = scmp.eq.s32.totalorder %s36, 3
      %p283 = por %p281, %p282
      %p285 = scmp.ne.s32.totalorder %s268, %s284
      %p286 = scmp.eq.s32.totalorder %s36, 0
      %p287 = por %p285, %p286
      %s288 = ssub.s32 %s37, %s49
      %s289 = ssub.s32 %s38, %s45
      %s290 = sor.u32 %s288, %s289
      %p291 = scmp.eq.s32.totalorder %s290, 0
      %s293 = sadd.s32 %s292, 1
      %s294 = scalar_select %p291, %s292, %s293
      %p297 = pneg %p291
      %p298 = scmp.eq.s32.totalorder %s30, 3
      %p299 = por %p297, %p298
      %p300 = scmp.ne.s32.totalorder %s292, %s295
      %p301 = scmp.eq.s32.totalorder %s30, 0
      %p302 = por %p300, %p301
      %p303 = scmp.ne.s32.totalorder %s292, %s295
      %p304 = scmp.eq.s32.totalorder %s35, 3
      %p305 = por %p303, %p304
      %p306 = scmp.ne.s32.totalorder %s295, %s296
      %p307 = scmp.eq.s32.totalorder %s35, 0
      %p308 = por %p306, %p307
      %p309 = scmp.ne.s32.totalorder %s295, %s296
      %p310 = scmp.eq.s32.totalorder %s36, 3
      %p311 = por %p309, %p310
      %p313 = scmp.ne.s32.totalorder %s296, %s312
      %p314 = scmp.eq.s32.totalorder %s36, 0
      %p315 = por %p313, %p314
      %p316 = scmp.le.s32.totalorder 1, %s30
      %p317 = scmp.lt.s32.totalorder %s30, 5
      %p318 = pnand %p316, %p317
      %p319 = pneg %p318
      // Predicated region
      $region9: #{tpu_custom_call.1} parent=5 // pred_check
        _
      $region10: #{tpu_custom_call.1} parent=5 // pred_check_branch
        %321 = sbr.rel (%p318) target = $region12
      $region11: #{tpu_custom_call.1} parent=5 // pred_region
        %s322 = ssub.s32 %s30, 1
        // Predicated region
        $region13: #{tpu_custom_call.1} parent=11 // pred_check
          %p323 = pneg %p147
        $region14: #{tpu_custom_call.1} parent=11 // pred_check_branch
          %325 = sbr.rel (%p323) target = $region16
        $region15: #{tpu_custom_call.1} parent=11 // pred_region
          %s327 = ssub.s32 9216, 9216
          %328 = vsyncadd [#allocation9], %s327
          %s329 = sshll.u32 [#allocation8], 4
          %s330 = int_to_ptr.vmem [resolvable:$true] %s329
          %335 = dma.hbm_to_vmem [thread:$0]  %s3, 9216, %s330, [#allocation9], 64, 64, 4
        $region16: #{tpu_custom_call.1} parent=11 // pred_fallthru
          _
        // Predicated region
        $region17: #{tpu_custom_call.1} parent=11 // pred_check
          %p336 = pneg %p168
        $region18: #{tpu_custom_call.1} parent=11 // pred_check_branch
          %338 = sbr.rel (%p336) target = $region20
        $region19: #{tpu_custom_call.1} parent=11 // pred_region
          _
        $region20: #{tpu_custom_call.1} parent=11 // pred_fallthru
          _
        // Predicated region
        $region21: #{tpu_custom_call.1} parent=11 // pred_check
          %p339 = pneg %p189
        $region22: #{tpu_custom_call.1} parent=11 // pred_check_branch
          %341 = sbr.rel (%p339) target = $region24
        $region23: #{tpu_custom_call.1} parent=11 // pred_region
          _
        $region24: #{tpu_custom_call.1} parent=11 // pred_fallthru
          _
        // Predicated region
        $region25: #{tpu_custom_call.1} parent=11 // pred_check
          %p342 = pneg %p210
        $region26: #{tpu_custom_call.1} parent=11 // pred_check_branch
          %344 = sbr.rel (%p342) target = $region28
        $region27: #{tpu_custom_call.1} parent=11 // pred_region
          %s346 = ssub.s32 1024, 1024
          %347 = vsyncadd [#allocation9], %s346
          %s348 = sshll.u32 [#allocation10], 4
          %s349 = int_to_ptr.vmem [resolvable:$true] %s348
          %354 = dma.hbm_to_vmem [thread:$0]  %s6, 1024, %s349, [#allocation9], 64, 64, 4
        $region28: #{tpu_custom_call.1} parent=11 // pred_fallthru
          _
        // Predicated region
        $region29: #{tpu_custom_call.1} parent=11 // pred_check
          %p355 = pneg %p231
        $region30: #{tpu_custom_call.1} parent=11 // pred_check_branch
          %357 = sbr.rel (%p355) target = $region32
        $region31: #{tpu_custom_call.1} parent=11 // pred_region
          _
        $region32: #{tpu_custom_call.1} parent=11 // pred_fallthru
          _
        // Predicated region
        $region33: #{tpu_custom_call.1} parent=11 // pred_check
          %p358 = pneg %p252
        $region34: #{tpu_custom_call.1} parent=11 // pred_check_branch
          %360 = sbr.rel (%p358) target = $region36
        $region35: #{tpu_custom_call.1} parent=11 // pred_region
          _
        $region36: #{tpu_custom_call.1} parent=11 // pred_fallthru
          _
      $region12: #{tpu_custom_call.1} parent=5 // pred_fallthru
        _
      %p361 = scmp.lt.s32.totalorder %s30, 4
      // Predicated region
      $region37: #{tpu_custom_call.1} parent=5 // pred_check
        %p362 = pneg %p361
      $region38: #{tpu_custom_call.1} parent=5 // pred_check_branch
        %364 = sbr.rel (%p362) target = $region40
      $region39: #{tpu_custom_call.1} parent=5 // pred_region
        // Predicated region
        $region41: #{tpu_custom_call.1} parent=39 // pred_check
          %p365 = pneg %p64
        $region42: #{tpu_custom_call.1} parent=39 // pred_check_branch
          %367 = sbr.rel (%p365) target = $region44
        $region43: #{tpu_custom_call.1} parent=39 // pred_region
          %s368 = sand.u32 %s54, 1
          %s369 = scalar_lea.sflag [#allocation3], %s368
          %s370 = sand.u32 %s54, 1
          %s371 = smul.addr %s370, 64
          %s372 = scalar_lea.vmem [#allocation2], %s371
          %s373 = smul.u32 8, %s38
          %s375 = ssub.s32 1024, 1024
          %376 = vsyncadd %s369, %s375
          %s377 = smul.addr %s373, 2
          %s378 = smul.addr %s37, 32
          %s379 = sadd.s32 %s377, %s378
          %s380 = smul.addr %s379, 64
          %s381 = scalar_lea.hbm %s0, %s380
          %s382 = sshll.u32 %s372, 4
          %s383 = int_to_ptr.vmem [resolvable:$true] %s382
          %388 = dma.hbm_to_vmem [thread:$0]  %s381, 1024, %s383, %s369, 64, 64, 4
        $region44: #{tpu_custom_call.1} parent=39 // pred_fallthru
          _
        // Predicated region
        $region45: #{tpu_custom_call.1} parent=39 // pred_check
          %p389 = pneg %p92
        $region46: #{tpu_custom_call.1} parent=39 // pred_check_branch
          %391 = sbr.rel (%p389) target = $region48
        $region47: #{tpu_custom_call.1} parent=39 // pred_region
          %s392 = sand.u32 %s30, 1
          %s393 = scalar_lea.sflag [#allocation6], %s392
          %s394 = sand.u32 %s82, 1
          %s395 = smul.addr %s394, 8
          %s396 = scalar_lea.vmem [#allocation5], %s395
          %s398 = ssub.s32 128, 128
          %399 = vsyncadd %s393, %s398
          %s400 = smul.addr %s38, 2
          %s401 = smul.addr %s37, 4
          %s402 = sadd.s32 %s400, %s401
          %s403 = smul.addr %s402, 64
          %s404 = scalar_lea.hbm %s1, %s403
          %s405 = sshll.u32 %s396, 4
          %s406 = int_to_ptr.vmem [resolvable:$true] %s405
          %411 = dma.hbm_to_vmem [thread:$0]  %s404, 128, %s406, %s393, 64, 64, 4
        $region48: #{tpu_custom_call.1} parent=39 // pred_fallthru
          _
        // Predicated region
        $region49: #{tpu_custom_call.1} parent=39 // pred_check
          %p412 = pneg %p120
        $region50: #{tpu_custom_call.1} parent=39 // pred_check_branch
          %414 = sbr.rel (%p412) target = $region52
        $region51: #{tpu_custom_call.1} parent=39 // pred_region
          %s415 = sand.u32 %s30, 1
          %s416 = scalar_lea.sflag [#allocation6], %s415
          %s417 = sand.u32 %s110, 1
          %s418 = smul.addr %s417, 8
          %s419 = scalar_lea.vmem [#allocation7], %s418
          %s421 = ssub.s32 128, 128
          %422 = vsyncadd %s416, %s421
          %s423 = smul.addr %s38, 2
          %s424 = smul.addr %s37, 4
          %s425 = sadd.s32 %s423, %s424
          %s426 = smul.addr %s425, 64
          %s427 = scalar_lea.hbm %s2, %s426
          %s428 = sshll.u32 %s419, 4
          %s429 = int_to_ptr.vmem [resolvable:$true] %s428
          %434 = dma.hbm_to_vmem [thread:$0]  %s427, 128, %s429, %s416, 64, 64, 4
        $region52: #{tpu_custom_call.1} parent=39 // pred_fallthru
          _
      $region40: #{tpu_custom_call.1} parent=5 // pred_fallthru
        _
      %p435 = scmp.le.s32.totalorder 1, %s30
      %p436 = scmp.lt.s32.totalorder %s30, 5
      %p437 = pnand %p435, %p436
      %p438 = pneg %p437
      // Predicated region
      $region53: #{tpu_custom_call.1} parent=5 // pred_check
        _
      $region54: #{tpu_custom_call.1} parent=5 // pred_check_branch
        %440 = sbr.rel (%p437) target = $region56
      $region55: #{tpu_custom_call.1} parent=5 // pred_region
        %s441 = ssub.s32 %s30, 1
        %s442 = sand.u32 %s57, 1
        %s443 = scalar_lea.sflag [#allocation3], %s442
        %s444 = sand.u32 %s57, 1
        %s445 = smul.addr %s444, 64
        %s446 = scalar_lea.vmem [#allocation2], %s445
        // Predicated region
        $region57: #{tpu_custom_call.1} parent=55 // pred_check
          %p447 = pneg %p70
        $region58: #{tpu_custom_call.1} parent=55 // pred_check_branch
          %449 = sbr.rel (%p447) target = $region60
        $region59: #{tpu_custom_call.1} parent=55 // pred_region
          %450 = dma.done %s443, 1024
        $region60: #{tpu_custom_call.1} parent=55 // pred_fallthru
          _
        %s451 = sand.u32 %s35, 1
        %s452 = scalar_lea.sflag [#allocation6], %s451
        %s453 = sand.u32 %s85, 1
        %s454 = smul.addr %s453, 8
        %s455 = scalar_lea.vmem [#allocation5], %s454
        // Predicated region
        $region61: #{tpu_custom_call.1} parent=55 // pred_check
          %p456 = pneg %p98
        $region62: #{tpu_custom_call.1} parent=55 // pred_check_branch
          %458 = sbr.rel (%p456) target = $region64
        $region63: #{tpu_custom_call.1} parent=55 // pred_region
          %459 = dma.done %s452, 128
        $region64: #{tpu_custom_call.1} parent=55 // pred_fallthru
          _
        %s460 = sand.u32 %s35, 1
        %s461 = scalar_lea.sflag [#allocation6], %s460
        %s462 = sand.u32 %s113, 1
        %s463 = smul.addr %s462, 8
        %s464 = scalar_lea.vmem [#allocation7], %s463
        // Predicated region
        $region65: #{tpu_custom_call.1} parent=55 // pred_check
          %p465 = pneg %p126
        $region66: #{tpu_custom_call.1} parent=55 // pred_check_branch
          %467 = sbr.rel (%p465) target = $region68
        $region67: #{tpu_custom_call.1} parent=55 // pred_region
          %468 = dma.done %s461, 128
        $region68: #{tpu_custom_call.1} parent=55 // pred_fallthru
          _
        // Predicated region
        $region69: #{tpu_custom_call.1} parent=55 // pred_check
          %p469 = pneg %p147
        $region70: #{tpu_custom_call.1} parent=55 // pred_check_branch
          %471 = sbr.rel (%p469) target = $region72
        $region71: #{tpu_custom_call.1} parent=55 // pred_region
          %472 = dma.done [#allocation9], 9216
        $region72: #{tpu_custom_call.1} parent=55 // pred_fallthru
          _
        // Predicated region
        $region73: #{tpu_custom_call.1} parent=55 // pred_check
          %p473 = pneg %p210
        $region74: #{tpu_custom_call.1} parent=55 // pred_check_branch
          %475 = sbr.rel (%p473) target = $region76
        $region75: #{tpu_custom_call.1} parent=55 // pred_region
          %476 = dma.done [#allocation9], 1024
        $region76: #{tpu_custom_call.1} parent=55 // pred_fallthru
          _
        %s477 = sand.u32 %s57, 1
        %s478 = scalar_lea.sflag [#allocation3], %s477
        %s479 = sand.u32 %s57, 1
        %s480 = smul.addr %s479, 64
        %s481 = scalar_lea.vmem [#allocation2], %s480
        %p482 = pneg %p70
        %p483 = pneg %p67
        %s484 = sand.u32 %s35, 1
        %s485 = scalar_lea.sflag [#allocation6], %s484
        %s486 = sand.u32 %s85, 1
        %s487 = smul.addr %s486, 8
        %s488 = scalar_lea.vmem [#allocation5], %s487
        %p489 = pneg %p98
        %p490 = pneg %p95
        %s491 = sand.u32 %s35, 1
        %s492 = scalar_lea.sflag [#allocation6], %s491
        %s493 = sand.u32 %s113, 1
        %s494 = smul.addr %s493, 8
        %s495 = scalar_lea.vmem [#allocation7], %s494
        %p496 = pneg %p126
        %p497 = pneg %p123
        %p498 = pneg %p147
        %p499 = pneg %p144
        %p500 = pneg %p168
        %p501 = pneg %p165
        %p502 = pneg %p189
        %p503 = pneg %p186
        %p504 = pneg %p210
        %p505 = pneg %p207
        %p506 = pneg %p231
        %p507 = pneg %p228
        %p508 = pneg %p252
        %p509 = pneg %p249
        %p510 = pneg %p280
        %p511 = pneg %p277
        %s512 = sand.u32 %s267, 1
        %s513 = scalar_lea.sflag [#allocation4], %s512
        %s514 = sand.u32 %s267, 1
        %s515 = smul.addr %s514, 64
        %s516 = scalar_lea.vmem [#allocation11], %s515
        %p517 = pneg %p308
        %p518 = pneg %p305
        %s519 = sand.u32 %s295, 1
        %s520 = scalar_lea.sflag [#allocation13], %s519
        %s521 = sand.u32 %s295, 1
        %s522 = smul.addr %s521, 64
        %s523 = scalar_lea.vmem [#allocation12], %s522
        %s524 = smul.u32 8, %s40
        %s525 = smul.u32 8, %s40
        %s526 = smul.u32 8, %s40
        %v528 = vld [vmem:[%s446] sm:$0xf]
        %v529 = vld [vmem:[%s446 + $0x4] sm:$0xf]
        %v530 = vld [vmem:[%s446 + $0x8] sm:$0xf]
        %v531 = vld [vmem:[%s446 + $0xc] sm:$0xf]
        %v532 = vld [vmem:[%s446 + $0x10] sm:$0xf]
        %v533 = vld [vmem:[%s446 + $0x14] sm:$0xf]
        %v534 = vld [vmem:[%s446 + $0x18] sm:$0xf]
        %v535 = vld [vmem:[%s446 + $0x1c] sm:$0xf]
        %v536 = vld [vmem:[%s446 + $0x20] sm:$0xf]
        %v537 = vld [vmem:[%s446 + $0x24] sm:$0xf]
        %v538 = vld [vmem:[%s446 + $0x28] sm:$0xf]
        %v539 = vld [vmem:[%s446 + $0x2c] sm:$0xf]
        %v540 = vld [vmem:[%s446 + $0x30] sm:$0xf]
        %v541 = vld [vmem:[%s446 + $0x34] sm:$0xf]
        %v542 = vld [vmem:[%s446 + $0x38] sm:$0xf]
        %v543 = vld [vmem:[%s446 + $0x3c] sm:$0xf]
        %v544 = vld [vmem:[%s455] sm:$0xf]
        %v545 = vld [vmem:[%s455 + $0x4] sm:$0xf]
        %v546 = vld [vmem:[%s464] sm:$0xf]
        %v547 = vld [vmem:[%s464 + $0x4] sm:$0xf]
        %v568 = vunpack.c.l.b16 %v544
        %v569 = vunpack.c.l.b16 %v545
        %v570 = vunpack.c.l.b16 %v528
        %v571 = vunpack.c.l.b16 %v529
        %v572 = vunpack.c.l.b16 %v530
        %v573 = vunpack.c.l.b16 %v531
        %v574 = vunpack.c.l.b16 %v532
        %v575 = vunpack.c.l.b16 %v533
        %v576 = vunpack.c.l.b16 %v534
        %v577 = vunpack.c.l.b16 %v535
        %v578 = vunpack.c.l.b16 %v536
        %v579 = vunpack.c.l.b16 %v537
        %v580 = vunpack.c.l.b16 %v538
        %v581 = vunpack.c.l.b16 %v539
        %v582 = vunpack.c.l.b16 %v540
        %v583 = vunpack.c.l.b16 %v541
        %v584 = vunpack.c.l.b16 %v542
        %v585 = vunpack.c.l.b16 %v543
        %v586 = vunpack.c.l.b16 %v546
        %v587 = vunpack.c.l.b16 %v547
        %v588 = vpack.c.b16 %v569, %v568
        %v589 = vpack.c.b16 %v571, %v570
        %v590 = vpack.c.b16 %v573, %v572
        %v591 = vpack.c.b16 %v575, %v574
        %v592 = vpack.c.b16 %v577, %v576
        %v593 = vpack.c.b16 %v579, %v578
        %v594 = vpack.c.b16 %v581, %v580
        %v595 = vpack.c.b16 %v583, %v582
        %v596 = vpack.c.b16 %v585, %v584
        %v597 = vpack.c.b16 %v587, %v586
        %v599 = vshrl.u32 %v588, 16
        %v601 = vrot.slane %v599, 7
        %v602 = vshll.u32 %v588, 16
        %v604 = vor.u32 %v601, %v602
        %v606 = vshrl.u32 %v589, 16
        %v608 = vrot.slane %v606, 7
        %v609 = vshll.u32 %v589, 16
        %v611 = vor.u32 %v608, %v609
        %v613 = vshrl.u32 %v590, 16
        %v615 = vrot.slane %v613, 7
        %v616 = vshll.u32 %v590, 16
        %v618 = vor.u32 %v615, %v616
        %v620 = vshrl.u32 %v591, 16
        %v622 = vrot.slane %v620, 7
        %v623 = vshll.u32 %v591, 16
        %v625 = vor.u32 %v622, %v623
        %v627 = vshrl.u32 %v592, 16
        %v629 = vrot.slane %v627, 7
        %v630 = vshll.u32 %v592, 16
        %v632 = vor.u32 %v629, %v630
        %v634 = vshrl.u32 %v593, 16
        %v636 = vrot.slane %v634, 7
        %v637 = vshll.u32 %v593, 16
        %v639 = vor.u32 %v636, %v637
        %v641 = vshrl.u32 %v594, 16
        %v643 = vrot.slane %v641, 7
        %v644 = vshll.u32 %v594, 16
        %v646 = vor.u32 %v643, %v644
        %v648 = vshrl.u32 %v595, 16
        %v650 = vrot.slane %v648, 7
        %v651 = vshll.u32 %v595, 16
        %v653 = vor.u32 %v650, %v651
        %v655 = vshrl.u32 %v596, 16
        %v657 = vrot.slane %v655, 7
        %v658 = vshll.u32 %v596, 16
        %v660 = vor.u32 %v657, %v658
        %v662 = vshrl.u32 %v597, 16
        %v664 = vrot.slane %v662, 7
        %v665 = vshll.u32 %v597, 16
        %v667 = vor.u32 %v664, %v665
        %vm688 = vcmask 1040384
        %vm689 = vsmask.f32 256
        %vm690 = vmand %vm688, %vm689
        %v691 = vsel %vm690, 0, %v604
        %v692 = vsel %vm690, 0, %v611
        %v693 = vsel %vm690, 0, %v618
        %v694 = vsel %vm690, 0, %v625
        %v695 = vsel %vm690, 0, %v632
        %v696 = vsel %vm690, 0, %v639
        %v697 = vsel %vm690, 0, %v646
        %v698 = vsel %vm690, 0, %v653
        %v699 = vsel %vm690, 0, %v660
        %v700 = vsel %vm690, 0, %v667
        %v701 = vsel %vm690, %v601, 0
        %v702 = vsel %vm690, %v608, 0
        %v703 = vsel %vm690, %v615, 0
        %v704 = vsel %vm690, %v622, 0
        %v705 = vsel %vm690, %v629, 0
        %v706 = vsel %vm690, %v636, 0
        %v707 = vsel %vm690, %v643, 0
        %v708 = vsel %vm690, %v650, 0
        %v709 = vsel %vm690, %v657, 0
        %v710 = vsel %vm690, %v664, 0
        %v711 = vld [vmem:[#allocation8] sm:$0xf]
        %v712 = vld [vmem:[#allocation8 + $0x4] sm:$0xf]
        %v713 = vld [vmem:[#allocation8 + $0x8] sm:$0xf]
        %v714 = vld [vmem:[#allocation8 + $0xc] sm:$0xf]
        %v715 = vld [vmem:[#allocation8 + $0x10] sm:$0xf]
        %v716 = vld [vmem:[#allocation8 + $0x14] sm:$0xf]
        %v717 = vld [vmem:[#allocation8 + $0x18] sm:$0xf]
        %v718 = vld [vmem:[#allocation8 + $0x1c] sm:$0xf]
        %v719 = vld [vmem:[#allocation8 + $0x20] sm:$0xf]
        %v720 = vld [vmem:[#allocation8 + $0x24] sm:$0xf]
        %v721 = vld [vmem:[#allocation8 + $0x28] sm:$0xf]
        %v722 = vld [vmem:[#allocation8 + $0x2c] sm:$0xf]
        %v723 = vld [vmem:[#allocation8 + $0x30] sm:$0xf]
        %v724 = vld [vmem:[#allocation8 + $0x34] sm:$0xf]
        %v725 = vld [vmem:[#allocation8 + $0x38] sm:$0xf]
        %v726 = vld [vmem:[#allocation8 + $0x3c] sm:$0xf]
        %vm727 = vsmask.f32 7424
        %v729 = vshrl.u32 %v691, 16
        %v731 = vshll.u32 %v691, 16
        %v733 = vrot.slane %v731, 1
        %v734 = vor.u32 %v729, %v733
        %v736 = vshll.u32 %v701, 16
        %v738 = vrot.slane %v736, 1
        %v739 = vsel %vm727, %v734, %v738
        %v741 = vshrl.u32 %v692, 16
        %v743 = vshll.u32 %v692, 16
        %v745 = vrot.slane %v743, 1
        %v746 = vor.u32 %v741, %v745
        %v748 = vshll.u32 %v702, 16
        %v750 = vrot.slane %v748, 1
        %v751 = vsel %vm727, %v746, %v750
        %v753 = vshrl.u32 %v693, 16
        %v755 = vshll.u32 %v693, 16
        %v757 = vrot.slane %v755, 1
        %v758 = vor.u32 %v753, %v757
        %v760 = vshll.u32 %v703, 16
        %v762 = vrot.slane %v760, 1
        %v763 = vsel %vm727, %v758, %v762
        %v765 = vshrl.u32 %v694, 16
        %v767 = vshll.u32 %v694, 16
        %v769 = vrot.slane %v767, 1
        %v770 = vor.u32 %v765, %v769
        %v772 = vshll.u32 %v704, 16
        %v774 = vrot.slane %v772, 1
        %v775 = vsel %vm727, %v770, %v774
        %v777 = vshrl.u32 %v695, 16
        %v779 = vshll.u32 %v695, 16
        %v781 = vrot.slane %v779, 1
        %v782 = vor.u32 %v777, %v781
        %v784 = vshll.u32 %v705, 16
        %v786 = vrot.slane %v784, 1
        %v787 = vsel %vm727, %v782, %v786
        %v789 = vshrl.u32 %v696, 16
        %v791 = vshll.u32 %v696, 16
        %v793 = vrot.slane %v791, 1
        %v794 = vor.u32 %v789, %v793
        %v796 = vshll.u32 %v706, 16
        %v798 = vrot.slane %v796, 1
        %v799 = vsel %vm727, %v794, %v798
        %v801 = vshrl.u32 %v697, 16
        %v803 = vshll.u32 %v697, 16
        %v805 = vrot.slane %v803, 1
        %v806 = vor.u32 %v801, %v805
        %v808 = vshll.u32 %v707, 16
        %v810 = vrot.slane %v808, 1
        %v811 = vsel %vm727, %v806, %v810
        %v813 = vshrl.u32 %v698, 16
        %v815 = vshll.u32 %v698, 16
        %v817 = vrot.slane %v815, 1
        %v818 = vor.u32 %v813, %v817
        %v820 = vshll.u32 %v708, 16
        %v822 = vrot.slane %v820, 1
        %v823 = vsel %vm727, %v818, %v822
        %s832 = scalar_lea.vmem [#allocation8], 64
        %v833 = vld [vmem:[%s832] sm:$0xf]
        %v834 = vld [vmem:[%s832 + $0x4] sm:$0xf]
        %v835 = vld [vmem:[%s832 + $0x8] sm:$0xf]
        %v836 = vld [vmem:[%s832 + $0xc] sm:$0xf]
        %v837 = vld [vmem:[%s832 + $0x10] sm:$0xf]
        %v838 = vld [vmem:[%s832 + $0x14] sm:$0xf]
        %v839 = vld [vmem:[%s832 + $0x18] sm:$0xf]
        %v840 = vld [vmem:[%s832 + $0x1c] sm:$0xf]
        %v841 = vld [vmem:[%s832 + $0x20] sm:$0xf]
        %v842 = vld [vmem:[%s832 + $0x24] sm:$0xf]
        %v843 = vld [vmem:[%s832 + $0x28] sm:$0xf]
        %v844 = vld [vmem:[%s832 + $0x2c] sm:$0xf]
        %v845 = vld [vmem:[%s832 + $0x30] sm:$0xf]
        %v846 = vld [vmem:[%s832 + $0x34] sm:$0xf]
        %v847 = vld [vmem:[%s832 + $0x38] sm:$0xf]
        %v848 = vld [vmem:[%s832 + $0x3c] sm:$0xf]
        %v865 = vunpack.c.l.b16 %v833
        %v866 = vunpack.c.l.b16 %v834
        %v867 = vunpack.c.l.b16 %v835
        %v868 = vunpack.c.l.b16 %v836
        %v869 = vunpack.c.l.b16 %v837
        %v870 = vunpack.c.l.b16 %v838
        %v871 = vunpack.c.l.b16 %v839
        %v872 = vunpack.c.l.b16 %v840
        %v873 = vunpack.c.l.b16 %v841
        %v874 = vunpack.c.l.b16 %v842
        %v875 = vunpack.c.l.b16 %v843
        %v876 = vunpack.c.l.b16 %v844
        %v877 = vunpack.c.l.b16 %v845
        %v878 = vunpack.c.l.b16 %v846
        %v879 = vunpack.c.l.b16 %v847
        %v880 = vunpack.c.l.b16 %v848
        %v881 = vpack.c.b16 %v866, %v865
        %v882 = vpack.c.b16 %v868, %v867
        %v883 = vpack.c.b16 %v870, %v869
        %v884 = vpack.c.b16 %v872, %v871
        %v885 = vpack.c.b16 %v874, %v873
        %v886 = vpack.c.b16 %v876, %v875
        %v887 = vpack.c.b16 %v878, %v877
        %v888 = vpack.c.b16 %v880, %v879
        %897 = vmatprep.subr.bf16.mxu0 0
        %898 = vmatpush1.bf16.msra.mxu0 %v881
        %899 = vmatprep.subr.bf16.mxu0 0
        %900 = vmatpush1.bf16.msra.mxu0 %v882
        %901 = vmatprep.subr.bf16.mxu0 0
        %902 = vmatpush1.bf16.msra.mxu0 %v883
        %903 = vmatprep.subr.bf16.mxu0 0
        %904 = vmatpush1.bf16.msra.mxu0 %v884
        %905 = vmatprep.subr.bf16.mxu0 0
        %906 = vmatpush1.bf16.msra.mxu0 %v885
        %907 = vmatprep.subr.bf16.mxu0 0
        %908 = vmatpush1.bf16.msra.mxu0 %v886
        %909 = vmatprep.subr.bf16.mxu0 0
        %910 = vmatpush1.bf16.msra.mxu0 %v887
        %911 = vmatprep.subr.bf16.mxu0 0
        %912 = vmatpush1.bf16.msra.mxu0 %v888
        %913 = vmatprep.subr.bf16.mxu0 0
        %914 = vmatpush1.bf16.msra.mxu0 0
        %915 = vmatprep.subr.bf16.mxu0 0
        %916 = vmatpush1.bf16.msra.mxu0 0
        %917 = vmatprep.subr.bf16.mxu0 0
        %918 = vmatpush1.bf16.msra.mxu0 0
        %919 = vmatprep.subr.bf16.mxu0 0
        %920 = vmatpush1.bf16.msra.mxu0 0
        %921 = vmatprep.subr.bf16.mxu0 0
        %922 = vmatpush1.bf16.msra.mxu0 0
        %923 = vmatprep.subr.bf16.mxu0 0
        %924 = vmatpush1.bf16.msra.mxu0 0
        %925 = vmatprep.subr.bf16.mxu0 0
        %926 = vmatpush1.bf16.msra.mxu0 0
        %927 = vmatprep.subr.bf16.mxu0 0
        %928 = vmatpush1.bf16.msra.mxu0 0
        %929 = vmatprep.mubr.bf16.mxu0 0
        %930 = vmatmul.mubr.bf16.gmra.mrb[0].mxu0 %v739
        %v931 = vpop.f32.mrb[0].mxu0
        %v932 = vadd.f32 0.0, %v931
        %v933 = vpop.f32.mrb[0].mxu0
        %v934 = vpop.f32.mrb[0].mxu0
        %v935 = vadd.f32 0.0, %v934
        %v936 = vpop.f32.mrb[0].mxu0
        %937 = vmatprep.mubr.bf16.mxu0 0
        %938 = vmatmul.mubr.bf16.gmra.mrb[0].mxu0 %v751
        %v939 = vpop.f32.mrb[0].mxu0
        %v940 = vadd.f32 0.0, %v939
        %v941 = vpop.f32.mrb[0].mxu0
        %v942 = vpop.f32.mrb[0].mxu0
        %v943 = vadd.f32 0.0, %v942
        %v944 = vpop.f32.mrb[0].mxu0
        %945 = vmatprep.mubr.bf16.mxu0 0
        %946 = vmatmul.mubr.bf16.gmra.mrb[0].mxu0 %v763
        %v947 = vpop.f32.mrb[0].mxu0
        %v948 = vadd.f32 0.0, %v947
        %v949 = vpop.f32.mrb[0].mxu0
        %v950 = vpop.f32.mrb[0].mxu0
        %v951 = vadd.f32 0.0, %v950
        %v952 = vpop.f32.mrb[0].mxu0
        %953 = vmatprep.mubr.bf16.mxu0 0
        %954 = vmatmul.mubr.bf16.gmra.mrb[0].mxu0 %v775
        %v955 = vpop.f32.mrb[0].mxu0
        %v956 = vadd.f32 0.0, %v955
        %v957 = vpop.f32.mrb[0].mxu0
        %v958 = vpop.f32.mrb[0].mxu0
        %v959 = vadd.f32 0.0, %v958
        %v960 = vpop.f32.mrb[0].mxu0
        %961 = vmatprep.mubr.bf16.mxu0 0
        %962 = vmatmul.mubr.bf16.gmra.mrb[0].mxu0 %v787
        %v963 = vpop.f32.mrb[0].mxu0
        %v964 = vadd.f32 0.0, %v963
        %v965 = vpop.f32.mrb[0].mxu0
        %v966 = vpop.f32.mrb[0].mxu0
        %v967 = vadd.f32 0.0, %v966
        %v968 = vpop.f32.mrb[0].mxu0
        %969 = vmatprep.mubr.bf16.mxu0 0
        %970 = vmatmul.mubr.bf16.gmra.mrb[0].mxu0 %v799
        %v971 = vpop.f32.mrb[0].mxu0
        %v972 = vadd.f32 0.0, %v971
        %v973 = vpop.f32.mrb[0].mxu0
        %v974 = vpop.f32.mrb[0].mxu0
        %v975 = vadd.f32 0.0, %v974
        %v976 = vpop.f32.mrb[0].mxu0
        %977 = vmatprep.mubr.bf16.mxu0 0
        %978 = vmatmul.mubr.bf16.gmra.mrb[0].mxu0 %v811
        %v979 = vpop.f32.mrb[0].mxu0
        %v980 = vadd.f32 0.0, %v979
        %v981 = vpop.f32.mrb[0].mxu0
        %v982 = vpop.f32.mrb[0].mxu0
        %v983 = vadd.f32 0.0, %v982
        %v984 = vpop.f32.mrb[0].mxu0
        %985 = vmatprep.mubr.bf16.mxu0 0
        %986 = vmatmul.mubr.bf16.gmra.mrb[0].mxu0 %v823
        %v987 = vpop.f32.mrb[0].mxu0
        %v988 = vadd.f32 0.0, %v987
        %v989 = vpop.f32.mrb[0].mxu0
        %v990 = vpop.f32.mrb[0].mxu0
        %v991 = vadd.f32 0.0, %v990
        %v992 = vpop.f32.mrb[0].mxu0
        %993 = vdwg.mxu0
        %v1010 = vunpack.c.l.b16 %v711
        %v1011 = vunpack.c.l.b16 %v712
        %v1012 = vunpack.c.l.b16 %v713
        %v1013 = vunpack.c.l.b16 %v714
        %v1014 = vunpack.c.l.b16 %v715
        %v1015 = vunpack.c.l.b16 %v716
        %v1016 = vunpack.c.l.b16 %v717
        %v1017 = vunpack.c.l.b16 %v718
        %v1018 = vunpack.c.l.b16 %v719
        %v1019 = vunpack.c.l.b16 %v720
        %v1020 = vunpack.c.l.b16 %v721
        %v1021 = vunpack.c.l.b16 %v722
        %v1022 = vunpack.c.l.b16 %v723
        %v1023 = vunpack.c.l.b16 %v724
        %v1024 = vunpack.c.l.b16 %v725
        %v1025 = vunpack.c.l.b16 %v726
        %v1026 = vpack.c.b16 %v1011, %v1010
        %v1027 = vpack.c.b16 %v1013, %v1012
        %v1028 = vpack.c.b16 %v1015, %v1014
        %v1029 = vpack.c.b16 %v1017, %v1016
        %v1030 = vpack.c.b16 %v1019, %v1018
        %v1031 = vpack.c.b16 %v1021, %v1020
        %v1032 = vpack.c.b16 %v1023, %v1022
        %v1033 = vpack.c.b16 %v1025, %v1024
        %1042 = vmatprep.subr.bf16.mxu0 0
        %1043 = vmatpush1.bf16.msra.mxu0 %v1026
        %1044 = vmatprep.subr.bf16.mxu0 0
        %1045 = vmatpush1.bf16.msra.mxu0 %v1027
        %1046 = vmatprep.subr.bf16.mxu0 0
        %1047 = vmatpush1.bf16.msra.mxu0 %v1028
        %1048 = vmatprep.subr.bf16.mxu0 0
        %1049 = vmatpush1.bf16.msra.mxu0 %v1029
        %1050 = vmatprep.subr.bf16.mxu0 0
        %1051 = vmatpush1.bf16.msra.mxu0 %v1030
        %1052 = vmatprep.subr.bf16.mxu0 0
        %1053 = vmatpush1.bf16.msra.mxu0 %v1031
        %1054 = vmatprep.subr.bf16.mxu0 0
        %1055 = vmatpush1.bf16.msra.mxu0 %v1032
        %1056 = vmatprep.subr.bf16.mxu0 0
        %1057 = vmatpush1.bf16.msra.mxu0 %v1033
        %1058 = vmatprep.subr.bf16.mxu0 0
        %1059 = vmatpush1.bf16.msra.mxu0 0
        %1060 = vmatprep.subr.bf16.mxu0 0
        %1061 = vmatpush1.bf16.msra.mxu0 0
        %1062 = vmatprep.subr.bf16.mxu0 0
        %1063 = vmatpush1.bf16.msra.mxu0 0
        %1064 = vmatprep.subr.bf16.mxu0 0
        %1065 = vmatpush1.bf16.msra.mxu0 0
        %1066 = vmatprep.subr.bf16.mxu0 0
        %1067 = vmatpush1.bf16.msra.mxu0 0
        %1068 = vmatprep.subr.bf16.mxu0 0
        %1069 = vmatpush1.bf16.msra.mxu0 0
        %1070 = vmatprep.subr.bf16.mxu0 0
        %1071 = vmatpush1.bf16.msra.mxu0 0
        %1072 = vmatprep.subr.bf16.mxu0 0
        %1073 = vmatpush1.bf16.msra.mxu0 0
        %1074 = vmatprep.mubr.bf16.mxu0 0
        %1075 = vmatmul.mubr.bf16.gmra.mrb[0].mxu0 %v691
        %v1076 = vpop.f32.mrb[0].mxu0
        %v1077 = vadd.f32 %v932, %v1076
        %v1078 = vpop.f32.mrb[0].mxu0
        %v1079 = vpop.f32.mrb[0].mxu0
        %v1080 = vadd.f32 %v935, %v1079
        %v1081 = vpop.f32.mrb[0].mxu0
        %1082 = vmatprep.mubr.bf16.mxu0 0
        %1083 = vmatmul.mubr.bf16.gmra.mrb[0].mxu0 %v692
        %v1084 = vpop.f32.mrb[0].mxu0
        %v1085 = vadd.f32 %v940, %v1084
        %v1086 = vpop.f32.mrb[0].mxu0
        %v1087 = vpop.f32.mrb[0].mxu0
        %v1088 = vadd.f32 %v943, %v1087
        %v1089 = vpop.f32.mrb[0].mxu0
        %1090 = vmatprep.mubr.bf16.mxu0 0
        %1091 = vmatmul.mubr.bf16.gmra.mrb[0].mxu0 %v693
        %v1092 = vpop.f32.mrb[0].mxu0
        %v1093 = vadd.f32 %v948, %v1092
        %v1094 = vpop.f32.mrb[0].mxu0
        %v1095 = vpop.f32.mrb[0].mxu0
        %v1096 = vadd.f32 %v951, %v1095
        %v1097 = vpop.f32.mrb[0].mxu0
        %1098 = vmatprep.mubr.bf16.mxu0 0
        %1099 = vmatmul.mubr.bf16.gmra.mrb[0].mxu0 %v694
        %v1100 = vpop.f32.mrb[0].mxu0
        %v1101 = vadd.f32 %v956, %v1100
        %v1102 = vpop.f32.mrb[0].mxu0
        %v1103 = vpop.f32.mrb[0].mxu0
        %v1104 = vadd.f32 %v959, %v1103
        %v1105 = vpop.f32.mrb[0].mxu0
        %1106 = vmatprep.mubr.bf16.mxu0 0
        %1107 = vmatmul.mubr.bf16.gmra.mrb[0].mxu0 %v695
        %v1108 = vpop.f32.mrb[0].mxu0
        %v1109 = vadd.f32 %v964, %v1108
        %v1110 = vpop.f32.mrb[0].mxu0
        %v1111 = vpop.f32.mrb[0].mxu0
        %v1112 = vadd.f32 %v967, %v1111
        %v1113 = vpop.f32.mrb[0].mxu0
        %1114 = vmatprep.mubr.bf16.mxu0 0
        %1115 = vmatmul.mubr.bf16.gmra.mrb[0].mxu0 %v696
        %v1116 = vpop.f32.mrb[0].mxu0
        %v1117 = vadd.f32 %v972, %v1116
        %v1118 = vpop.f32.mrb[0].mxu0
        %v1119 = vpop.f32.mrb[0].mxu0
        %v1120 = vadd.f32 %v975, %v1119
        %v1121 = vpop.f32.mrb[0].mxu0
        %1122 = vmatprep.mubr.bf16.mxu0 0
        %1123 = vmatmul.mubr.bf16.gmra.mrb[0].mxu0 %v697
        %v1124 = vpop.f32.mrb[0].mxu0
        %v1125 = vadd.f32 %v980, %v1124
        %v1126 = vpop.f32.mrb[0].mxu0
        %v1127 = vpop.f32.mrb[0].mxu0
        %v1128 = vadd.f32 %v983, %v1127
        %v1129 = vpop.f32.mrb[0].mxu0
        %1130 = vmatprep.mubr.bf16.mxu0 0
        %1131 = vmatmul.mubr.bf16.gmra.mrb[0].mxu0 %v698
        %v1132 = vpop.f32.mrb[0].mxu0
        %v1133 = vadd.f32 %v988, %v1132
        %v1134 = vpop.f32.mrb[0].mxu0
        %v1135 = vpop.f32.mrb[0].mxu0
        %v1136 = vadd.f32 %v991, %v1135
        %v1137 = vpop.f32.mrb[0].mxu0
        %1138 = vdwg.mxu0
        %vm1155 = vcmask 1046528
        %v1156 = vrot.slane %v691, 1
        %v1157 = vrot.slane %v701, 1
        %v1158 = vsel %vm1155, %v1156, %v1157
        %v1159 = vrot.slane %v692, 1
        %v1160 = vrot.slane %v702, 1
        %v1161 = vsel %vm1155, %v1159, %v1160
        %v1162 = vrot.slane %v693, 1
        %v1163 = vrot.slane %v703, 1
        %v1164 = vsel %vm1155, %v1162, %v1163
        %v1165 = vrot.slane %v694, 1
        %v1166 = vrot.slane %v704, 1
        %v1167 = vsel %vm1155, %v1165, %v1166
        %v1168 = vrot.slane %v695, 1
        %v1169 = vrot.slane %v705, 1
        %v1170 = vsel %vm1155, %v1168, %v1169
        %v1171 = vrot.slane %v696, 1
        %v1172 = vrot.slane %v706, 1
        %v1173 = vsel %vm1155, %v1171, %v1172
        %v1174 = vrot.slane %v697, 1
        %v1175 = vrot.slane %v707, 1
        %v1176 = vsel %vm1155, %v1174, %v1175
        %v1177 = vrot.slane %v698, 1
        %v1178 = vrot.slane %v708, 1
        %v1179 = vsel %vm1155, %v1177, %v1178
        %s1188 = scalar_lea.vmem [#allocation8], 128
        %v1189 = vld [vmem:[%s1188] sm:$0xf]
        %v1190 = vld [vmem:[%s1188 + $0x4] sm:$0xf]
        %v1191 = vld [vmem:[%s1188 + $0x8] sm:$0xf]
        %v1192 = vld [vmem:[%s1188 + $0xc] sm:$0xf]
        %v1193 = vld [vmem:[%s1188 + $0x10] sm:$0xf]
        %v1194 = vld [vmem:[%s1188 + $0x14] sm:$0xf]
        %v1195 = vld [vmem:[%s1188 + $0x18] sm:$0xf]
        %v1196 = vld [vmem:[%s1188 + $0x1c] sm:$0xf]
        %v1197 = vld [vmem:[%s1188 + $0x20] sm:$0xf]
        %v1198 = vld [vmem:[%s1188 + $0x24] sm:$0xf]
        %v1199 = vld [vmem:[%s1188 + $0x28] sm:$0xf]
        %v1200 = vld [vmem:[%s1188 + $0x2c] sm:$0xf]
        %v1201 = vld [vmem:[%s1188 + $0x30] sm:$0xf]
        %v1202 = vld [vmem:[%s1188 + $0x34] sm:$0xf]
        %v1203 = vld [vmem:[%s1188 + $0x38] sm:$0xf]
        %v1204 = vld [vmem:[%s1188 + $0x3c] sm:$0xf]
        %v1221 = vunpack.c.l.b16 %v1189
        %v1222 = vunpack.c.l.b16 %v1190
        %v1223 = vunpack.c.l.b16 %v1191
        %v1224 = vunpack.c.l.b16 %v1192
        %v1225 = vunpack.c.l.b16 %v1193
        %v1226 = vunpack.c.l.b16 %v1194
        %v1227 = vunpack.c.l.b16 %v1195
        %v1228 = vunpack.c.l.b16 %v1196
        %v1229 = vunpack.c.l.b16 %v1197
        %v1230 = vunpack.c.l.b16 %v1198
        %v1231 = vunpack.c.l.b16 %v1199
        %v1232 = vunpack.c.l.b16 %v1200
        %v1233 = vunpack.c.l.b16 %v1201
        %v1234 = vunpack.c.l.b16 %v1202
        %v1235 = vunpack.c.l.b16 %v1203
        %v1236 = vunpack.c.l.b16 %v1204
        %v1237 = vpack.c.b16 %v1222, %v1221
        %v1238 = vpack.c.b16 %v1224, %v1223
        %v1239 = vpack.c.b16 %v1226, %v1225
        %v1240 = vpack.c.b16 %v1228, %v1227
        %v1241 = vpack.c.b16 %v1230, %v1229
        %v1242 = vpack.c.b16 %v1232, %v1231
        %v1243 = vpack.c.b16 %v1234, %v1233
        %v1244 = vpack.c.b16 %v1236, %v1235
        %1253 = vmatprep.subr.bf16.mxu0 0
        %1254 = vmatpush1.bf16.msra.mxu0 %v1237
        %1255 = vmatprep.subr.bf16.mxu0 0
        %1256 = vmatpush1.bf16.msra.mxu0 %v1238
        %1257 = vmatprep.subr.bf16.mxu0 0
        %1258 = vmatpush1.bf16.msra.mxu0 %v1239
        %1259 = vmatprep.subr.bf16.mxu0 0
        %1260 = vmatpush1.bf16.msra.mxu0 %v1240
        %1261 = vmatprep.subr.bf16.mxu0 0
        %1262 = vmatpush1.bf16.msra.mxu0 %v1241
        %1263 = vmatprep.subr.bf16.mxu0 0
        %1264 = vmatpush1.bf16.msra.mxu0 %v1242
        %1265 = vmatprep.subr.bf16.mxu0 0
        %1266 = vmatpush1.bf16.msra.mxu0 %v1243
        %1267 = vmatprep.subr.bf16.mxu0 0
        %1268 = vmatpush1.bf16.msra.mxu0 %v1244
        %1269 = vmatprep.subr.bf16.mxu0 0
        %1270 = vmatpush1.bf16.msra.mxu0 0
        %1271 = vmatprep.subr.bf16.mxu0 0
        %1272 = vmatpush1.bf16.msra.mxu0 0
        %1273 = vmatprep.subr.bf16.mxu0 0
        %1274 = vmatpush1.bf16.msra.mxu0 0
        %1275 = vmatprep.subr.bf16.mxu0 0
        %1276 = vmatpush1.bf16.msra.mxu0 0
        %1277 = vmatprep.subr.bf16.mxu0 0
        %1278 = vmatpush1.bf16.msra.mxu0 0
        %1279 = vmatprep.subr.bf16.mxu0 0
        %1280 = vmatpush1.bf16.msra.mxu0 0
        %1281 = vmatprep.subr.bf16.mxu0 0
        %1282 = vmatpush1.bf16.msra.mxu0 0
        %1283 = vmatprep.subr.bf16.mxu0 0
        %1284 = vmatpush1.bf16.msra.mxu0 0
        %1285 = vmatprep.mubr.bf16.mxu0 0
        %1286 = vmatmul.mubr.bf16.gmra.mrb[0].mxu0 %v1158
        %v1287 = vpop.f32.mrb[0].mxu0
        %v1288 = vadd.f32 0.0, %v1287
        %v1289 = vpop.f32.mrb[0].mxu0
        %v1290 = vpop.f32.mrb[0].mxu0
        %v1291 = vadd.f32 0.0, %v1290
        %v1292 = vpop.f32.mrb[0].mxu0
        %1293 = vmatprep.mubr.bf16.mxu0 0
        %1294 = vmatmul.mubr.bf16.gmra.mrb[0].mxu0 %v1161
        %v1295 = vpop.f32.mrb[0].mxu0
        %v1296 = vadd.f32 0.0, %v1295
        %v1297 = vpop.f32.mrb[0].mxu0
        %v1298 = vpop.f32.mrb[0].mxu0
        %v1299 = vadd.f32 0.0, %v1298
        %v1300 = vpop.f32.mrb[0].mxu0
        %1301 = vmatprep.mubr.bf16.mxu0 0
        %1302 = vmatmul.mubr.bf16.gmra.mrb[0].mxu0 %v1164
        %v1303 = vpop.f32.mrb[0].mxu0
        %v1304 = vadd.f32 0.0, %v1303
        %v1305 = vpop.f32.mrb[0].mxu0
        %v1306 = vpop.f32.mrb[0].mxu0
        %v1307 = vadd.f32 0.0, %v1306
        %v1308 = vpop.f32.mrb[0].mxu0
        %1309 = vmatprep.mubr.bf16.mxu0 0
        %1310 = vmatmul.mubr.bf16.gmra.mrb[0].mxu0 %v1167
        %v1311 = vpop.f32.mrb[0].mxu0
        %v1312 = vadd.f32 0.0, %v1311
        %v1313 = vpop.f32.mrb[0].mxu0
        %v1314 = vpop.f32.mrb[0].mxu0
        %v1315 = vadd.f32 0.0, %v1314
        %v1316 = vpop.f32.mrb[0].mxu0
        %1317 = vmatprep.mubr.bf16.mxu0 0
        %1318 = vmatmul.mubr.bf16.gmra.mrb[0].mxu0 %v1170
        %v1319 = vpop.f32.mrb[0].mxu0
        %v1320 = vadd.f32 0.0, %v1319
        %v1321 = vpop.f32.mrb[0].mxu0
        %v1322 = vpop.f32.mrb[0].mxu0
        %v1323 = vadd.f32 0.0, %v1322
        %v1324 = vpop.f32.mrb[0].mxu0
        %1325 = vmatprep.mubr.bf16.mxu0 0
        %1326 = vmatmul.mubr.bf16.gmra.mrb[0].mxu0 %v1173
        %v1327 = vpop.f32.mrb[0].mxu0
        %v1328 = vadd.f32 0.0, %v1327
        %v1329 = vpop.f32.mrb[0].mxu0
        %v1330 = vpop.f32.mrb[0].mxu0
        %v1331 = vadd.f32 0.0, %v1330
        %v1332 = vpop.f32.mrb[0].mxu0
        %1333 = vmatprep.mubr.bf16.mxu0 0
        %1334 = vmatmul.mubr.bf16.gmra.mrb[0].mxu0 %v1176
        %v1335 = vpop.f32.mrb[0].mxu0
        %v1336 = vadd.f32 0.0, %v1335
        %v1337 = vpop.f32.mrb[0].mxu0
        %v1338 = vpop.f32.mrb[0].mxu0
        %v1339 = vadd.f32 0.0, %v1338
        %v1340 = vpop.f32.mrb[0].mxu0
        %1341 = vmatprep.mubr.bf16.mxu0 0
        %1342 = vmatmul.mubr.bf16.gmra.mrb[0].mxu0 %v1179
        %v1343 = vpop.f32.mrb[0].mxu0
        %v1344 = vadd.f32 0.0, %v1343
        %v1345 = vpop.f32.mrb[0].mxu0
        %v1346 = vpop.f32.mrb[0].mxu0
        %v1347 = vadd.f32 0.0, %v1346
        %v1348 = vpop.f32.mrb[0].mxu0
        %1349 = vdwg.mxu0
        %v1350 = vadd.f32 %v1077, %v1288
        %v1351 = vadd.f32 %v1080, %v1291
        %v1352 = vadd.f32 %v1085, %v1296
        %v1353 = vadd.f32 %v1088, %v1299
        %v1354 = vadd.f32 %v1093, %v1304
        %v1355 = vadd.f32 %v1096, %v1307
        %v1356 = vadd.f32 %v1101, %v1312
        %v1357 = vadd.f32 %v1104, %v1315
        %v1358 = vadd.f32 %v1109, %v1320
        %v1359 = vadd.f32 %v1112, %v1323
        %v1360 = vadd.f32 %v1117, %v1328
        %v1361 = vadd.f32 %v1120, %v1331
        %v1362 = vadd.f32 %v1125, %v1336
        %v1363 = vadd.f32 %v1128, %v1339
        %v1364 = vadd.f32 %v1133, %v1344
        %v1365 = vadd.f32 %v1136, %v1347
        %s1366 = scalar_lea.vmem [#allocation8], 192
        %v1367 = vld [vmem:[%s1366] sm:$0xf]
        %v1368 = vld [vmem:[%s1366 + $0x4] sm:$0xf]
        %v1369 = vld [vmem:[%s1366 + $0x8] sm:$0xf]
        %v1370 = vld [vmem:[%s1366 + $0xc] sm:$0xf]
        %v1371 = vld [vmem:[%s1366 + $0x10] sm:$0xf]
        %v1372 = vld [vmem:[%s1366 + $0x14] sm:$0xf]
        %v1373 = vld [vmem:[%s1366 + $0x18] sm:$0xf]
        %v1374 = vld [vmem:[%s1366 + $0x1c] sm:$0xf]
        %v1375 = vld [vmem:[%s1366 + $0x20] sm:$0xf]
        %v1376 = vld [vmem:[%s1366 + $0x24] sm:$0xf]
        %v1377 = vld [vmem:[%s1366 + $0x28] sm:$0xf]
        %v1378 = vld [vmem:[%s1366 + $0x2c] sm:$0xf]
        %v1379 = vld [vmem:[%s1366 + $0x30] sm:$0xf]
        %v1380 = vld [vmem:[%s1366 + $0x34] sm:$0xf]
        %v1381 = vld [vmem:[%s1366 + $0x38] sm:$0xf]
        %v1382 = vld [vmem:[%s1366 + $0x3c] sm:$0xf]
        %v1399 = vunpack.c.l.b16 %v1367
        %v1400 = vunpack.c.l.b16 %v1368
        %v1401 = vunpack.c.l.b16 %v1369
        %v1402 = vunpack.c.l.b16 %v1370
        %v1403 = vunpack.c.l.b16 %v1371
        %v1404 = vunpack.c.l.b16 %v1372
        %v1405 = vunpack.c.l.b16 %v1373
        %v1406 = vunpack.c.l.b16 %v1374
        %v1407 = vunpack.c.l.b16 %v1375
        %v1408 = vunpack.c.l.b16 %v1376
        %v1409 = vunpack.c.l.b16 %v1377
        %v1410 = vunpack.c.l.b16 %v1378
        %v1411 = vunpack.c.l.b16 %v1379
        %v1412 = vunpack.c.l.b16 %v1380
        %v1413 = vunpack.c.l.b16 %v1381
        %v1414 = vunpack.c.l.b16 %v1382
        %v1415 = vpack.c.b16 %v1400, %v1399
        %v1416 = vpack.c.b16 %v1402, %v1401
        %v1417 = vpack.c.b16 %v1404, %v1403
        %v1418 = vpack.c.b16 %v1406, %v1405
        %v1419 = vpack.c.b16 %v1408, %v1407
        %v1420 = vpack.c.b16 %v1410, %v1409
        %v1421 = vpack.c.b16 %v1412, %v1411
        %v1422 = vpack.c.b16 %v1414, %v1413
        %1431 = vmatprep.subr.bf16.mxu0 0
        %1432 = vmatpush1.bf16.msra.mxu0 %v1415
        %1433 = vmatprep.subr.bf16.mxu0 0
        %1434 = vmatpush1.bf16.msra.mxu0 %v1416
        %1435 = vmatprep.subr.bf16.mxu0 0
        %1436 = vmatpush1.bf16.msra.mxu0 %v1417
        %1437 = vmatprep.subr.bf16.mxu0 0
        %1438 = vmatpush1.bf16.msra.mxu0 %v1418
        %1439 = vmatprep.subr.bf16.mxu0 0
        %1440 = vmatpush1.bf16.msra.mxu0 %v1419
        %1441 = vmatprep.subr.bf16.mxu0 0
        %1442 = vmatpush1.bf16.msra.mxu0 %v1420
        %1443 = vmatprep.subr.bf16.mxu0 0
        %1444 = vmatpush1.bf16.msra.mxu0 %v1421
        %1445 = vmatprep.subr.bf16.mxu0 0
        %1446 = vmatpush1.bf16.msra.mxu0 %v1422
        %1447 = vmatprep.subr.bf16.mxu0 0
        %1448 = vmatpush1.bf16.msra.mxu0 0
        %1449 = vmatprep.subr.bf16.mxu0 0
        %1450 = vmatpush1.bf16.msra.mxu0 0
        %1451 = vmatprep.subr.bf16.mxu0 0
        %1452 = vmatpush1.bf16.msra.mxu0 0
        %1453 = vmatprep.subr.bf16.mxu0 0
        %1454 = vmatpush1.bf16.msra.mxu0 0
        %1455 = vmatprep.subr.bf16.mxu0 0
        %1456 = vmatpush1.bf16.msra.mxu0 0
        %1457 = vmatprep.subr.bf16.mxu0 0
        %1458 = vmatpush1.bf16.msra.mxu0 0
        %1459 = vmatprep.subr.bf16.mxu0 0
        %1460 = vmatpush1.bf16.msra.mxu0 0
        %1461 = vmatprep.subr.bf16.mxu0 0
        %1462 = vmatpush1.bf16.msra.mxu0 0
        %1463 = vmatprep.mubr.bf16.mxu0 0
        %1464 = vmatmul.mubr.bf16.gmra.mrb[0].mxu0 %v692
        %v1465 = vpop.f32.mrb[0].mxu0
        %v1466 = vadd.f32 0.0, %v1465
        %v1467 = vpop.f32.mrb[0].mxu0
        %v1468 = vpop.f32.mrb[0].mxu0
        %v1469 = vadd.f32 0.0, %v1468
        %v1470 = vpop.f32.mrb[0].mxu0
        %1471 = vmatprep.mubr.bf16.mxu0 0
        %1472 = vmatmul.mubr.bf16.gmra.mrb[0].mxu0 %v693
        %v1473 = vpop.f32.mrb[0].mxu0
        %v1474 = vadd.f32 0.0, %v1473
        %v1475 = vpop.f32.mrb[0].mxu0
        %v1476 = vpop.f32.mrb[0].mxu0
        %v1477 = vadd.f32 0.0, %v1476
        %v1478 = vpop.f32.mrb[0].mxu0
        %1479 = vmatprep.mubr.bf16.mxu0 0
        %1480 = vmatmul.mubr.bf16.gmra.mrb[0].mxu0 %v694
        %v1481 = vpop.f32.mrb[0].mxu0
        %v1482 = vadd.f32 0.0, %v1481
        %v1483 = vpop.f32.mrb[0].mxu0
        %v1484 = vpop.f32.mrb[0].mxu0
        %v1485 = vadd.f32 0.0, %v1484
        %v1486 = vpop.f32.mrb[0].mxu0
        %1487 = vmatprep.mubr.bf16.mxu0 0
        %1488 = vmatmul.mubr.bf16.gmra.mrb[0].mxu0 %v695
        %v1489 = vpop.f32.mrb[0].mxu0
        %v1490 = vadd.f32 0.0, %v1489
        %v1491 = vpop.f32.mrb[0].mxu0
        %v1492 = vpop.f32.mrb[0].mxu0
        %v1493 = vadd.f32 0.0, %v1492
        %v1494 = vpop.f32.mrb[0].mxu0
        %1495 = vmatprep.mubr.bf16.mxu0 0
        %1496 = vmatmul.mubr.bf16.gmra.mrb[0].mxu0 %v696
        %v1497 = vpop.f32.mrb[0].mxu0
        %v1498 = vadd.f32 0.0, %v1497
        %v1499 = vpop.f32.mrb[0].mxu0
        %v1500 = vpop.f32.mrb[0].mxu0
        %v1501 = vadd.f32 0.0, %v1500
        %v1502 = vpop.f32.mrb[0].mxu0
        %1503 = vmatprep.mubr.bf16.mxu0 0
        %1504 = vmatmul.mubr.bf16.gmra.mrb[0].mxu0 %v697
        %v1505 = vpop.f32.mrb[0].mxu0
        %v1506 = vadd.f32 0.0, %v1505
        %v1507 = vpop.f32.mrb[0].mxu0
        %v1508 = vpop.f32.mrb[0].mxu0
        %v1509 = vadd.f32 0.0, %v1508
        %v1510 = vpop.f32.mrb[0].mxu0
        %1511 = vmatprep.mubr.bf16.mxu0 0
        %1512 = vmatmul.mubr.bf16.gmra.mrb[0].mxu0 %v698
        %v1513 = vpop.f32.mrb[0].mxu0
        %v1514 = vadd.f32 0.0, %v1513
        %v1515 = vpop.f32.mrb[0].mxu0
        %v1516 = vpop.f32.mrb[0].mxu0
        %v1517 = vadd.f32 0.0, %v1516
        %v1518 = vpop.f32.mrb[0].mxu0
        %1519 = vmatprep.mubr.bf16.mxu0 0
        %1520 = vmatmul.mubr.bf16.gmra.mrb[0].mxu0 %v699
        %v1521 = vpop.f32.mrb[0].mxu0
        %v1522 = vadd.f32 0.0, %v1521
        %v1523 = vpop.f32.mrb[0].mxu0
        %v1524 = vpop.f32.mrb[0].mxu0
        %v1525 = vadd.f32 0.0, %v1524
        %v1526 = vpop.f32.mrb[0].mxu0
        %1527 = vdwg.mxu0
        %v1528 = vadd.f32 %v1350, %v1466
        %v1529 = vadd.f32 %v1351, %v1469
        %v1530 = vadd.f32 %v1352, %v1474
        %v1531 = vadd.f32 %v1353, %v1477
        %v1532 = vadd.f32 %v1354, %v1482
        %v1533 = vadd.f32 %v1355, %v1485
        %v1534 = vadd.f32 %v1356, %v1490
        %v1535 = vadd.f32 %v1357, %v1493
        %v1536 = vadd.f32 %v1358, %v1498
        %v1537 = vadd.f32 %v1359, %v1501
        %v1538 = vadd.f32 %v1360, %v1506
        %v1539 = vadd.f32 %v1361, %v1509
        %v1540 = vadd.f32 %v1362, %v1514
        %v1541 = vadd.f32 %v1363, %v1517
        %v1542 = vadd.f32 %v1364, %v1522
        %v1543 = vadd.f32 %v1365, %v1525
        %v1545 = vshrl.u32 %v699, 16
        %v1547 = vshll.u32 %v699, 16
        %v1549 = vrot.slane %v1547, 1
        %v1550 = vor.u32 %v1545, %v1549
        %v1552 = vshll.u32 %v709, 16
        %v1554 = vrot.slane %v1552, 1
        %v1555 = vsel %vm727, %v1550, %v1554
        %s1557 = scalar_lea.vmem [#allocation8], 256
        %v1558 = vld [vmem:[%s1557] sm:$0xf]
        %v1559 = vld [vmem:[%s1557 + $0x4] sm:$0xf]
        %v1560 = vld [vmem:[%s1557 + $0x8] sm:$0xf]
        %v1561 = vld [vmem:[%s1557 + $0xc] sm:$0xf]
        %v1562 = vld [vmem:[%s1557 + $0x10] sm:$0xf]
        %v1563 = vld [vmem:[%s1557 + $0x14] sm:$0xf]
        %v1564 = vld [vmem:[%s1557 + $0x18] sm:$0xf]
        %v1565 = vld [vmem:[%s1557 + $0x1c] sm:$0xf]
        %v1566 = vld [vmem:[%s1557 + $0x20] sm:$0xf]
        %v1567 = vld [vmem:[%s1557 + $0x24] sm:$0xf]
        %v1568 = vld [vmem:[%s1557 + $0x28] sm:$0xf]
        %v1569 = vld [vmem:[%s1557 + $0x2c] sm:$0xf]
        %v1570 = vld [vmem:[%s1557 + $0x30] sm:$0xf]
        %v1571 = vld [vmem:[%s1557 + $0x34] sm:$0xf]
        %v1572 = vld [vmem:[%s1557 + $0x38] sm:$0xf]
        %v1573 = vld [vmem:[%s1557 + $0x3c] sm:$0xf]
        %v1590 = vunpack.c.l.b16 %v1558
        %v1591 = vunpack.c.l.b16 %v1559
        %v1592 = vunpack.c.l.b16 %v1560
        %v1593 = vunpack.c.l.b16 %v1561
        %v1594 = vunpack.c.l.b16 %v1562
        %v1595 = vunpack.c.l.b16 %v1563
        %v1596 = vunpack.c.l.b16 %v1564
        %v1597 = vunpack.c.l.b16 %v1565
        %v1598 = vunpack.c.l.b16 %v1566
        %v1599 = vunpack.c.l.b16 %v1567
        %v1600 = vunpack.c.l.b16 %v1568
        %v1601 = vunpack.c.l.b16 %v1569
        %v1602 = vunpack.c.l.b16 %v1570
        %v1603 = vunpack.c.l.b16 %v1571
        %v1604 = vunpack.c.l.b16 %v1572
        %v1605 = vunpack.c.l.b16 %v1573
        %v1606 = vpack.c.b16 %v1591, %v1590
        %v1607 = vpack.c.b16 %v1593, %v1592
        %v1608 = vpack.c.b16 %v1595, %v1594
        %v1609 = vpack.c.b16 %v1597, %v1596
        %v1610 = vpack.c.b16 %v1599, %v1598
        %v1611 = vpack.c.b16 %v1601, %v1600
        %v1612 = vpack.c.b16 %v1603, %v1602
        %v1613 = vpack.c.b16 %v1605, %v1604
        %1622 = vmatprep.subr.bf16.mxu0 0
        %1623 = vmatpush1.bf16.msra.mxu0 %v1606
        %1624 = vmatprep.subr.bf16.mxu0 0
        %1625 = vmatpush1.bf16.msra.mxu0 %v1607
        %1626 = vmatprep.subr.bf16.mxu0 0
        %1627 = vmatpush1.bf16.msra.mxu0 %v1608
        %1628 = vmatprep.subr.bf16.mxu0 0
        %1629 = vmatpush1.bf16.msra.mxu0 %v1609
        %1630 = vmatprep.subr.bf16.mxu0 0
        %1631 = vmatpush1.bf16.msra.mxu0 %v1610
        %1632 = vmatprep.subr.bf16.mxu0 0
        %1633 = vmatpush1.bf16.msra.mxu0 %v1611
        %1634 = vmatprep.subr.bf16.mxu0 0
        %1635 = vmatpush1.bf16.msra.mxu0 %v1612
        %1636 = vmatprep.subr.bf16.mxu0 0
        %1637 = vmatpush1.bf16.msra.mxu0 %v1613
        %1638 = vmatprep.subr.bf16.mxu0 0
        %1639 = vmatpush1.bf16.msra.mxu0 0
        %1640 = vmatprep.subr.bf16.mxu0 0
        %1641 = vmatpush1.bf16.msra.mxu0 0
        %1642 = vmatprep.subr.bf16.mxu0 0
        %1643 = vmatpush1.bf16.msra.mxu0 0
        %1644 = vmatprep.subr.bf16.mxu0 0
        %1645 = vmatpush1.bf16.msra.mxu0 0
        %1646 = vmatprep.subr.bf16.mxu0 0
        %1647 = vmatpush1.bf16.msra.mxu0 0
        %1648 = vmatprep.subr.bf16.mxu0 0
        %1649 = vmatpush1.bf16.msra.mxu0 0
        %1650 = vmatprep.subr.bf16.mxu0 0
        %1651 = vmatpush1.bf16.msra.mxu0 0
        %1652 = vmatprep.subr.bf16.mxu0 0
        %1653 = vmatpush1.bf16.msra.mxu0 0
        %1654 = vmatprep.mubr.bf16.mxu0 0
        %1655 = vmatmul.mubr.bf16.gmra.mrb[0].mxu0 %v751
        %v1656 = vpop.f32.mrb[0].mxu0
        %v1657 = vadd.f32 0.0, %v1656
        %v1658 = vpop.f32.mrb[0].mxu0
        %v1659 = vpop.f32.mrb[0].mxu0
        %v1660 = vadd.f32 0.0, %v1659
        %v1661 = vpop.f32.mrb[0].mxu0
        %1662 = vmatprep.mubr.bf16.mxu0 0
        %1663 = vmatmul.mubr.bf16.gmra.mrb[0].mxu0 %v763
        %v1664 = vpop.f32.mrb[0].mxu0
        %v1665 = vadd.f32 0.0, %v1664
        %v1666 = vpop.f32.mrb[0].mxu0
        %v1667 = vpop.f32.mrb[0].mxu0
        %v1668 = vadd.f32 0.0, %v1667
        %v1669 = vpop.f32.mrb[0].mxu0
        %1670 = vmatprep.mubr.bf16.mxu0 0
        %1671 = vmatmul.mubr.bf16.gmra.mrb[0].mxu0 %v775
        %v1672 = vpop.f32.mrb[0].mxu0
        %v1673 = vadd.f32 0.0, %v1672
        %v1674 = vpop.f32.mrb[0].mxu0
        %v1675 = vpop.f32.mrb[0].mxu0
        %v1676 = vadd.f32 0.0, %v1675
        %v1677 = vpop.f32.mrb[0].mxu0
        %1678 = vmatprep.mubr.bf16.mxu0 0
        %1679 = vmatmul.mubr.bf16.gmra.mrb[0].mxu0 %v787
        %v1680 = vpop.f32.mrb[0].mxu0
        %v1681 = vadd.f32 0.0, %v1680
        %v1682 = vpop.f32.mrb[0].mxu0
        %v1683 = vpop.f32.mrb[0].mxu0
        %v1684 = vadd.f32 0.0, %v1683
        %v1685 = vpop.f32.mrb[0].mxu0
        %1686 = vmatprep.mubr.bf16.mxu0 0
        %1687 = vmatmul.mubr.bf16.gmra.mrb[0].mxu0 %v799
        %v1688 = vpop.f32.mrb[0].mxu0
        %v1689 = vadd.f32 0.0, %v1688
        %v1690 = vpop.f32.mrb[0].mxu0
        %v1691 = vpop.f32.mrb[0].mxu0
        %v1692 = vadd.f32 0.0, %v1691
        %v1693 = vpop.f32.mrb[0].mxu0
        %1694 = vmatprep.mubr.bf16.mxu0 0
        %1695 = vmatmul.mubr.bf16.gmra.mrb[0].mxu0 %v811
        %v1696 = vpop.f32.mrb[0].mxu0
        %v1697 = vadd.f32 0.0, %v1696
        %v1698 = vpop.f32.mrb[0].mxu0
        %v1699 = vpop.f32.mrb[0].mxu0
        %v1700 = vadd.f32 0.0, %v1699
        %v1701 = vpop.f32.mrb[0].mxu0
        %1702 = vmatprep.mubr.bf16.mxu0 0
        %1703 = vmatmul.mubr.bf16.gmra.mrb[0].mxu0 %v823
        %v1704 = vpop.f32.mrb[0].mxu0
        %v1705 = vadd.f32 0.0, %v1704
        %v1706 = vpop.f32.mrb[0].mxu0
        %v1707 = vpop.f32.mrb[0].mxu0
        %v1708 = vadd.f32 0.0, %v1707
        %v1709 = vpop.f32.mrb[0].mxu0
        %1710 = vmatprep.mubr.bf16.mxu0 0
        %1711 = vmatmul.mubr.bf16.gmra.mrb[0].mxu0 %v1555
        %v1712 = vpop.f32.mrb[0].mxu0
        %v1713 = vadd.f32 0.0, %v1712
        %v1714 = vpop.f32.mrb[0].mxu0
        %v1715 = vpop.f32.mrb[0].mxu0
        %v1716 = vadd.f32 0.0, %v1715
        %v1717 = vpop.f32.mrb[0].mxu0
        %1718 = vdwg.mxu0
        %v1719 = vadd.f32 %v1528, %v1657
        %v1720 = vadd.f32 %v1529, %v1660
        %v1721 = vadd.f32 %v1530, %v1665
        %v1722 = vadd.f32 %v1531, %v1668
        %v1723 = vadd.f32 %v1532, %v1673
        %v1724 = vadd.f32 %v1533, %v1676
        %v1725 = vadd.f32 %v1534, %v1681
        %v1726 = vadd.f32 %v1535, %v1684
        %v1727 = vadd.f32 %v1536, %v1689
        %v1728 = vadd.f32 %v1537, %v1692
        %v1729 = vadd.f32 %v1538, %v1697
        %v1730 = vadd.f32 %v1539, %v1700
        %v1731 = vadd.f32 %v1540, %v1705
        %v1732 = vadd.f32 %v1541, %v1708
        %v1733 = vadd.f32 %v1542, %v1713
        %v1734 = vadd.f32 %v1543, %v1716
        %v1737 = vrot.slane %v699, 1
        %v1738 = vrot.slane %v709, 1
        %v1739 = vsel %vm1155, %v1737, %v1738
        %s1741 = scalar_lea.vmem [#allocation8], 320
        %v1742 = vld [vmem:[%s1741] sm:$0xf]
        %v1743 = vld [vmem:[%s1741 + $0x4] sm:$0xf]
        %v1744 = vld [vmem:[%s1741 + $0x8] sm:$0xf]
        %v1745 = vld [vmem:[%s1741 + $0xc] sm:$0xf]
        %v1746 = vld [vmem:[%s1741 + $0x10] sm:$0xf]
        %v1747 = vld [vmem:[%s1741 + $0x14] sm:$0xf]
        %v1748 = vld [vmem:[%s1741 + $0x18] sm:$0xf]
        %v1749 = vld [vmem:[%s1741 + $0x1c] sm:$0xf]
        %v1750 = vld [vmem:[%s1741 + $0x20] sm:$0xf]
        %v1751 = vld [vmem:[%s1741 + $0x24] sm:$0xf]
        %v1752 = vld [vmem:[%s1741 + $0x28] sm:$0xf]
        %v1753 = vld [vmem:[%s1741 + $0x2c] sm:$0xf]
        %v1754 = vld [vmem:[%s1741 + $0x30] sm:$0xf]
        %v1755 = vld [vmem:[%s1741 + $0x34] sm:$0xf]
        %v1756 = vld [vmem:[%s1741 + $0x38] sm:$0xf]
        %v1757 = vld [vmem:[%s1741 + $0x3c] sm:$0xf]
        %v1774 = vunpack.c.l.b16 %v1742
        %v1775 = vunpack.c.l.b16 %v1743
        %v1776 = vunpack.c.l.b16 %v1744
        %v1777 = vunpack.c.l.b16 %v1745
        %v1778 = vunpack.c.l.b16 %v1746
        %v1779 = vunpack.c.l.b16 %v1747
        %v1780 = vunpack.c.l.b16 %v1748
        %v1781 = vunpack.c.l.b16 %v1749
        %v1782 = vunpack.c.l.b16 %v1750
        %v1783 = vunpack.c.l.b16 %v1751
        %v1784 = vunpack.c.l.b16 %v1752
        %v1785 = vunpack.c.l.b16 %v1753
        %v1786 = vunpack.c.l.b16 %v1754
        %v1787 = vunpack.c.l.b16 %v1755
        %v1788 = vunpack.c.l.b16 %v1756
        %v1789 = vunpack.c.l.b16 %v1757
        %v1790 = vpack.c.b16 %v1775, %v1774
        %v1791 = vpack.c.b16 %v1777, %v1776
        %v1792 = vpack.c.b16 %v1779, %v1778
        %v1793 = vpack.c.b16 %v1781, %v1780
        %v1794 = vpack.c.b16 %v1783, %v1782
        %v1795 = vpack.c.b16 %v1785, %v1784
        %v1796 = vpack.c.b16 %v1787, %v1786
        %v1797 = vpack.c.b16 %v1789, %v1788
        %1806 = vmatprep.subr.bf16.mxu0 0
        %1807 = vmatpush1.bf16.msra.mxu0 %v1790
        %1808 = vmatprep.subr.bf16.mxu0 0
        %1809 = vmatpush1.bf16.msra.mxu0 %v1791
        %1810 = vmatprep.subr.bf16.mxu0 0
        %1811 = vmatpush1.bf16.msra.mxu0 %v1792
        %1812 = vmatprep.subr.bf16.mxu0 0
        %1813 = vmatpush1.bf16.msra.mxu0 %v1793
        %1814 = vmatprep.subr.bf16.mxu0 0
        %1815 = vmatpush1.bf16.msra.mxu0 %v1794
        %1816 = vmatprep.subr.bf16.mxu0 0
        %1817 = vmatpush1.bf16.msra.mxu0 %v1795
        %1818 = vmatprep.subr.bf16.mxu0 0
        %1819 = vmatpush1.bf16.msra.mxu0 %v1796
        %1820 = vmatprep.subr.bf16.mxu0 0
        %1821 = vmatpush1.bf16.msra.mxu0 %v1797
        %1822 = vmatprep.subr.bf16.mxu0 0
        %1823 = vmatpush1.bf16.msra.mxu0 0
        %1824 = vmatprep.subr.bf16.mxu0 0
        %1825 = vmatpush1.bf16.msra.mxu0 0
        %1826 = vmatprep.subr.bf16.mxu0 0
        %1827 = vmatpush1.bf16.msra.mxu0 0
        %1828 = vmatprep.subr.bf16.mxu0 0
        %1829 = vmatpush1.bf16.msra.mxu0 0
        %1830 = vmatprep.subr.bf16.mxu0 0
        %1831 = vmatpush1.bf16.msra.mxu0 0
        %1832 = vmatprep.subr.bf16.mxu0 0
        %1833 = vmatpush1.bf16.msra.mxu0 0
        %1834 = vmatprep.subr.bf16.mxu0 0
        %1835 = vmatpush1.bf16.msra.mxu0 0
        %1836 = vmatprep.subr.bf16.mxu0 0
        %1837 = vmatpush1.bf16.msra.mxu0 0
        %1838 = vmatprep.mubr.bf16.mxu0 0
        %1839 = vmatmul.mubr.bf16.gmra.mrb[0].mxu0 %v1161
        %v1840 = vpop.f32.mrb[0].mxu0
        %v1841 = vadd.f32 0.0, %v1840
        %v1842 = vpop.f32.mrb[0].mxu0
        %v1843 = vpop.f32.mrb[0].mxu0
        %v1844 = vadd.f32 0.0, %v1843
        %v1845 = vpop.f32.mrb[0].mxu0
        %1846 = vmatprep.mubr.bf16.mxu0 0
        %1847 = vmatmul.mubr.bf16.gmra.mrb[0].mxu0 %v1164
        %v1848 = vpop.f32.mrb[0].mxu0
        %v1849 = vadd.f32 0.0, %v1848
        %v1850 = vpop.f32.mrb[0].mxu0
        %v1851 = vpop.f32.mrb[0].mxu0
        %v1852 = vadd.f32 0.0, %v1851
        %v1853 = vpop.f32.mrb[0].mxu0
        %1854 = vmatprep.mubr.bf16.mxu0 0
        %1855 = vmatmul.mubr.bf16.gmra.mrb[0].mxu0 %v1167
        %v1856 = vpop.f32.mrb[0].mxu0
        %v1857 = vadd.f32 0.0, %v1856
        %v1858 = vpop.f32.mrb[0].mxu0
        %v1859 = vpop.f32.mrb[0].mxu0
        %v1860 = vadd.f32 0.0, %v1859
        %v1861 = vpop.f32.mrb[0].mxu0
        %1862 = vmatprep.mubr.bf16.mxu0 0
        %1863 = vmatmul.mubr.bf16.gmra.mrb[0].mxu0 %v1170
        %v1864 = vpop.f32.mrb[0].mxu0
        %v1865 = vadd.f32 0.0, %v1864
        %v1866 = vpop.f32.mrb[0].mxu0
        %v1867 = vpop.f32.mrb[0].mxu0
        %v1868 = vadd.f32 0.0, %v1867
        %v1869 = vpop.f32.mrb[0].mxu0
        %1870 = vmatprep.mubr.bf16.mxu0 0
        %1871 = vmatmul.mubr.bf16.gmra.mrb[0].mxu0 %v1173
        %v1872 = vpop.f32.mrb[0].mxu0
        %v1873 = vadd.f32 0.0, %v1872
        %v1874 = vpop.f32.mrb[0].mxu0
        %v1875 = vpop.f32.mrb[0].mxu0
        %v1876 = vadd.f32 0.0, %v1875
        %v1877 = vpop.f32.mrb[0].mxu0
        %1878 = vmatprep.mubr.bf16.mxu0 0
        %1879 = vmatmul.mubr.bf16.gmra.mrb[0].mxu0 %v1176
        %v1880 = vpop.f32.mrb[0].mxu0
        %v1881 = vadd.f32 0.0, %v1880
        %v1882 = vpop.f32.mrb[0].mxu0
        %v1883 = vpop.f32.mrb[0].mxu0
        %v1884 = vadd.f32 0.0, %v1883
        %v1885 = vpop.f32.mrb[0].mxu0
        %1886 = vmatprep.mubr.bf16.mxu0 0
        %1887 = vmatmul.mubr.bf16.gmra.mrb[0].mxu0 %v1179
        %v1888 = vpop.f32.mrb[0].mxu0
        %v1889 = vadd.f32 0.0, %v1888
        %v1890 = vpop.f32.mrb[0].mxu0
        %v1891 = vpop.f32.mrb[0].mxu0
        %v1892 = vadd.f32 0.0, %v1891
        %v1893 = vpop.f32.mrb[0].mxu0
        %1894 = vmatprep.mubr.bf16.mxu0 0
        %1895 = vmatmul.mubr.bf16.gmra.mrb[0].mxu0 %v1739
        %v1896 = vpop.f32.mrb[0].mxu0
        %v1897 = vadd.f32 0.0, %v1896
        %v1898 = vpop.f32.mrb[0].mxu0
        %v1899 = vpop.f32.mrb[0].mxu0
        %v1900 = vadd.f32 0.0, %v1899
        %v1901 = vpop.f32.mrb[0].mxu0
        %1902 = vdwg.mxu0
        %v1903 = vadd.f32 %v1719, %v1841
        %v1904 = vadd.f32 %v1720, %v1844
        %v1905 = vadd.f32 %v1721, %v1849
        %v1906 = vadd.f32 %v1722, %v1852
        %v1907 = vadd.f32 %v1723, %v1857
        %v1908 = vadd.f32 %v1724, %v1860
        %v1909 = vadd.f32 %v1725, %v1865
        %v1910 = vadd.f32 %v1726, %v1868
        %v1911 = vadd.f32 %v1727, %v1873
        %v1912 = vadd.f32 %v1728, %v1876
        %v1913 = vadd.f32 %v1729, %v1881
        %v1914 = vadd.f32 %v1730, %v1884
        %v1915 = vadd.f32 %v1731, %v1889
        %v1916 = vadd.f32 %v1732, %v1892
        %v1917 = vadd.f32 %v1733, %v1897
        %v1918 = vadd.f32 %v1734, %v1900
        %s1919 = scalar_lea.vmem [#allocation8], 384
        %v1920 = vld [vmem:[%s1919] sm:$0xf]
        %v1921 = vld [vmem:[%s1919 + $0x4] sm:$0xf]
        %v1922 = vld [vmem:[%s1919 + $0x8] sm:$0xf]
        %v1923 = vld [vmem:[%s1919 + $0xc] sm:$0xf]
        %v1924 = vld [vmem:[%s1919 + $0x10] sm:$0xf]
        %v1925 = vld [vmem:[%s1919 + $0x14] sm:$0xf]
        %v1926 = vld [vmem:[%s1919 + $0x18] sm:$0xf]
        %v1927 = vld [vmem:[%s1919 + $0x1c] sm:$0xf]
        %v1928 = vld [vmem:[%s1919 + $0x20] sm:$0xf]
        %v1929 = vld [vmem:[%s1919 + $0x24] sm:$0xf]
        %v1930 = vld [vmem:[%s1919 + $0x28] sm:$0xf]
        %v1931 = vld [vmem:[%s1919 + $0x2c] sm:$0xf]
        %v1932 = vld [vmem:[%s1919 + $0x30] sm:$0xf]
        %v1933 = vld [vmem:[%s1919 + $0x34] sm:$0xf]
        %v1934 = vld [vmem:[%s1919 + $0x38] sm:$0xf]
        %v1935 = vld [vmem:[%s1919 + $0x3c] sm:$0xf]
        %v1952 = vunpack.c.l.b16 %v1920
        %v1953 = vunpack.c.l.b16 %v1921
        %v1954 = vunpack.c.l.b16 %v1922
        %v1955 = vunpack.c.l.b16 %v1923
        %v1956 = vunpack.c.l.b16 %v1924
        %v1957 = vunpack.c.l.b16 %v1925
        %v1958 = vunpack.c.l.b16 %v1926
        %v1959 = vunpack.c.l.b16 %v1927
        %v1960 = vunpack.c.l.b16 %v1928
        %v1961 = vunpack.c.l.b16 %v1929
        %v1962 = vunpack.c.l.b16 %v1930
        %v1963 = vunpack.c.l.b16 %v1931
        %v1964 = vunpack.c.l.b16 %v1932
        %v1965 = vunpack.c.l.b16 %v1933
        %v1966 = vunpack.c.l.b16 %v1934
        %v1967 = vunpack.c.l.b16 %v1935
        %v1968 = vpack.c.b16 %v1953, %v1952
        %v1969 = vpack.c.b16 %v1955, %v1954
        %v1970 = vpack.c.b16 %v1957, %v1956
        %v1971 = vpack.c.b16 %v1959, %v1958
        %v1972 = vpack.c.b16 %v1961, %v1960
        %v1973 = vpack.c.b16 %v1963, %v1962
        %v1974 = vpack.c.b16 %v1965, %v1964
        %v1975 = vpack.c.b16 %v1967, %v1966
        %1984 = vmatprep.subr.bf16.mxu0 0
        %1985 = vmatpush1.bf16.msra.mxu0 %v1968
        %1986 = vmatprep.subr.bf16.mxu0 0
        %1987 = vmatpush1.bf16.msra.mxu0 %v1969
        %1988 = vmatprep.subr.bf16.mxu0 0
        %1989 = vmatpush1.bf16.msra.mxu0 %v1970
        %1990 = vmatprep.subr.bf16.mxu0 0
        %1991 = vmatpush1.bf16.msra.mxu0 %v1971
        %1992 = vmatprep.subr.bf16.mxu0 0
        %1993 = vmatpush1.bf16.msra.mxu0 %v1972
        %1994 = vmatprep.subr.bf16.mxu0 0
        %1995 = vmatpush1.bf16.msra.mxu0 %v1973
        %1996 = vmatprep.subr.bf16.mxu0 0
        %1997 = vmatpush1.bf16.msra.mxu0 %v1974
        %1998 = vmatprep.subr.bf16.mxu0 0
        %1999 = vmatpush1.bf16.msra.mxu0 %v1975
        %2000 = vmatprep.subr.bf16.mxu0 0
        %2001 = vmatpush1.bf16.msra.mxu0 0
        %2002 = vmatprep.subr.bf16.mxu0 0
        %2003 = vmatpush1.bf16.msra.mxu0 0
        %2004 = vmatprep.subr.bf16.mxu0 0
        %2005 = vmatpush1.bf16.msra.mxu0 0
        %2006 = vmatprep.subr.bf16.mxu0 0
        %2007 = vmatpush1.bf16.msra.mxu0 0
        %2008 = vmatprep.subr.bf16.mxu0 0
        %2009 = vmatpush1.bf16.msra.mxu0 0
        %2010 = vmatprep.subr.bf16.mxu0 0
        %2011 = vmatpush1.bf16.msra.mxu0 0
        %2012 = vmatprep.subr.bf16.mxu0 0
        %2013 = vmatpush1.bf16.msra.mxu0 0
        %2014 = vmatprep.subr.bf16.mxu0 0
        %2015 = vmatpush1.bf16.msra.mxu0 0
        %2016 = vmatprep.mubr.bf16.mxu0 0
        %2017 = vmatmul.mubr.bf16.gmra.mrb[0].mxu0 %v693
        %v2018 = vpop.f32.mrb[0].mxu0
        %v2019 = vadd.f32 0.0, %v2018
        %v2020 = vpop.f32.mrb[0].mxu0
        %v2021 = vpop.f32.mrb[0].mxu0
        %v2022 = vadd.f32 0.0, %v2021
        %v2023 = vpop.f32.mrb[0].mxu0
        %2024 = vmatprep.mubr.bf16.mxu0 0
        %2025 = vmatmul.mubr.bf16.gmra.mrb[0].mxu0 %v694
        %v2026 = vpop.f32.mrb[0].mxu0
        %v2027 = vadd.f32 0.0, %v2026
        %v2028 = vpop.f32.mrb[0].mxu0
        %v2029 = vpop.f32.mrb[0].mxu0
        %v2030 = vadd.f32 0.0, %v2029
        %v2031 = vpop.f32.mrb[0].mxu0
        %2032 = vmatprep.mubr.bf16.mxu0 0
        %2033 = vmatmul.mubr.bf16.gmra.mrb[0].mxu0 %v695
        %v2034 = vpop.f32.mrb[0].mxu0
        %v2035 = vadd.f32 0.0, %v2034
        %v2036 = vpop.f32.mrb[0].mxu0
        %v2037 = vpop.f32.mrb[0].mxu0
        %v2038 = vadd.f32 0.0, %v2037
        %v2039 = vpop.f32.mrb[0].mxu0
        %2040 = vmatprep.mubr.bf16.mxu0 0
        %2041 = vmatmul.mubr.bf16.gmra.mrb[0].mxu0 %v696
        %v2042 = vpop.f32.mrb[0].mxu0
        %v2043 = vadd.f32 0.0, %v2042
        %v2044 = vpop.f32.mrb[0].mxu0
        %v2045 = vpop.f32.mrb[0].mxu0
        %v2046 = vadd.f32 0.0, %v2045
        %v2047 = vpop.f32.mrb[0].mxu0
        %2048 = vmatprep.mubr.bf16.mxu0 0
        %2049 = vmatmul.mubr.bf16.gmra.mrb[0].mxu0 %v697
        %v2050 = vpop.f32.mrb[0].mxu0
        %v2051 = vadd.f32 0.0, %v2050
        %v2052 = vpop.f32.mrb[0].mxu0
        %v2053 = vpop.f32.mrb[0].mxu0
        %v2054 = vadd.f32 0.0, %v2053
        %v2055 = vpop.f32.mrb[0].mxu0
        %2056 = vmatprep.mubr.bf16.mxu0 0
        %2057 = vmatmul.mubr.bf16.gmra.mrb[0].mxu0 %v698
        %v2058 = vpop.f32.mrb[0].mxu0
        %v2059 = vadd.f32 0.0, %v2058
        %v2060 = vpop.f32.mrb[0].mxu0
        %v2061 = vpop.f32.mrb[0].mxu0
        %v2062 = vadd.f32 0.0, %v2061
        %v2063 = vpop.f32.mrb[0].mxu0
        %2064 = vmatprep.mubr.bf16.mxu0 0
        %2065 = vmatmul.mubr.bf16.gmra.mrb[0].mxu0 %v699
        %v2066 = vpop.f32.mrb[0].mxu0
        %v2067 = vadd.f32 0.0, %v2066
        %v2068 = vpop.f32.mrb[0].mxu0
        %v2069 = vpop.f32.mrb[0].mxu0
        %v2070 = vadd.f32 0.0, %v2069
        %v2071 = vpop.f32.mrb[0].mxu0
        %2072 = vmatprep.mubr.bf16.mxu0 0
        %2073 = vmatmul.mubr.bf16.gmra.mrb[0].mxu0 %v700
        %v2074 = vpop.f32.mrb[0].mxu0
        %v2075 = vadd.f32 0.0, %v2074
        %v2076 = vpop.f32.mrb[0].mxu0
        %v2077 = vpop.f32.mrb[0].mxu0
        %v2078 = vadd.f32 0.0, %v2077
        %v2079 = vpop.f32.mrb[0].mxu0
        %2080 = vdwg.mxu0
        %v2081 = vadd.f32 %v1903, %v2019
        %v2082 = vadd.f32 %v1904, %v2022
        %v2083 = vadd.f32 %v1905, %v2027
        %v2084 = vadd.f32 %v1906, %v2030
        %v2085 = vadd.f32 %v1907, %v2035
        %v2086 = vadd.f32 %v1908, %v2038
        %v2087 = vadd.f32 %v1909, %v2043
        %v2088 = vadd.f32 %v1910, %v2046
        %v2089 = vadd.f32 %v1911, %v2051
        %v2090 = vadd.f32 %v1912, %v2054
        %v2091 = vadd.f32 %v1913, %v2059
        %v2092 = vadd.f32 %v1914, %v2062
        %v2093 = vadd.f32 %v1915, %v2067
        %v2094 = vadd.f32 %v1916, %v2070
        %v2095 = vadd.f32 %v1917, %v2075
        %v2096 = vadd.f32 %v1918, %v2078
        %v2098 = vshrl.u32 %v700, 16
        %v2100 = vshll.u32 %v700, 16
        %v2102 = vrot.slane %v2100, 1
        %v2103 = vor.u32 %v2098, %v2102
        %v2105 = vshll.u32 %v710, 16
        %v2107 = vrot.slane %v2105, 1
        %v2108 = vsel %vm727, %v2103, %v2107
        %s2110 = scalar_lea.vmem [#allocation8], 448
        %v2111 = vld [vmem:[%s2110] sm:$0xf]
        %v2112 = vld [vmem:[%s2110 + $0x4] sm:$0xf]
        %v2113 = vld [vmem:[%s2110 + $0x8] sm:$0xf]
        %v2114 = vld [vmem:[%s2110 + $0xc] sm:$0xf]
        %v2115 = vld [vmem:[%s2110 + $0x10] sm:$0xf]
        %v2116 = vld [vmem:[%s2110 + $0x14] sm:$0xf]
        %v2117 = vld [vmem:[%s2110 + $0x18] sm:$0xf]
        %v2118 = vld [vmem:[%s2110 + $0x1c] sm:$0xf]
        %v2119 = vld [vmem:[%s2110 + $0x20] sm:$0xf]
        %v2120 = vld [vmem:[%s2110 + $0x24] sm:$0xf]
        %v2121 = vld [vmem:[%s2110 + $0x28] sm:$0xf]
        %v2122 = vld [vmem:[%s2110 + $0x2c] sm:$0xf]
        %v2123 = vld [vmem:[%s2110 + $0x30] sm:$0xf]
        %v2124 = vld [vmem:[%s2110 + $0x34] sm:$0xf]
        %v2125 = vld [vmem:[%s2110 + $0x38] sm:$0xf]
        %v2126 = vld [vmem:[%s2110 + $0x3c] sm:$0xf]
        %v2143 = vunpack.c.l.b16 %v2111
        %v2144 = vunpack.c.l.b16 %v2112
        %v2145 = vunpack.c.l.b16 %v2113
        %v2146 = vunpack.c.l.b16 %v2114
        %v2147 = vunpack.c.l.b16 %v2115
        %v2148 = vunpack.c.l.b16 %v2116
        %v2149 = vunpack.c.l.b16 %v2117
        %v2150 = vunpack.c.l.b16 %v2118
        %v2151 = vunpack.c.l.b16 %v2119
        %v2152 = vunpack.c.l.b16 %v2120
        %v2153 = vunpack.c.l.b16 %v2121
        %v2154 = vunpack.c.l.b16 %v2122
        %v2155 = vunpack.c.l.b16 %v2123
        %v2156 = vunpack.c.l.b16 %v2124
        %v2157 = vunpack.c.l.b16 %v2125
        %v2158 = vunpack.c.l.b16 %v2126
        %v2159 = vpack.c.b16 %v2144, %v2143
        %v2160 = vpack.c.b16 %v2146, %v2145
        %v2161 = vpack.c.b16 %v2148, %v2147
        %v2162 = vpack.c.b16 %v2150, %v2149
        %v2163 = vpack.c.b16 %v2152, %v2151
        %v2164 = vpack.c.b16 %v2154, %v2153
        %v2165 = vpack.c.b16 %v2156, %v2155
        %v2166 = vpack.c.b16 %v2158, %v2157
        %2175 = vmatprep.subr.bf16.mxu0 0
        %2176 = vmatpush1.bf16.msra.mxu0 %v2159
        %2177 = vmatprep.subr.bf16.mxu0 0
        %2178 = vmatpush1.bf16.msra.mxu0 %v2160
        %2179 = vmatprep.subr.bf16.mxu0 0
        %2180 = vmatpush1.bf16.msra.mxu0 %v2161
        %2181 = vmatprep.subr.bf16.mxu0 0
        %2182 = vmatpush1.bf16.msra.mxu0 %v2162
        %2183 = vmatprep.subr.bf16.mxu0 0
        %2184 = vmatpush1.bf16.msra.mxu0 %v2163
        %2185 = vmatprep.subr.bf16.mxu0 0
        %2186 = vmatpush1.bf16.msra.mxu0 %v2164
        %2187 = vmatprep.subr.bf16.mxu0 0
        %2188 = vmatpush1.bf16.msra.mxu0 %v2165
        %2189 = vmatprep.subr.bf16.mxu0 0
        %2190 = vmatpush1.bf16.msra.mxu0 %v2166
        %2191 = vmatprep.subr.bf16.mxu0 0
        %2192 = vmatpush1.bf16.msra.mxu0 0
        %2193 = vmatprep.subr.bf16.mxu0 0
        %2194 = vmatpush1.bf16.msra.mxu0 0
        %2195 = vmatprep.subr.bf16.mxu0 0
        %2196 = vmatpush1.bf16.msra.mxu0 0
        %2197 = vmatprep.subr.bf16.mxu0 0
        %2198 = vmatpush1.bf16.msra.mxu0 0
        %2199 = vmatprep.subr.bf16.mxu0 0
        %2200 = vmatpush1.bf16.msra.mxu0 0
        %2201 = vmatprep.subr.bf16.mxu0 0
        %2202 = vmatpush1.bf16.msra.mxu0 0
        %2203 = vmatprep.subr.bf16.mxu0 0
        %2204 = vmatpush1.bf16.msra.mxu0 0
        %2205 = vmatprep.subr.bf16.mxu0 0
        %2206 = vmatpush1.bf16.msra.mxu0 0
        %2207 = vmatprep.mubr.bf16.mxu0 0
        %2208 = vmatmul.mubr.bf16.gmra.mrb[0].mxu0 %v763
        %v2209 = vpop.f32.mrb[0].mxu0
        %v2210 = vadd.f32 0.0, %v2209
        %v2211 = vpop.f32.mrb[0].mxu0
        %v2212 = vpop.f32.mrb[0].mxu0
        %v2213 = vadd.f32 0.0, %v2212
        %v2214 = vpop.f32.mrb[0].mxu0
        %2215 = vmatprep.mubr.bf16.mxu0 0
        %2216 = vmatmul.mubr.bf16.gmra.mrb[0].mxu0 %v775
        %v2217 = vpop.f32.mrb[0].mxu0
        %v2218 = vadd.f32 0.0, %v2217
        %v2219 = vpop.f32.mrb[0].mxu0
        %v2220 = vpop.f32.mrb[0].mxu0
        %v2221 = vadd.f32 0.0, %v2220
        %v2222 = vpop.f32.mrb[0].mxu0
        %2223 = vmatprep.mubr.bf16.mxu0 0
        %2224 = vmatmul.mubr.bf16.gmra.mrb[0].mxu0 %v787
        %v2225 = vpop.f32.mrb[0].mxu0
        %v2226 = vadd.f32 0.0, %v2225
        %v2227 = vpop.f32.mrb[0].mxu0
        %v2228 = vpop.f32.mrb[0].mxu0
        %v2229 = vadd.f32 0.0, %v2228
        %v2230 = vpop.f32.mrb[0].mxu0
        %2231 = vmatprep.mubr.bf16.mxu0 0
        %2232 = vmatmul.mubr.bf16.gmra.mrb[0].mxu0 %v799
        %v2233 = vpop.f32.mrb[0].mxu0
        %v2234 = vadd.f32 0.0, %v2233
        %v2235 = vpop.f32.mrb[0].mxu0
        %v2236 = vpop.f32.mrb[0].mxu0
        %v2237 = vadd.f32 0.0, %v2236
        %v2238 = vpop.f32.mrb[0].mxu0
        %2239 = vmatprep.mubr.bf16.mxu0 0
        %2240 = vmatmul.mubr.bf16.gmra.mrb[0].mxu0 %v811
        %v2241 = vpop.f32.mrb[0].mxu0
        %v2242 = vadd.f32 0.0, %v2241
        %v2243 = vpop.f32.mrb[0].mxu0
        %v2244 = vpop.f32.mrb[0].mxu0
        %v2245 = vadd.f32 0.0, %v2244
        %v2246 = vpop.f32.mrb[0].mxu0
        %2247 = vmatprep.mubr.bf16.mxu0 0
        %2248 = vmatmul.mubr.bf16.gmra.mrb[0].mxu0 %v823
        %v2249 = vpop.f32.mrb[0].mxu0
        %v2250 = vadd.f32 0.0, %v2249
        %v2251 = vpop.f32.mrb[0].mxu0
        %v2252 = vpop.f32.mrb[0].mxu0
        %v2253 = vadd.f32 0.0, %v2252
        %v2254 = vpop.f32.mrb[0].mxu0
        %2255 = vmatprep.mubr.bf16.mxu0 0
        %2256 = vmatmul.mubr.bf16.gmra.mrb[0].mxu0 %v1555
        %v2257 = vpop.f32.mrb[0].mxu0
        %v2258 = vadd.f32 0.0, %v2257
        %v2259 = vpop.f32.mrb[0].mxu0
        %v2260 = vpop.f32.mrb[0].mxu0
        %v2261 = vadd.f32 0.0, %v2260
        %v2262 = vpop.f32.mrb[0].mxu0
        %2263 = vmatprep.mubr.bf16.mxu0 0
        %2264 = vmatmul.mubr.bf16.gmra.mrb[0].mxu0 %v2108
        %v2265 = vpop.f32.mrb[0].mxu0
        %v2266 = vadd.f32 0.0, %v2265
        %v2267 = vpop.f32.mrb[0].mxu0
        %v2268 = vpop.f32.mrb[0].mxu0
        %v2269 = vadd.f32 0.0, %v2268
        %v2270 = vpop.f32.mrb[0].mxu0
        %2271 = vdwg.mxu0
        %v2272 = vadd.f32 %v2081, %v2210
        %v2273 = vadd.f32 %v2082, %v2213
        %v2274 = vadd.f32 %v2083, %v2218
        %v2275 = vadd.f32 %v2084, %v2221
        %v2276 = vadd.f32 %v2085, %v2226
        %v2277 = vadd.f32 %v2086, %v2229
        %v2278 = vadd.f32 %v2087, %v2234
        %v2279 = vadd.f32 %v2088, %v2237
        %v2280 = vadd.f32 %v2089, %v2242
        %v2281 = vadd.f32 %v2090, %v2245
        %v2282 = vadd.f32 %v2091, %v2250
        %v2283 = vadd.f32 %v2092, %v2253
        %v2284 = vadd.f32 %v2093, %v2258
        %v2285 = vadd.f32 %v2094, %v2261
        %v2286 = vadd.f32 %v2095, %v2266
        %v2287 = vadd.f32 %v2096, %v2269
        %v2290 = vrot.slane %v700, 1
        %v2291 = vrot.slane %v710, 1
        %v2292 = vsel %vm1155, %v2290, %v2291
        %s2294 = scalar_lea.vmem [#allocation8], 512
        %v2295 = vld [vmem:[%s2294] sm:$0xf]
        %v2296 = vld [vmem:[%s2294 + $0x4] sm:$0xf]
        %v2297 = vld [vmem:[%s2294 + $0x8] sm:$0xf]
        %v2298 = vld [vmem:[%s2294 + $0xc] sm:$0xf]
        %v2299 = vld [vmem:[%s2294 + $0x10] sm:$0xf]
        %v2300 = vld [vmem:[%s2294 + $0x14] sm:$0xf]
        %v2301 = vld [vmem:[%s2294 + $0x18] sm:$0xf]
        %v2302 = vld [vmem:[%s2294 + $0x1c] sm:$0xf]
        %v2303 = vld [vmem:[%s2294 + $0x20] sm:$0xf]
        %v2304 = vld [vmem:[%s2294 + $0x24] sm:$0xf]
        %v2305 = vld [vmem:[%s2294 + $0x28] sm:$0xf]
        %v2306 = vld [vmem:[%s2294 + $0x2c] sm:$0xf]
        %v2307 = vld [vmem:[%s2294 + $0x30] sm:$0xf]
        %v2308 = vld [vmem:[%s2294 + $0x34] sm:$0xf]
        %v2309 = vld [vmem:[%s2294 + $0x38] sm:$0xf]
        %v2310 = vld [vmem:[%s2294 + $0x3c] sm:$0xf]
        %v2327 = vunpack.c.l.b16 %v2295
        %v2328 = vunpack.c.l.b16 %v2296
        %v2329 = vunpack.c.l.b16 %v2297
        %v2330 = vunpack.c.l.b16 %v2298
        %v2331 = vunpack.c.l.b16 %v2299
        %v2332 = vunpack.c.l.b16 %v2300
        %v2333 = vunpack.c.l.b16 %v2301
        %v2334 = vunpack.c.l.b16 %v2302
        %v2335 = vunpack.c.l.b16 %v2303
        %v2336 = vunpack.c.l.b16 %v2304
        %v2337 = vunpack.c.l.b16 %v2305
        %v2338 = vunpack.c.l.b16 %v2306
        %v2339 = vunpack.c.l.b16 %v2307
        %v2340 = vunpack.c.l.b16 %v2308
        %v2341 = vunpack.c.l.b16 %v2309
        %v2342 = vunpack.c.l.b16 %v2310
        %v2343 = vpack.c.b16 %v2328, %v2327
        %v2344 = vpack.c.b16 %v2330, %v2329
        %v2345 = vpack.c.b16 %v2332, %v2331
        %v2346 = vpack.c.b16 %v2334, %v2333
        %v2347 = vpack.c.b16 %v2336, %v2335
        %v2348 = vpack.c.b16 %v2338, %v2337
        %v2349 = vpack.c.b16 %v2340, %v2339
        %v2350 = vpack.c.b16 %v2342, %v2341
        %2359 = vmatprep.subr.bf16.mxu0 0
        %2360 = vmatpush1.bf16.msra.mxu0 %v2343
        %2361 = vmatprep.subr.bf16.mxu0 0
        %2362 = vmatpush1.bf16.msra.mxu0 %v2344
        %2363 = vmatprep.subr.bf16.mxu0 0
        %2364 = vmatpush1.bf16.msra.mxu0 %v2345
        %2365 = vmatprep.subr.bf16.mxu0 0
        %2366 = vmatpush1.bf16.msra.mxu0 %v2346
        %2367 = vmatprep.subr.bf16.mxu0 0
        %2368 = vmatpush1.bf16.msra.mxu0 %v2347
        %2369 = vmatprep.subr.bf16.mxu0 0
        %2370 = vmatpush1.bf16.msra.mxu0 %v2348
        %2371 = vmatprep.subr.bf16.mxu0 0
        %2372 = vmatpush1.bf16.msra.mxu0 %v2349
        %2373 = vmatprep.subr.bf16.mxu0 0
        %2374 = vmatpush1.bf16.msra.mxu0 %v2350
        %2375 = vmatprep.subr.bf16.mxu0 0
        %2376 = vmatpush1.bf16.msra.mxu0 0
        %2377 = vmatprep.subr.bf16.mxu0 0
        %2378 = vmatpush1.bf16.msra.mxu0 0
        %2379 = vmatprep.subr.bf16.mxu0 0
        %2380 = vmatpush1.bf16.msra.mxu0 0
        %2381 = vmatprep.subr.bf16.mxu0 0
        %2382 = vmatpush1.bf16.msra.mxu0 0
        %2383 = vmatprep.subr.bf16.mxu0 0
        %2384 = vmatpush1.bf16.msra.mxu0 0
        %2385 = vmatprep.subr.bf16.mxu0 0
        %2386 = vmatpush1.bf16.msra.mxu0 0
        %2387 = vmatprep.subr.bf16.mxu0 0
        %2388 = vmatpush1.bf16.msra.mxu0 0
        %2389 = vmatprep.subr.bf16.mxu0 0
        %2390 = vmatpush1.bf16.msra.mxu0 0
        %2391 = vmatprep.mubr.bf16.mxu0 0
        %2392 = vmatmul.mubr.bf16.gmra.mrb[0].mxu0 %v1164
        %v2393 = vpop.f32.mrb[0].mxu0
        %v2394 = vadd.f32 0.0, %v2393
        %v2395 = vpop.f32.mrb[0].mxu0
        %v2396 = vpop.f32.mrb[0].mxu0
        %v2397 = vadd.f32 0.0, %v2396
        %v2398 = vpop.f32.mrb[0].mxu0
        %2399 = vmatprep.mubr.bf16.mxu0 0
        %2400 = vmatmul.mubr.bf16.gmra.mrb[0].mxu0 %v1167
        %v2401 = vpop.f32.mrb[0].mxu0
        %v2402 = vadd.f32 0.0, %v2401
        %v2403 = vpop.f32.mrb[0].mxu0
        %v2404 = vpop.f32.mrb[0].mxu0
        %v2405 = vadd.f32 0.0, %v2404
        %v2406 = vpop.f32.mrb[0].mxu0
        %2407 = vmatprep.mubr.bf16.mxu0 0
        %2408 = vmatmul.mubr.bf16.gmra.mrb[0].mxu0 %v1170
        %v2409 = vpop.f32.mrb[0].mxu0
        %v2410 = vadd.f32 0.0, %v2409
        %v2411 = vpop.f32.mrb[0].mxu0
        %v2412 = vpop.f32.mrb[0].mxu0
        %v2413 = vadd.f32 0.0, %v2412
        %v2414 = vpop.f32.mrb[0].mxu0
        %2415 = vmatprep.mubr.bf16.mxu0 0
        %2416 = vmatmul.mubr.bf16.gmra.mrb[0].mxu0 %v1173
        %v2417 = vpop.f32.mrb[0].mxu0
        %v2418 = vadd.f32 0.0, %v2417
        %v2419 = vpop.f32.mrb[0].mxu0
        %v2420 = vpop.f32.mrb[0].mxu0
        %v2421 = vadd.f32 0.0, %v2420
        %v2422 = vpop.f32.mrb[0].mxu0
        %2423 = vmatprep.mubr.bf16.mxu0 0
        %2424 = vmatmul.mubr.bf16.gmra.mrb[0].mxu0 %v1176
        %v2425 = vpop.f32.mrb[0].mxu0
        %v2426 = vadd.f32 0.0, %v2425
        %v2427 = vpop.f32.mrb[0].mxu0
        %v2428 = vpop.f32.mrb[0].mxu0
        %v2429 = vadd.f32 0.0, %v2428
        %v2430 = vpop.f32.mrb[0].mxu0
        %2431 = vmatprep.mubr.bf16.mxu0 0
        %2432 = vmatmul.mubr.bf16.gmra.mrb[0].mxu0 %v1179
        %v2433 = vpop.f32.mrb[0].mxu0
        %v2434 = vadd.f32 0.0, %v2433
        %v2435 = vpop.f32.mrb[0].mxu0
        %v2436 = vpop.f32.mrb[0].mxu0
        %v2437 = vadd.f32 0.0, %v2436
        %v2438 = vpop.f32.mrb[0].mxu0
        %2439 = vmatprep.mubr.bf16.mxu0 0
        %2440 = vmatmul.mubr.bf16.gmra.mrb[0].mxu0 %v1739
        %v2441 = vpop.f32.mrb[0].mxu0
        %v2442 = vadd.f32 0.0, %v2441
        %v2443 = vpop.f32.mrb[0].mxu0
        %v2444 = vpop.f32.mrb[0].mxu0
        %v2445 = vadd.f32 0.0, %v2444
        %v2446 = vpop.f32.mrb[0].mxu0
        %2447 = vmatprep.mubr.bf16.mxu0 0
        %2448 = vmatmul.mubr.bf16.gmra.mrb[0].mxu0 %v2292
        %v2449 = vpop.f32.mrb[0].mxu0
        %v2450 = vadd.f32 0.0, %v2449
        %v2451 = vpop.f32.mrb[0].mxu0
        %v2452 = vpop.f32.mrb[0].mxu0
        %v2453 = vadd.f32 0.0, %v2452
        %v2454 = vpop.f32.mrb[0].mxu0
        %2455 = vdwg.mxu0
        %v2456 = vadd.f32 %v2272, %v2394
        %v2457 = vadd.f32 %v2273, %v2397
        %v2458 = vadd.f32 %v2274, %v2402
        %v2459 = vadd.f32 %v2275, %v2405
        %v2460 = vadd.f32 %v2276, %v2410
        %v2461 = vadd.f32 %v2277, %v2413
        %v2462 = vadd.f32 %v2278, %v2418
        %v2463 = vadd.f32 %v2279, %v2421
        %v2464 = vadd.f32 %v2280, %v2426
        %v2465 = vadd.f32 %v2281, %v2429
        %v2466 = vadd.f32 %v2282, %v2434
        %v2467 = vadd.f32 %v2283, %v2437
        %v2468 = vadd.f32 %v2284, %v2442
        %v2469 = vadd.f32 %v2285, %v2445
        %v2470 = vadd.f32 %v2286, %v2450
        %v2471 = vadd.f32 %v2287, %v2453
        %v2472 = vld [vmem:[%s4] sm:$0x1]
        %v2474 = vlaneseq
        %v2475 = vshrl.u32 %v2474, 7
        %v2476 = vsub.s32 0, %v2475
        %v2477 = vrot.slane %v2472, %v2476
        %v2479 = vmul.f32 %v2456, %v2477
        %v2480 = vmul.f32 %v2457, %v2477
        %v2481 = vmul.f32 %v2458, %v2477
        %v2482 = vmul.f32 %v2459, %v2477
        %v2483 = vmul.f32 %v2460, %v2477
        %v2484 = vmul.f32 %v2461, %v2477
        %v2485 = vmul.f32 %v2462, %v2477
        %v2486 = vmul.f32 %v2463, %v2477
        %v2487 = vmul.f32 %v2464, %v2477
        %v2488 = vmul.f32 %v2465, %v2477
        %v2489 = vmul.f32 %v2466, %v2477
        %v2490 = vmul.f32 %v2467, %v2477
        %v2491 = vmul.f32 %v2468, %v2477
        %v2492 = vmul.f32 %v2469, %v2477
        %v2493 = vmul.f32 %v2470, %v2477
        %v2494 = vmul.f32 %v2471, %v2477
        %v2495 = vld [vmem:[%s5] sm:$0x1]
        %v2497 = vlaneseq
        %v2498 = vshrl.u32 %v2497, 7
        %v2499 = vsub.s32 0, %v2498
        %v2500 = vrot.slane %v2495, %v2499
        %v2502 = vadd.f32 %v2479, %v2500
        %v2503 = vadd.f32 %v2480, %v2500
        %v2504 = vadd.f32 %v2481, %v2500
        %v2505 = vadd.f32 %v2482, %v2500
        %v2506 = vadd.f32 %v2483, %v2500
        %v2507 = vadd.f32 %v2484, %v2500
        %v2508 = vadd.f32 %v2485, %v2500
        %v2509 = vadd.f32 %v2486, %v2500
        %v2510 = vadd.f32 %v2487, %v2500
        %v2511 = vadd.f32 %v2488, %v2500
        %v2512 = vadd.f32 %v2489, %v2500
        %v2513 = vadd.f32 %v2490, %v2500
        %v2514 = vadd.f32 %v2491, %v2500
        %v2515 = vadd.f32 %v2492, %v2500
        %v2516 = vadd.f32 %v2493, %v2500
        %v2517 = vadd.f32 %v2494, %v2500
        %v2518 = vmax.f32 %v2502, 0.0
        %v2519 = vmax.f32 %v2503, 0.0
        %v2520 = vmax.f32 %v2504, 0.0
        %v2521 = vmax.f32 %v2505, 0.0
        %v2522 = vmax.f32 %v2506, 0.0
        %v2523 = vmax.f32 %v2507, 0.0
        %v2524 = vmax.f32 %v2508, 0.0
        %v2525 = vmax.f32 %v2509, 0.0
        %v2526 = vmax.f32 %v2510, 0.0
        %v2527 = vmax.f32 %v2511, 0.0
        %v2528 = vmax.f32 %v2512, 0.0
        %v2529 = vmax.f32 %v2513, 0.0
        %v2530 = vmax.f32 %v2514, 0.0
        %v2531 = vmax.f32 %v2515, 0.0
        %v2532 = vmax.f32 %v2516, 0.0
        %v2533 = vmax.f32 %v2517, 0.0
        %v2534 = vpack.c.bf16 %v2519, %v2518
        %v2535 = vpack.c.bf16 %v2521, %v2520
        %v2536 = vpack.c.bf16 %v2523, %v2522
        %v2537 = vpack.c.bf16 %v2525, %v2524
        %v2538 = vpack.c.bf16 %v2527, %v2526
        %v2539 = vpack.c.bf16 %v2529, %v2528
        %v2540 = vpack.c.bf16 %v2531, %v2530
        %v2541 = vpack.c.bf16 %v2533, %v2532
        %v2550 = vunpack.c.l.b16 %v2534
        %v2551 = vunpack.c.h.b16 %v2534
        %v2552 = vunpack.c.l.b16 %v2535
        %v2553 = vunpack.c.h.b16 %v2535
        %v2554 = vunpack.c.l.b16 %v2536
        %v2555 = vunpack.c.h.b16 %v2536
        %v2556 = vunpack.c.l.b16 %v2537
        %v2557 = vunpack.c.h.b16 %v2537
        %v2558 = vunpack.c.l.b16 %v2538
        %v2559 = vunpack.c.h.b16 %v2538
        %v2560 = vunpack.c.l.b16 %v2539
        %v2561 = vunpack.c.h.b16 %v2539
        %v2562 = vunpack.c.l.b16 %v2540
        %v2563 = vunpack.c.h.b16 %v2540
        %v2564 = vunpack.c.l.b16 %v2541
        %v2565 = vunpack.c.h.b16 %v2541
        %v2566 = vpack.c.b16 %v2550, %v2550
        %v2567 = vpack.c.b16 %v2551, %v2551
        %v2568 = vpack.c.b16 %v2552, %v2552
        %v2569 = vpack.c.b16 %v2553, %v2553
        %v2570 = vpack.c.b16 %v2554, %v2554
        %v2571 = vpack.c.b16 %v2555, %v2555
        %v2572 = vpack.c.b16 %v2556, %v2556
        %v2573 = vpack.c.b16 %v2557, %v2557
        %v2574 = vpack.c.b16 %v2558, %v2558
        %v2575 = vpack.c.b16 %v2559, %v2559
        %v2576 = vpack.c.b16 %v2560, %v2560
        %v2577 = vpack.c.b16 %v2561, %v2561
        %v2578 = vpack.c.b16 %v2562, %v2562
        %v2579 = vpack.c.b16 %v2563, %v2563
        %v2580 = vpack.c.b16 %v2564, %v2564
        %v2581 = vpack.c.b16 %v2565, %v2565
        %2598 = vst [vmem:[%s516] sm:$0xf] %v2566
        %2599 = vst [vmem:[%s516 + $0x4] sm:$0xf] %v2567
        %2600 = vst [vmem:[%s516 + $0x8] sm:$0xf] %v2568
        %2601 = vst [vmem:[%s516 + $0xc] sm:$0xf] %v2569
        %2602 = vst [vmem:[%s516 + $0x10] sm:$0xf] %v2570
        %2603 = vst [vmem:[%s516 + $0x14] sm:$0xf] %v2571
        %2604 = vst [vmem:[%s516 + $0x18] sm:$0xf] %v2572
        %2605 = vst [vmem:[%s516 + $0x1c] sm:$0xf] %v2573
        %2606 = vst [vmem:[%s516 + $0x20] sm:$0xf] %v2574
        %2607 = vst [vmem:[%s516 + $0x24] sm:$0xf] %v2575
        %2608 = vst [vmem:[%s516 + $0x28] sm:$0xf] %v2576
        %2609 = vst [vmem:[%s516 + $0x2c] sm:$0xf] %v2577
        %2610 = vst [vmem:[%s516 + $0x30] sm:$0xf] %v2578
        %2611 = vst [vmem:[%s516 + $0x34] sm:$0xf] %v2579
        %2612 = vst [vmem:[%s516 + $0x38] sm:$0xf] %v2580
        %2613 = vst [vmem:[%s516 + $0x3c] sm:$0xf] %v2581
        %v2614 = vld [vmem:[#allocation10] sm:$0xf]
        %v2615 = vld [vmem:[#allocation10 + $0x4] sm:$0xf]
        %v2616 = vld [vmem:[#allocation10 + $0x8] sm:$0xf]
        %v2617 = vld [vmem:[#allocation10 + $0xc] sm:$0xf]
        %v2618 = vld [vmem:[#allocation10 + $0x10] sm:$0xf]
        %v2619 = vld [vmem:[#allocation10 + $0x14] sm:$0xf]
        %v2620 = vld [vmem:[#allocation10 + $0x18] sm:$0xf]
        %v2621 = vld [vmem:[#allocation10 + $0x1c] sm:$0xf]
        %v2622 = vld [vmem:[#allocation10 + $0x20] sm:$0xf]
        %v2623 = vld [vmem:[#allocation10 + $0x24] sm:$0xf]
        %v2624 = vld [vmem:[#allocation10 + $0x28] sm:$0xf]
        %v2625 = vld [vmem:[#allocation10 + $0x2c] sm:$0xf]
        %v2626 = vld [vmem:[#allocation10 + $0x30] sm:$0xf]
        %v2627 = vld [vmem:[#allocation10 + $0x34] sm:$0xf]
        %v2628 = vld [vmem:[#allocation10 + $0x38] sm:$0xf]
        %v2629 = vld [vmem:[#allocation10 + $0x3c] sm:$0xf]
        %v2646 = vunpack.c.l.b16 %v2614
        %v2647 = vunpack.c.l.b16 %v2615
        %v2648 = vunpack.c.l.b16 %v2616
        %v2649 = vunpack.c.l.b16 %v2617
        %v2650 = vunpack.c.l.b16 %v2618
        %v2651 = vunpack.c.l.b16 %v2619
        %v2652 = vunpack.c.l.b16 %v2620
        %v2653 = vunpack.c.l.b16 %v2621
        %v2654 = vunpack.c.l.b16 %v2622
        %v2655 = vunpack.c.l.b16 %v2623
        %v2656 = vunpack.c.l.b16 %v2624
        %v2657 = vunpack.c.l.b16 %v2625
        %v2658 = vunpack.c.l.b16 %v2626
        %v2659 = vunpack.c.l.b16 %v2627
        %v2660 = vunpack.c.l.b16 %v2628
        %v2661 = vunpack.c.l.b16 %v2629
        %v2662 = vpack.c.b16 %v2647, %v2646
        %v2663 = vpack.c.b16 %v2649, %v2648
        %v2664 = vpack.c.b16 %v2651, %v2650
        %v2665 = vpack.c.b16 %v2653, %v2652
        %v2666 = vpack.c.b16 %v2655, %v2654
        %v2667 = vpack.c.b16 %v2657, %v2656
        %v2668 = vpack.c.b16 %v2659, %v2658
        %v2669 = vpack.c.b16 %v2661, %v2660
        %2678 = vmatprep.subr.bf16.mxu0 0
        %2679 = vmatpush1.bf16.msra.mxu0 %v2662
        %2680 = vmatprep.subr.bf16.mxu0 0
        %2681 = vmatpush1.bf16.msra.mxu0 %v2663
        %2682 = vmatprep.subr.bf16.mxu0 0
        %2683 = vmatpush1.bf16.msra.mxu0 %v2664
        %2684 = vmatprep.subr.bf16.mxu0 0
        %2685 = vmatpush1.bf16.msra.mxu0 %v2665
        %2686 = vmatprep.subr.bf16.mxu0 0
        %2687 = vmatpush1.bf16.msra.mxu0 %v2666
        %2688 = vmatprep.subr.bf16.mxu0 0
        %2689 = vmatpush1.bf16.msra.mxu0 %v2667
        %2690 = vmatprep.subr.bf16.mxu0 0
        %2691 = vmatpush1.bf16.msra.mxu0 %v2668
        %2692 = vmatprep.subr.bf16.mxu0 0
        %2693 = vmatpush1.bf16.msra.mxu0 %v2669
        %2694 = vmatprep.subr.bf16.mxu0 0
        %2695 = vmatpush1.bf16.msra.mxu0 0
        %2696 = vmatprep.subr.bf16.mxu0 0
        %2697 = vmatpush1.bf16.msra.mxu0 0
        %2698 = vmatprep.subr.bf16.mxu0 0
        %2699 = vmatpush1.bf16.msra.mxu0 0
        %2700 = vmatprep.subr.bf16.mxu0 0
        %2701 = vmatpush1.bf16.msra.mxu0 0
        %2702 = vmatprep.subr.bf16.mxu0 0
        %2703 = vmatpush1.bf16.msra.mxu0 0
        %2704 = vmatprep.subr.bf16.mxu0 0
        %2705 = vmatpush1.bf16.msra.mxu0 0
        %2706 = vmatprep.subr.bf16.mxu0 0
        %2707 = vmatpush1.bf16.msra.mxu0 0
        %2708 = vmatprep.subr.bf16.mxu0 0
        %2709 = vmatpush1.bf16.msra.mxu0 0
        %2710 = vmatprep.mubr.bf16.mxu0 0
        %2711 = vmatmul.mubr.bf16.gmra.mrb[0].mxu0 %v751
        %v2712 = vpop.f32.mrb[0].mxu0
        %v2713 = vadd.f32 0.0, %v2712
        %v2714 = vpop.f32.mrb[0].mxu0
        %v2715 = vpop.f32.mrb[0].mxu0
        %v2716 = vadd.f32 0.0, %v2715
        %v2717 = vpop.f32.mrb[0].mxu0
        %2718 = vmatprep.mubr.bf16.mxu0 0
        %2719 = vmatmul.mubr.bf16.gmra.mrb[0].mxu0 %v763
        %v2720 = vpop.f32.mrb[0].mxu0
        %v2721 = vadd.f32 0.0, %v2720
        %v2722 = vpop.f32.mrb[0].mxu0
        %v2723 = vpop.f32.mrb[0].mxu0
        %v2724 = vadd.f32 0.0, %v2723
        %v2725 = vpop.f32.mrb[0].mxu0
        %2726 = vmatprep.mubr.bf16.mxu0 0
        %2727 = vmatmul.mubr.bf16.gmra.mrb[0].mxu0 %v775
        %v2728 = vpop.f32.mrb[0].mxu0
        %v2729 = vadd.f32 0.0, %v2728
        %v2730 = vpop.f32.mrb[0].mxu0
        %v2731 = vpop.f32.mrb[0].mxu0
        %v2732 = vadd.f32 0.0, %v2731
        %v2733 = vpop.f32.mrb[0].mxu0
        %2734 = vmatprep.mubr.bf16.mxu0 0
        %2735 = vmatmul.mubr.bf16.gmra.mrb[0].mxu0 %v787
        %v2736 = vpop.f32.mrb[0].mxu0
        %v2737 = vadd.f32 0.0, %v2736
        %v2738 = vpop.f32.mrb[0].mxu0
        %v2739 = vpop.f32.mrb[0].mxu0
        %v2740 = vadd.f32 0.0, %v2739
        %v2741 = vpop.f32.mrb[0].mxu0
        %2742 = vmatprep.mubr.bf16.mxu0 0
        %2743 = vmatmul.mubr.bf16.gmra.mrb[0].mxu0 %v799
        %v2744 = vpop.f32.mrb[0].mxu0
        %v2745 = vadd.f32 0.0, %v2744
        %v2746 = vpop.f32.mrb[0].mxu0
        %v2747 = vpop.f32.mrb[0].mxu0
        %v2748 = vadd.f32 0.0, %v2747
        %v2749 = vpop.f32.mrb[0].mxu0
        %2750 = vmatprep.mubr.bf16.mxu0 0
        %2751 = vmatmul.mubr.bf16.gmra.mrb[0].mxu0 %v811
        %v2752 = vpop.f32.mrb[0].mxu0
        %v2753 = vadd.f32 0.0, %v2752
        %v2754 = vpop.f32.mrb[0].mxu0
        %v2755 = vpop.f32.mrb[0].mxu0
        %v2756 = vadd.f32 0.0, %v2755
        %v2757 = vpop.f32.mrb[0].mxu0
        %2758 = vmatprep.mubr.bf16.mxu0 0
        %2759 = vmatmul.mubr.bf16.gmra.mrb[0].mxu0 %v823
        %v2760 = vpop.f32.mrb[0].mxu0
        %v2761 = vadd.f32 0.0, %v2760
        %v2762 = vpop.f32.mrb[0].mxu0
        %v2763 = vpop.f32.mrb[0].mxu0
        %v2764 = vadd.f32 0.0, %v2763
        %v2765 = vpop.f32.mrb[0].mxu0
        %2766 = vmatprep.mubr.bf16.mxu0 0
        %2767 = vmatmul.mubr.bf16.gmra.mrb[0].mxu0 %v1555
        %v2768 = vpop.f32.mrb[0].mxu0
        %v2769 = vadd.f32 0.0, %v2768
        %v2770 = vpop.f32.mrb[0].mxu0
        %v2771 = vpop.f32.mrb[0].mxu0
        %v2772 = vadd.f32 0.0, %v2771
        %v2773 = vpop.f32.mrb[0].mxu0
        %2774 = vdwg.mxu0
        %v2775 = vld [vmem:[%s7] sm:$0x1]
        %v2777 = vlaneseq
        %v2778 = vshrl.u32 %v2777, 7
        %v2779 = vsub.s32 0, %v2778
        %v2780 = vrot.slane %v2775, %v2779
        %v2782 = vmul.f32 %v2713, %v2780
        %v2783 = vmul.f32 %v2716, %v2780
        %v2784 = vmul.f32 %v2721, %v2780
        %v2785 = vmul.f32 %v2724, %v2780
        %v2786 = vmul.f32 %v2729, %v2780
        %v2787 = vmul.f32 %v2732, %v2780
        %v2788 = vmul.f32 %v2737, %v2780
        %v2789 = vmul.f32 %v2740, %v2780
        %v2790 = vmul.f32 %v2745, %v2780
        %v2791 = vmul.f32 %v2748, %v2780
        %v2792 = vmul.f32 %v2753, %v2780
        %v2793 = vmul.f32 %v2756, %v2780
        %v2794 = vmul.f32 %v2761, %v2780
        %v2795 = vmul.f32 %v2764, %v2780
        %v2796 = vmul.f32 %v2769, %v2780
        %v2797 = vmul.f32 %v2772, %v2780
        %v2798 = vld [vmem:[%s8] sm:$0x1]
        %v2800 = vlaneseq
        %v2801 = vshrl.u32 %v2800, 7
        %v2802 = vsub.s32 0, %v2801
        %v2803 = vrot.slane %v2798, %v2802
        %v2805 = vadd.f32 %v2782, %v2803
        %v2806 = vadd.f32 %v2783, %v2803
        %v2807 = vadd.f32 %v2784, %v2803
        %v2808 = vadd.f32 %v2785, %v2803
        %v2809 = vadd.f32 %v2786, %v2803
        %v2810 = vadd.f32 %v2787, %v2803
        %v2811 = vadd.f32 %v2788, %v2803
        %v2812 = vadd.f32 %v2789, %v2803
        %v2813 = vadd.f32 %v2790, %v2803
        %v2814 = vadd.f32 %v2791, %v2803
        %v2815 = vadd.f32 %v2792, %v2803
        %v2816 = vadd.f32 %v2793, %v2803
        %v2817 = vadd.f32 %v2794, %v2803
        %v2818 = vadd.f32 %v2795, %v2803
        %v2819 = vadd.f32 %v2796, %v2803
        %v2820 = vadd.f32 %v2797, %v2803
        %v2821 = vpack.c.bf16 %v2806, %v2805
        %v2822 = vpack.c.bf16 %v2808, %v2807
        %v2823 = vpack.c.bf16 %v2810, %v2809
        %v2824 = vpack.c.bf16 %v2812, %v2811
        %v2825 = vpack.c.bf16 %v2814, %v2813
        %v2826 = vpack.c.bf16 %v2816, %v2815
        %v2827 = vpack.c.bf16 %v2818, %v2817
        %v2828 = vpack.c.bf16 %v2820, %v2819
        %v2837 = vunpack.c.l.b16 %v2821
        %v2838 = vunpack.c.h.b16 %v2821
        %v2839 = vunpack.c.l.b16 %v2822
        %v2840 = vunpack.c.h.b16 %v2822
        %v2841 = vunpack.c.l.b16 %v2823
        %v2842 = vunpack.c.h.b16 %v2823
        %v2843 = vunpack.c.l.b16 %v2824
        %v2844 = vunpack.c.h.b16 %v2824
        %v2845 = vunpack.c.l.b16 %v2825
        %v2846 = vunpack.c.h.b16 %v2825
        %v2847 = vunpack.c.l.b16 %v2826
        %v2848 = vunpack.c.h.b16 %v2826
        %v2849 = vunpack.c.l.b16 %v2827
        %v2850 = vunpack.c.h.b16 %v2827
        %v2851 = vunpack.c.l.b16 %v2828
        %v2852 = vunpack.c.h.b16 %v2828
        %v2853 = vpack.c.b16 %v2837, %v2837
        %v2854 = vpack.c.b16 %v2838, %v2838
        %v2855 = vpack.c.b16 %v2839, %v2839
        %v2856 = vpack.c.b16 %v2840, %v2840
        %v2857 = vpack.c.b16 %v2841, %v2841
        %v2858 = vpack.c.b16 %v2842, %v2842
        %v2859 = vpack.c.b16 %v2843, %v2843
        %v2860 = vpack.c.b16 %v2844, %v2844
        %v2861 = vpack.c.b16 %v2845, %v2845
        %v2862 = vpack.c.b16 %v2846, %v2846
        %v2863 = vpack.c.b16 %v2847, %v2847
        %v2864 = vpack.c.b16 %v2848, %v2848
        %v2865 = vpack.c.b16 %v2849, %v2849
        %v2866 = vpack.c.b16 %v2850, %v2850
        %v2867 = vpack.c.b16 %v2851, %v2851
        %v2868 = vpack.c.b16 %v2852, %v2852
        %2885 = vst [vmem:[%s523] sm:$0xf] %v2853
        %2886 = vst [vmem:[%s523 + $0x4] sm:$0xf] %v2854
        %2887 = vst [vmem:[%s523 + $0x8] sm:$0xf] %v2855
        %2888 = vst [vmem:[%s523 + $0xc] sm:$0xf] %v2856
        %2889 = vst [vmem:[%s523 + $0x10] sm:$0xf] %v2857
        %2890 = vst [vmem:[%s523 + $0x14] sm:$0xf] %v2858
        %2891 = vst [vmem:[%s523 + $0x18] sm:$0xf] %v2859
        %2892 = vst [vmem:[%s523 + $0x1c] sm:$0xf] %v2860
        %2893 = vst [vmem:[%s523 + $0x20] sm:$0xf] %v2861
        %2894 = vst [vmem:[%s523 + $0x24] sm:$0xf] %v2862
        %2895 = vst [vmem:[%s523 + $0x28] sm:$0xf] %v2863
        %2896 = vst [vmem:[%s523 + $0x2c] sm:$0xf] %v2864
        %2897 = vst [vmem:[%s523 + $0x30] sm:$0xf] %v2865
        %2898 = vst [vmem:[%s523 + $0x34] sm:$0xf] %v2866
        %2899 = vst [vmem:[%s523 + $0x38] sm:$0xf] %v2867
        %2900 = vst [vmem:[%s523 + $0x3c] sm:$0xf] %v2868
        %s2901 = sand.u32 %s267, 1
        %s2902 = scalar_lea.sflag [#allocation4], %s2901
        %s2903 = sand.u32 %s267, 1
        %s2904 = smul.addr %s2903, 64
        %s2905 = scalar_lea.vmem [#allocation11], %s2904
        %s2906 = sand.u32 %s295, 1
        %s2907 = scalar_lea.sflag [#allocation13], %s2906
        %s2908 = sand.u32 %s295, 1
        %s2909 = smul.addr %s2908, 64
        %s2910 = scalar_lea.vmem [#allocation12], %s2909
        // Predicated region
        $region77: #{tpu_custom_call.1} parent=55 // pred_check
          %p2911 = pneg %p277
        $region78: #{tpu_custom_call.1} parent=55 // pred_check_branch
          %2913 = sbr.rel (%p2911) target = $region80
        $region79: #{tpu_custom_call.1} parent=55 // pred_region
          %s2914 = smul.u32 8, %s40
          %s2916 = ssub.s32 1024, 1024
          %2917 = vsyncadd %s2902, %s2916
          %s2918 = smul.addr %s2914, 2
          %s2919 = smul.addr %s39, 32
          %s2920 = sadd.s32 %s2918, %s2919
          %s2921 = smul.addr %s2920, 64
          %s2922 = scalar_lea.hbm %s9, %s2921
          %s2923 = sshll.u32 %s2905, 4
          %s2924 = int_to_ptr.vmem [resolvable:$true] %s2923
          %2929 = dma.vmem_to_hbm [thread:$0]  %s2924, 1024, %s2922, %s2902, 64, 64, 4
        $region80: #{tpu_custom_call.1} parent=55 // pred_fallthru
          _
        // Predicated region
        $region81: #{tpu_custom_call.1} parent=55 // pred_check
          %p2930 = pneg %p305
        $region82: #{tpu_custom_call.1} parent=55 // pred_check_branch
          %2932 = sbr.rel (%p2930) target = $region84
        $region83: #{tpu_custom_call.1} parent=55 // pred_region
          %s2933 = smul.u32 8, %s40
          %s2935 = ssub.s32 1024, 1024
          %2936 = vsyncadd %s2907, %s2935
          %s2937 = smul.addr %s2933, 2
          %s2938 = smul.addr %s39, 32
          %s2939 = sadd.s32 %s2937, %s2938
          %s2940 = smul.addr %s2939, 64
          %s2941 = scalar_lea.hbm %s10, %s2940
          %s2942 = sshll.u32 %s2910, 4
          %s2943 = int_to_ptr.vmem [resolvable:$true] %s2942
          %2948 = dma.vmem_to_hbm [thread:$0]  %s2943, 1024, %s2941, %s2907, 64, 64, 4
        $region84: #{tpu_custom_call.1} parent=55 // pred_fallthru
          _
      $region56: #{tpu_custom_call.1} parent=5 // pred_fallthru
        _
      %p2949 = scmp.le.s32.totalorder 2, %s30
      // Predicated region
      $region85: #{tpu_custom_call.1} parent=5 // pred_check
        %p2950 = pneg %p2949
      $region86: #{tpu_custom_call.1} parent=5 // pred_check_branch
        %2952 = sbr.rel (%p2950) target = $region88
      $region87: #{tpu_custom_call.1} parent=5 // pred_region
        %s2953 = ssub.s32 %s30, 2
        // Predicated region
        $region89: #{tpu_custom_call.1} parent=87 // pred_check
          %p2954 = pneg %p283
        $region90: #{tpu_custom_call.1} parent=87 // pred_check_branch
          %2956 = sbr.rel (%p2954) target = $region92
        $region91: #{tpu_custom_call.1} parent=87 // pred_region
          %s2957 = sand.u32 %s268, 1
          %s2958 = scalar_lea.sflag [#allocation4], %s2957
          %s2959 = sand.u32 %s268, 1
          %s2960 = smul.addr %s2959, 64
          %s2961 = scalar_lea.vmem [#allocation11], %s2960
          %2962 = dma.done %s2958, 1024
        $region92: #{tpu_custom_call.1} parent=87 // pred_fallthru
          _
        // Predicated region
        $region93: #{tpu_custom_call.1} parent=87 // pred_check
          %p2963 = pneg %p311
        $region94: #{tpu_custom_call.1} parent=87 // pred_check_branch
          %2965 = sbr.rel (%p2963) target = $region96
        $region95: #{tpu_custom_call.1} parent=87 // pred_region
          %s2966 = sand.u32 %s296, 1
          %s2967 = scalar_lea.sflag [#allocation13], %s2966
          %s2968 = sand.u32 %s296, 1
          %s2969 = smul.addr %s2968, 64
          %s2970 = scalar_lea.vmem [#allocation12], %s2969
          %2971 = dma.done %s2967, 1024
        $region96: #{tpu_custom_call.1} parent=87 // pred_fallthru
          _
      $region88: #{tpu_custom_call.1} parent=5 // pred_fallthru
        _
    $region6: #{tpu_custom_call.1} parent=1 // loop_footer
      %s34 = sadd.s32 1, %s30
    $region7: #{tpu_custom_call.1} parent=1 // loop_footer_branch
      %29 = sbr.rel target = $region3
    $region8: #{tpu_custom_call.1} parent=1 // loop_exit
      _
    %2972 = vsyncpa [#allocation3], 1
    %s2973 = scalar_lea.sflag [#allocation3], 1
    %2974 = vsyncpa %s2973, 1
    %2975 = vsyncpa [#allocation6], 1
    %s2976 = scalar_lea.sflag [#allocation6], 1
    %2977 = vsyncpa %s2976, 1
    %2978 = vsyncpa [#allocation9], 1
    %2979 = vsyncpa [#allocation4], 1
    %s2980 = scalar_lea.sflag [#allocation4], 1
    %2981 = vsyncpa %s2980, 1
    %2982 = vsyncpa [#allocation13], 1
    %s2983 = scalar_lea.sflag [#allocation13], 1
    %2984 = vsyncpa %s2983, 1

</llo_original>
